<compile_context>
chip_gen: v7x
topology: tpu7x:2x2x1
jax: 0.10.0
libtpu: 0.0.40
codegen_flags: <defaults>
</compile_context>

<pallas_src>
import numpy as np
import jax
import jax.numpy as jnp
from jax import lax
from jax.experimental import pallas as pl
from jax.experimental.pallas import tpu as pltpu


# ------------------------------ small helpers --------------------------------

def _pad8(n):
    return ((n + 7) // 8) * 8


def _pad128(n):
    return ((n + 127) // 128) * 128


def _conv_out(n, k, s, p):
    return (n + 2 * p - k) // s + 1


class _SlabPacker:
    """Packs 2-D f32 constants into one (rows, lanes) slab.

    Every constant starts at an 8-aligned row offset and column 0, so the
    in-kernel reads `slab[off:off+r, :c]` are clean sublane-aligned loads.
    """

    def __init__(self):
        self._blocks = []
        self.meta = []            # (row_offset, rows, cols) per constant
        self._rows = 0

    def add(self, arr):
        arr = np.asarray(arr, np.float32)
        assert arr.ndim == 2, arr.shape
        r, c = arr.shape
        blk = np.zeros((_pad8(r), c), np.float32)
        blk[:r] = arr
        self._blocks.append(blk)
        self.meta.append((self._rows, r, c))
        self._rows += blk.shape[0]
        return len(self.meta) - 1                    # static handle

    def finalize(self):
        width = _pad128(max(b.shape[1] for b in self._blocks))
        slab = np.zeros((self._rows, width), np.float32)
        off = 0
        for b in self._blocks:
            slab[off:off + b.shape[0], :b.shape[1]] = b
            off += b.shape[0]
        return slab


# ------------------------- constant (slab) builders --------------------------

def make_constants(params, input_size):
    """Precompute the packed constant slab + static spec for the fused kernel.
    Run once per weight update (outside the jitted forward)."""
    N, C_in, H, W = input_size
    pk = _SlabPacker()
    stages = []

    def add_conv(w, b, c_in, h_in, w_in, rows_in, stride, pad):
        w = np.asarray(w, np.float32)
        b = np.asarray(b, np.float32)
        c_out, c_in_w, kh, kw = w.shape
        assert c_in_w == c_in
        h_out = _conv_out(h_in, kh, stride, pad)
        w_out = _conv_out(w_in, kw, stride, pad)
        P = _pad8(N * h_out)
        # Stacked row selection: block dy occupies rows [dy*P, dy*P + N*h_out);
        # row (dy*P + n*h_out + y) picks input row (n*h_in + h) with
        # h = y*stride + dy - pad (out-of-range h -> zero row == zero padding).
        rs = np.zeros((kh * P, rows_in), np.float32)
        for dy in range(kh):
            for n in range(N):
                for y in range(h_out):
                    h = y * stride + dy - pad
                    if 0 <= h < h_in:
                        rs[dy * P + n * h_out + y, n * h_in + h] = 1.0
        rs_h = pk.add(rs)
        # Per-tap banded ("Toeplitz") weight matrices:
        # band_dy[ci*w_in + wx, co*w_out + x] = w[co, ci, dy, wx - x*stride + pad]
        band_hs = []
        for dy in range(kh):
            band = np.zeros((c_in * w_in, c_out * w_out), np.float32)
            for x in range(w_out):
                for dx in range(kw):
                    wx = x * stride + dx - pad
                    if 0 <= wx < w_in:
                        for co in range(c_out):
                            for ci in range(c_in):
                                band[ci * w_in + wx, co * w_out + x] = w[co, ci, dy, dx]
            band_hs.append(pk.add(band))
        bias_h = pk.add(np.repeat(b, w_out)[None, :])
        stages.append(("conv", dict(kh=kh, P=P, rs=rs_h,
                                    bands=tuple(band_hs), bias=bias_h)))
        return c_out, h_out, w_out, P

    def add_pool(c, h_in, w_in, rows_in):
        h_out, w_out = h_in // 2, w_in // 2              # floor, like torch
        # even / odd column selection (lane direction)
        ce = np.zeros((c * w_in, c * w_out), np.float32)
        co = np.zeros((c * w_in, c * w_out), np.float32)
        for ch in range(c):
            for j in range(w_out):
                ce[ch * w_in + 2 * j,     ch * w_out + j] = 1.0
                co[ch * w_in + 2 * j + 1, ch * w_out + j] = 1.0
        # Stacked even/odd row selection: even rows in [0, N*h_out), odd rows
        # in [Q, Q + N*h_out); Q is 8-aligned so rr[:Q] / rr[Q:2Q] slices need
        # no relayout.
        Q = _pad8(N * h_out)
        rr = np.zeros((2 * Q, rows_in), np.float32)
        for n in range(N):
            for i in range(h_out):
                rr[n * h_out + i,     n * h_in + 2 * i] = 1.0
                rr[Q + n * h_out + i, n * h_in + 2 * i + 1] = 1.0
        stages.append(("pool", dict(Q=Q, ce=pk.add(ce), co=pk.add(co),
                                    rows=pk.add(rr))))
        return h_out, w_out, Q

    c, h, wd, rows = C_in, H, W, N * H
    c, h, wd, rows = add_conv(params["w_conv1"], params["b_conv1"], c, h, wd, rows, 1, 4)
    h, wd, rows = add_pool(c, h, wd, rows)
    c, h, wd, rows = add_conv(params["w_conv2"], params["b_conv2"], c, h, wd, rows, 2, 1)
    h, wd, rows = add_pool(c, h, wd, rows)
    c, h, wd, rows = add_conv(params["w_conv3"], params["b_conv3"], c, h, wd, rows, 1, 0)

    # Global AvgPool2d + Flatten.  When the conv stack ends at 1x1 spatial the
    # pool is the identity: no matmuls, no extra constants (perf-review item 1).
    if h == 1 and wd == 1:
        agg = None
    else:
        ra = np.zeros((N, rows), np.float32)
        for n in range(N):
            ra[n, n * h:n * h + h] = 1.0 / h
        ca = np.zeros((c * wd, c), np.float32)
        for ch in range(c):
            ca[ch * wd:(ch + 1) * wd, ch] = 1.0 / wd
        agg = (pk.add(ra), pk.add(ca))

    fcs = []
    for wk, bk in (("w_fc1", "b_fc1"), ("w_fc2", "b_fc2"), ("w_fc3", "b_fc3")):
        fcs.append((pk.add(np.asarray(params[wk])), pk.add(np.asarray(params[bk]))))

    spec = dict(N=N, C_in=C_in, H=H, W=W, stages=tuple(stages), agg=agg,
                fcs=tuple(fcs),
                out_dim=int(np.asarray(params["b_fc3"]).shape[-1]),
                slots=tuple(pk.meta))
    return jnp.asarray(pk.finalize()), spec


# ------------------------------ fused kernel ---------------------------------

def make_forward(spec):
    """Build the fused forward pass (closes over the static packing metadata)."""
    slots = spec["slots"]
    N, out_dim = spec["N"], spec["out_dim"]

    def kernel(x_ref, slab_ref, o_ref):
        f32 = jnp.float32

        def ld(handle):
            off, r, c = slots[handle]
            return slab_ref[off:off + r, 0:c]

        def mm(a, b):
            return jnp.dot(a, b, preferred_element_type=f32)

        a = x_ref[...]                                    # (N*H, C_in*W)
        for kind, st in spec["stages"]:
            if kind == "conv":                            # Conv2d + ReLU
                kh, P = st["kh"], st["P"]
                rows_all = mm(ld(st["rs"]), a)            # 1 stacked row-select matmul
                acc = mm(rows_all[0:P, :], ld(st["bands"][0]))
                for dy in range(1, kh):                   # kh banded weight matmuls
                    acc = acc + mm(rows_all[dy * P:(dy + 1) * P, :],
                                   ld(st["bands"][dy]))
                a = jnp.maximum(acc + ld(st["bias"]), 0.0)
            else:                                         # MaxPool2d(2)
                Q = st["Q"]
                mw = jnp.maximum(mm(a, ld(st["ce"])), mm(a, ld(st["co"])))
                rr = mm(ld(st["rows"]), mw)               # stacked even/odd rows
                a = jnp.maximum(rr[0:Q, :], rr[Q:2 * Q, :])

        if spec["agg"] is None:                           # AvgPool2d over 1x1 == slice
            pooled = a[0:N, :]
        else:                                             # general global avg-pool
            ra_h, ca_h = spec["agg"]
            pooled = mm(mm(ld(ra_h), a), ld(ca_h))

        z = pooled                                        # Flatten -> dense head
        last = len(spec["fcs"]) - 1
        for i, (w_h, b_h) in enumerate(spec["fcs"]):
            z = mm(z, ld(w_h)) + ld(b_h)
            if i != last:
                z = jnp.maximum(z, 0.0)
        o_ref[...] = z

    vmem = pl.BlockSpec(memory_space=pltpu.MemorySpace.VMEM)

    def forward(x_nchw, slab):
        n, c_in, hh, ww = x_nchw.shape
        assert (n, c_in, hh, ww) == (N, spec["C_in"], spec["H"], spec["W"])
        # Lane-dense layout A[n*H + y, c*W + x] (a plain reshape for C_in == 1).
        x2d = jnp.transpose(x_nchw, (0, 2, 1, 3)).reshape(n * hh, c_in * ww)
        return pl.pallas_call(
            kernel,
            out_shape=jax.ShapeDtypeStruct((N, out_dim), jnp.float32),
            in_specs=[vmem, vmem],
            out_specs=vmem,
        )(x2d, slab)

    return forward


# --------------------------- pure-JAX reference -------------------------------

def reference_forward(params, x):
    """Pure-JAX (XLA) reference of the same forward pass, for validation."""
    hp = lax.Precision.HIGHEST

    def conv(a, w, b, stride, pad):
        y = lax.conv_general_dilated(a, w, (stride, stride),
                                     [(pad, pad), (pad, pad)],
                                     dimension_numbers=("NCHW", "OIHW", "NCHW"),
                                     precision=hp)
        return jax.nn.relu(y + b[None, :, None, None])

    def pool(a):
        return lax.reduce_window(a, -jnp.inf, lax.max,
                                 (1, 1, 2, 2), (1, 1, 2, 2), "VALID")

    a = conv(x, params["w_conv1"], params["b_conv1"], 1, 4)
    a = pool(a)
    a = conv(a, params["w_conv2"], params["b_conv2"], 2, 1)
    a = pool(a)
    a = conv(a, params["w_conv3"], params["b_conv3"], 1, 0)
    a = jnp.mean(a, axis=(2, 3))                          # global AvgPool + Flatten
    z = jax.nn.relu(jnp.dot(a, params["w_fc1"], precision=hp) + params["b_fc1"])
    z = jax.nn.relu(jnp.dot(z, params["w_fc2"], precision=hp) + params["b_fc2"])
    return jnp.dot(z, params["w_fc3"], precision=hp) + params["b_fc3"]


# ------------------------------ parameter setup -------------------------------

def init_params(key, in_channels=1, expansion=4, units1=32, units2=16):
    c = in_channels * expansion
    keys = jax.random.split(key, 12)

    def uniform(k, shape, fan_in):
        bound = 1.0 / (fan_in ** 0.5)
        return jax.random.uniform(k, shape, jnp.float32, -bound, bound)

    return {
        "w_conv1": uniform(keys[0], (c, in_channels, 7, 7), in_channels * 49),
        "b_conv1": uniform(keys[1], (c,), in_channels * 49),
        "w_conv2": uniform(keys[2], (c, c, 5, 5), c * 25),
        "b_conv2": uniform(keys[3], (c,), c * 25),
        "w_conv3": uniform(keys[4], (c, c, 3, 3), c * 9),
        "b_conv3": uniform(keys[5], (c,), c * 9),
        # torch Linear(in, out) weight is (out, in); stored here as (in, out).
        "w_fc1": uniform(keys[6], (expansion, units1), expansion),
        "b_fc1": uniform(keys[7], (1, units1), expansion),
        "w_fc2": uniform(keys[8], (units1, units2), units1),
        "b_fc2": uniform(keys[9], (1, units2), units1),
        "w_fc3": uniform(keys[10], (units2, 10), units2),
        "b_fc3": uniform(keys[11], (1, 10), units2),
    }


# ----------------------------------- main -------------------------------------

if __name__ == "__main__":
    key = jax.random.PRNGKey(0)
    k_param, k_x = jax.random.split(key)

    # input_size = (N, C, H, W) = (2, 1, 28, 28); Linear(expansion, units1) in
    # the PyTorch head implies in_channels == 1.
    input_size = (2, 1, 28, 28)
    x = jax.random.normal(k_x, input_size, jnp.float32)
    params = init_params(k_param)

    slab, spec = make_constants(params, input_size)   # one-time weight/layout prep
    fwd = jax.jit(make_forward(spec))

    logits = jax.block_until_ready(fwd(x, slab))
    assert logits.shape == (2, 10), logits.shape
    assert logits.dtype == jnp.float32
    assert bool(jnp.all(jnp.isfinite(logits)))

    # Validate against a pure-JAX reference of the same forward pass.
    ref = reference_forward(params, x)
    np.testing.assert_allclose(np.asarray(logits), np.asarray(ref),
                               rtol=1e-2, atol=1e-2)
    print("KERNEL_OK")
</pallas_src>

<mosaic_0001>
module attributes {stable_mosaic.version = 11 : i64} {
  func.func @kernel(%arg0: memref<56x28xf32, #tpu.memory_space<vmem>>, %arg1: memref<1632x128xf32, #tpu.memory_space<vmem>>, %arg2: memref<2x10xf32, #tpu.memory_space<vmem>>) attributes {dimension_semantics = [], scalar_prefetch = 0 : i64, scratch_operands = 0 : i64, tpu.core_type = #tpu.core_type<tc>} {
    %c0 = arith.constant 0 : index
    %c0_0 = arith.constant 0 : index
    %0 = vector.load %arg0[%c0, %c0_0] : memref<56x28xf32, #tpu.memory_space<vmem>>, vector<56x28xf32>
    %c0_1 = arith.constant 0 : index
    %c0_2 = arith.constant 0 : index
    %1 = vector.load %arg1[%c0_1, %c0_2] : memref<1632x128xf32, #tpu.memory_space<vmem>>, vector<448x56xf32>
    %cst = arith.constant dense<0.000000e+00> : vector<448x28xf32>
    %2 = tpu.matmul %1, %0, %cst {dimension_numbers = #tpu.dot_dimension_numbers<[1], [0], [0], [1], [0, 0, 1, 1], [], []>} : vector<448x56xf32>, vector<56x28xf32>, vector<448x28xf32> -> vector<448x28xf32>
    %3 = vector.extract_strided_slice %2 {offsets = [0, 0], sizes = [64, 28], strides = [1, 1]} : vector<448x28xf32> to vector<64x28xf32>
    %c448 = arith.constant 448 : index
    %c0_3 = arith.constant 0 : index
    %4 = vector.load %arg1[%c448, %c0_3] : memref<1632x128xf32, #tpu.memory_space<vmem>>, vector<28x120xf32>
    %cst_4 = arith.constant dense<0.000000e+00> : vector<64x120xf32>
    %5 = tpu.matmul %3, %4, %cst_4 {dimension_numbers = #tpu.dot_dimension_numbers<[1], [0], [0], [1], [0, 0, 1, 1], [], []>} : vector<64x28xf32>, vector<28x120xf32>, vector<64x120xf32> -> vector<64x120xf32>
    %6 = vector.extract_strided_slice %2 {offsets = [64, 0], sizes = [64, 28], strides = [1, 1]} : vector<448x28xf32> to vector<64x28xf32>
    %c480 = arith.constant 480 : index
    %c0_5 = arith.constant 0 : index
    %7 = vector.load %arg1[%c480, %c0_5] : memref<1632x128xf32, #tpu.memory_space<vmem>>, vector<28x120xf32>
    %cst_6 = arith.constant dense<0.000000e+00> : vector<64x120xf32>
    %8 = tpu.matmul %6, %7, %cst_6 {dimension_numbers = #tpu.dot_dimension_numbers<[1], [0], [0], [1], [0, 0, 1, 1], [], []>} : vector<64x28xf32>, vector<28x120xf32>, vector<64x120xf32> -> vector<64x120xf32>
    %9 = arith.addf %5, %8 : vector<64x120xf32>
    %10 = vector.extract_strided_slice %2 {offsets = [128, 0], sizes = [64, 28], strides = [1, 1]} : vector<448x28xf32> to vector<64x28xf32>
    %c512 = arith.constant 512 : index
    %c0_7 = arith.constant 0 : index
    %11 = vector.load %arg1[%c512, %c0_7] : memref<1632x128xf32, #tpu.memory_space<vmem>>, vector<28x120xf32>
    %cst_8 = arith.constant dense<0.000000e+00> : vector<64x120xf32>
    %12 = tpu.matmul %10, %11, %cst_8 {dimension_numbers = #tpu.dot_dimension_numbers<[1], [0], [0], [1], [0, 0, 1, 1], [], []>} : vector<64x28xf32>, vector<28x120xf32>, vector<64x120xf32> -> vector<64x120xf32>
    %13 = arith.addf %9, %12 : vector<64x120xf32>
    %14 = vector.extract_strided_slice %2 {offsets = [192, 0], sizes = [64, 28], strides = [1, 1]} : vector<448x28xf32> to vector<64x28xf32>
    %c544 = arith.constant 544 : index
    %c0_9 = arith.constant 0 : index
    %15 = vector.load %arg1[%c544, %c0_9] : memref<1632x128xf32, #tpu.memory_space<vmem>>, vector<28x120xf32>
    %cst_10 = arith.constant dense<0.000000e+00> : vector<64x120xf32>
    %16 = tpu.matmul %14, %15, %cst_10 {dimension_numbers = #tpu.dot_dimension_numbers<[1], [0], [0], [1], [0, 0, 1, 1], [], []>} : vector<64x28xf32>, vector<28x120xf32>, vector<64x120xf32> -> vector<64x120xf32>
    %17 = arith.addf %13, %16 : vector<64x120xf32>
    %18 = vector.extract_strided_slice %2 {offsets = [256, 0], sizes = [64, 28], strides = [1, 1]} : vector<448x28xf32> to vector<64x28xf32>
    %c576 = arith.constant 576 : index
    %c0_11 = arith.constant 0 : index
    %19 = vector.load %arg1[%c576, %c0_11] : memref<1632x128xf32, #tpu.memory_space<vmem>>, vector<28x120xf32>
    %cst_12 = arith.constant dense<0.000000e+00> : vector<64x120xf32>
    %20 = tpu.matmul %18, %19, %cst_12 {dimension_numbers = #tpu.dot_dimension_numbers<[1], [0], [0], [1], [0, 0, 1, 1], [], []>} : vector<64x28xf32>, vector<28x120xf32>, vector<64x120xf32> -> vector<64x120xf32>
    %21 = arith.addf %17, %20 : vector<64x120xf32>
    %22 = vector.extract_strided_slice %2 {offsets = [320, 0], sizes = [64, 28], strides = [1, 1]} : vector<448x28xf32> to vector<64x28xf32>
    %c608 = arith.constant 608 : index
    %c0_13 = arith.constant 0 : index
    %23 = vector.load %arg1[%c608, %c0_13] : memref<1632x128xf32, #tpu.memory_space<vmem>>, vector<28x120xf32>
    %cst_14 = arith.constant dense<0.000000e+00> : vector<64x120xf32>
    %24 = tpu.matmul %22, %23, %cst_14 {dimension_numbers = #tpu.dot_dimension_numbers<[1], [0], [0], [1], [0, 0, 1, 1], [], []>} : vector<64x28xf32>, vector<28x120xf32>, vector<64x120xf32> -> vector<64x120xf32>
    %25 = arith.addf %21, %24 : vector<64x120xf32>
    %26 = vector.extract_strided_slice %2 {offsets = [384, 0], sizes = [64, 28], strides = [1, 1]} : vector<448x28xf32> to vector<64x28xf32>
    %c640 = arith.constant 640 : index
    %c0_15 = arith.constant 0 : index
    %27 = vector.load %arg1[%c640, %c0_15] : memref<1632x128xf32, #tpu.memory_space<vmem>>, vector<28x120xf32>
    %cst_16 = arith.constant dense<0.000000e+00> : vector<64x120xf32>
    %28 = tpu.matmul %26, %27, %cst_16 {dimension_numbers = #tpu.dot_dimension_numbers<[1], [0], [0], [1], [0, 0, 1, 1], [], []>} : vector<64x28xf32>, vector<28x120xf32>, vector<64x120xf32> -> vector<64x120xf32>
    %29 = arith.addf %25, %28 : vector<64x120xf32>
    %c672 = arith.constant 672 : index
    %c0_17 = arith.constant 0 : index
    %30 = vector.load %arg1[%c672, %c0_17] : memref<1632x128xf32, #tpu.memory_space<vmem>>, vector<1x120xf32>
    %31 = vector.broadcast %30 : vector<1x120xf32> to vector<64x120xf32>
    %32 = arith.addf %29, %31 : vector<64x120xf32>
    %cst_18 = arith.constant 0.000000e+00 : f32
    %33 = vector.broadcast %cst_18 : f32 to vector<64x120xf32>
    %34 = arith.maximumf %32, %33 : vector<64x120xf32>
    %c680 = arith.constant 680 : index
    %c0_19 = arith.constant 0 : index
    %35 = vector.load %arg1[%c680, %c0_19] : memref<1632x128xf32, #tpu.memory_space<vmem>>, vector<120x60xf32>
    %cst_20 = arith.constant dense<0.000000e+00> : vector<64x60xf32>
    %36 = tpu.matmul %34, %35, %cst_20 {dimension_numbers = #tpu.dot_dimension_numbers<[1], [0], [0], [1], [0, 0, 1, 1], [], []>} : vector<64x120xf32>, vector<120x60xf32>, vector<64x60xf32> -> vector<64x60xf32>
    %c800 = arith.constant 800 : index
    %c0_21 = arith.constant 0 : index
    %37 = vector.load %arg1[%c800, %c0_21] : memref<1632x128xf32, #tpu.memory_space<vmem>>, vector<120x60xf32>
    %cst_22 = arith.constant dense<0.000000e+00> : vector<64x60xf32>
    %38 = tpu.matmul %34, %37, %cst_22 {dimension_numbers = #tpu.dot_dimension_numbers<[1], [0], [0], [1], [0, 0, 1, 1], [], []>} : vector<64x120xf32>, vector<120x60xf32>, vector<64x60xf32> -> vector<64x60xf32>
    %39 = arith.maximumf %36, %38 : vector<64x60xf32>
    %c920 = arith.constant 920 : index
    %c0_23 = arith.constant 0 : index
    %40 = vector.load %arg1[%c920, %c0_23] : memref<1632x128xf32, #tpu.memory_space<vmem>>, vector<64x64xf32>
    %cst_24 = arith.constant dense<0.000000e+00> : vector<64x60xf32>
    %41 = tpu.matmul %40, %39, %cst_24 {dimension_numbers = #tpu.dot_dimension_numbers<[1], [0], [0], [1], [0, 0, 1, 1], [], []>} : vector<64x64xf32>, vector<64x60xf32>, vector<64x60xf32> -> vector<64x60xf32>
    %42 = vector.extract_strided_slice %41 {offsets = [0, 0], sizes = [32, 60], strides = [1, 1]} : vector<64x60xf32> to vector<32x60xf32>
    %43 = vector.extract_strided_slice %41 {offsets = [32, 0], sizes = [32, 60], strides = [1, 1]} : vector<64x60xf32> to vector<32x60xf32>
    %44 = arith.maximumf %42, %43 : vector<32x60xf32>
    %c984 = arith.constant 984 : index
    %c0_25 = arith.constant 0 : index
    %45 = vector.load %arg1[%c984, %c0_25] : memref<1632x128xf32, #tpu.memory_space<vmem>>, vector<80x32xf32>
    %cst_26 = arith.constant dense<0.000000e+00> : vector<80x60xf32>
    %46 = tpu.matmul %45, %44, %cst_26 {dimension_numbers = #tpu.dot_dimension_numbers<[1], [0], [0], [1], [0, 0, 1, 1], [], []>} : vector<80x32xf32>, vector<32x60xf32>, vector<80x60xf32> -> vector<80x60xf32>
    %47 = vector.extract_strided_slice %46 {offsets = [0, 0], sizes = [16, 60], strides = [1, 1]} : vector<80x60xf32> to vector<16x60xf32>
    %c1064 = arith.constant 1064 : index
    %c0_27 = arith.constant 0 : index
    %48 = vector.load %arg1[%c1064, %c0_27] : memref<1632x128xf32, #tpu.memory_space<vmem>>, vector<60x28xf32>
    %cst_28 = arith.constant dense<0.000000e+00> : vector<16x28xf32>
    %49 = tpu.matmul %47, %48, %cst_28 {dimension_numbers = #tpu.dot_dimension_numbers<[1], [0], [0], [1], [0, 0, 1, 1], [], []>} : vector<16x60xf32>, vector<60x28xf32>, vector<16x28xf32> -> vector<16x28xf32>
    %50 = vector.extract_strided_slice %46 {offsets = [16, 0], sizes = [16, 60], strides = [1, 1]} : vector<80x60xf32> to vector<16x60xf32>
    %c1128 = arith.constant 1128 : index
    %c0_29 = arith.constant 0 : index
    %51 = vector.load %arg1[%c1128, %c0_29] : memref<1632x128xf32, #tpu.memory_space<vmem>>, vector<60x28xf32>
    %cst_30 = arith.constant dense<0.000000e+00> : vector<16x28xf32>
    %52 = tpu.matmul %50, %51, %cst_30 {dimension_numbers = #tpu.dot_dimension_numbers<[1], [0], [0], [1], [0, 0, 1, 1], [], []>} : vector<16x60xf32>, vector<60x28xf32>, vector<16x28xf32> -> vector<16x28xf32>
    %53 = arith.addf %49, %52 : vector<16x28xf32>
    %54 = vector.extract_strided_slice %46 {offsets = [32, 0], sizes = [16, 60], strides = [1, 1]} : vector<80x60xf32> to vector<16x60xf32>
    %c1192 = arith.constant 1192 : index
    %c0_31 = arith.constant 0 : index
    %55 = vector.load %arg1[%c1192, %c0_31] : memref<1632x128xf32, #tpu.memory_space<vmem>>, vector<60x28xf32>
    %cst_32 = arith.constant dense<0.000000e+00> : vector<16x28xf32>
    %56 = tpu.matmul %54, %55, %cst_32 {dimension_numbers = #tpu.dot_dimension_numbers<[1], [0], [0], [1], [0, 0, 1, 1], [], []>} : vector<16x60xf32>, vector<60x28xf32>, vector<16x28xf32> -> vector<16x28xf32>
    %57 = arith.addf %53, %56 : vector<16x28xf32>
    %58 = vector.extract_strided_slice %46 {offsets = [48, 0], sizes = [16, 60], strides = [1, 1]} : vector<80x60xf32> to vector<16x60xf32>
    %c1256 = arith.constant 1256 : index
    %c0_33 = arith.constant 0 : index
    %59 = vector.load %arg1[%c1256, %c0_33] : memref<1632x128xf32, #tpu.memory_space<vmem>>, vector<60x28xf32>
    %cst_34 = arith.constant dense<0.000000e+00> : vector<16x28xf32>
    %60 = tpu.matmul %58, %59, %cst_34 {dimension_numbers = #tpu.dot_dimension_numbers<[1], [0], [0], [1], [0, 0, 1, 1], [], []>} : vector<16x60xf32>, vector<60x28xf32>, vector<16x28xf32> -> vector<16x28xf32>
    %61 = arith.addf %57, %60 : vector<16x28xf32>
    %62 = vector.extract_strided_slice %46 {offsets = [64, 0], sizes = [16, 60], strides = [1, 1]} : vector<80x60xf32> to vector<16x60xf32>
    %c1320 = arith.constant 1320 : index
    %c0_35 = arith.constant 0 : index
    %63 = vector.load %arg1[%c1320, %c0_35] : memref<1632x128xf32, #tpu.memory_space<vmem>>, vector<60x28xf32>
    %cst_36 = arith.constant dense<0.000000e+00> : vector<16x28xf32>
    %64 = tpu.matmul %62, %63, %cst_36 {dimension_numbers = #tpu.dot_dimension_numbers<[1], [0], [0], [1], [0, 0, 1, 1], [], []>} : vector<16x60xf32>, vector<60x28xf32>, vector<16x28xf32> -> vector<16x28xf32>
    %65 = arith.addf %61, %64 : vector<16x28xf32>
    %c1384 = arith.constant 1384 : index
    %c0_37 = arith.constant 0 : index
    %66 = vector.load %arg1[%c1384, %c0_37] : memref<1632x128xf32, #tpu.memory_space<vmem>>, vector<1x28xf32>
    %67 = vector.broadcast %66 : vector<1x28xf32> to vector<16x28xf32>
    %68 = arith.addf %65, %67 : vector<16x28xf32>
    %cst_38 = arith.constant 0.000000e+00 : f32
    %69 = vector.broadcast %cst_38 : f32 to vector<16x28xf32>
    %70 = arith.maximumf %68, %69 : vector<16x28xf32>
    %c1392 = arith.constant 1392 : index
    %c0_39 = arith.constant 0 : index
    %71 = vector.load %arg1[%c1392, %c0_39] : memref<1632x128xf32, #tpu.memory_space<vmem>>, vector<28x12xf32>
    %cst_40 = arith.constant dense<0.000000e+00> : vector<16x12xf32>
    %72 = tpu.matmul %70, %71, %cst_40 {dimension_numbers = #tpu.dot_dimension_numbers<[1], [0], [0], [1], [0, 0, 1, 1], [], []>} : vector<16x28xf32>, vector<28x12xf32>, vector<16x12xf32> -> vector<16x12xf32>
    %c1424 = arith.constant 1424 : index
    %c0_41 = arith.constant 0 : index
    %73 = vector.load %arg1[%c1424, %c0_41] : memref<1632x128xf32, #tpu.memory_space<vmem>>, vector<28x12xf32>
    %cst_42 = arith.constant dense<0.000000e+00> : vector<16x12xf32>
    %74 = tpu.matmul %70, %73, %cst_42 {dimension_numbers = #tpu.dot_dimension_numbers<[1], [0], [0], [1], [0, 0, 1, 1], [], []>} : vector<16x28xf32>, vector<28x12xf32>, vector<16x12xf32> -> vector<16x12xf32>
    %75 = arith.maximumf %72, %74 : vector<16x12xf32>
    %c1456 = arith.constant 1456 : index
    %c0_43 = arith.constant 0 : index
    %76 = vector.load %arg1[%c1456, %c0_43] : memref<1632x128xf32, #tpu.memory_space<vmem>>, vector<16x16xf32>
    %cst_44 = arith.constant dense<0.000000e+00> : vector<16x12xf32>
    %77 = tpu.matmul %76, %75, %cst_44 {dimension_numbers = #tpu.dot_dimension_numbers<[1], [0], [0], [1], [0, 0, 1, 1], [], []>} : vector<16x16xf32>, vector<16x12xf32>, vector<16x12xf32> -> vector<16x12xf32>
    %78 = vector.extract_strided_slice %77 {offsets = [0, 0], sizes = [8, 12], strides = [1, 1]} : vector<16x12xf32> to vector<8x12xf32>
    %79 = vector.extract_strided_slice %77 {offsets = [8, 0], sizes = [8, 12], strides = [1, 1]} : vector<16x12xf32> to vector<8x12xf32>
    %80 = arith.maximumf %78, %79 : vector<8x12xf32>
    %c1472 = arith.constant 1472 : index
    %c0_45 = arith.constant 0 : index
    %81 = vector.load %arg1[%c1472, %c0_45] : memref<1632x128xf32, #tpu.memory_space<vmem>>, vector<24x8xf32>
    %cst_46 = arith.constant dense<0.000000e+00> : vector<24x12xf32>
    %82 = tpu.matmul %81, %80, %cst_46 {dimension_numbers = #tpu.dot_dimension_numbers<[1], [0], [0], [1], [0, 0, 1, 1], [], []>} : vector<24x8xf32>, vector<8x12xf32>, vector<24x12xf32> -> vector<24x12xf32>
    %83 = vector.extract_strided_slice %82 {offsets = [0, 0], sizes = [8, 12], strides = [1, 1]} : vector<24x12xf32> to vector<8x12xf32>
    %c1496 = arith.constant 1496 : index
    %c0_47 = arith.constant 0 : index
    %84 = vector.load %arg1[%c1496, %c0_47] : memref<1632x128xf32, #tpu.memory_space<vmem>>, vector<12x4xf32>
    %cst_48 = arith.constant dense<0.000000e+00> : vector<8x4xf32>
    %85 = tpu.matmul %83, %84, %cst_48 {dimension_numbers = #tpu.dot_dimension_numbers<[1], [0], [0], [1], [0, 0, 1, 1], [], []>} : vector<8x12xf32>, vector<12x4xf32>, vector<8x4xf32> -> vector<8x4xf32>
    %86 = vector.extract_strided_slice %82 {offsets = [8, 0], sizes = [8, 12], strides = [1, 1]} : vector<24x12xf32> to vector<8x12xf32>
    %c1512 = arith.constant 1512 : index
    %c0_49 = arith.constant 0 : index
    %87 = vector.load %arg1[%c1512, %c0_49] : memref<1632x128xf32, #tpu.memory_space<vmem>>, vector<12x4xf32>
    %cst_50 = arith.constant dense<0.000000e+00> : vector<8x4xf32>
    %88 = tpu.matmul %86, %87, %cst_50 {dimension_numbers = #tpu.dot_dimension_numbers<[1], [0], [0], [1], [0, 0, 1, 1], [], []>} : vector<8x12xf32>, vector<12x4xf32>, vector<8x4xf32> -> vector<8x4xf32>
    %89 = arith.addf %85, %88 : vector<8x4xf32>
    %90 = vector.extract_strided_slice %82 {offsets = [16, 0], sizes = [8, 12], strides = [1, 1]} : vector<24x12xf32> to vector<8x12xf32>
    %c1528 = arith.constant 1528 : index
    %c0_51 = arith.constant 0 : index
    %91 = vector.load %arg1[%c1528, %c0_51] : memref<1632x128xf32, #tpu.memory_space<vmem>>, vector<12x4xf32>
    %cst_52 = arith.constant dense<0.000000e+00> : vector<8x4xf32>
    %92 = tpu.matmul %90, %91, %cst_52 {dimension_numbers = #tpu.dot_dimension_numbers<[1], [0], [0], [1], [0, 0, 1, 1], [], []>} : vector<8x12xf32>, vector<12x4xf32>, vector<8x4xf32> -> vector<8x4xf32>
    %93 = arith.addf %89, %92 : vector<8x4xf32>
    %c1544 = arith.constant 1544 : index
    %c0_53 = arith.constant 0 : index
    %94 = vector.load %arg1[%c1544, %c0_53] : memref<1632x128xf32, #tpu.memory_space<vmem>>, vector<1x4xf32>
    %95 = vector.broadcast %94 : vector<1x4xf32> to vector<8x4xf32>
    %96 = arith.addf %93, %95 : vector<8x4xf32>
    %cst_54 = arith.constant 0.000000e+00 : f32
    %97 = vector.broadcast %cst_54 : f32 to vector<8x4xf32>
    %98 = arith.maximumf %96, %97 : vector<8x4xf32>
    %99 = vector.extract_strided_slice %98 {offsets = [0, 0], sizes = [2, 4], strides = [1, 1]} : vector<8x4xf32> to vector<2x4xf32>
    %c1552 = arith.constant 1552 : index
    %c0_55 = arith.constant 0 : index
    %100 = vector.load %arg1[%c1552, %c0_55] : memref<1632x128xf32, #tpu.memory_space<vmem>>, vector<4x32xf32>
    %cst_56 = arith.constant dense<0.000000e+00> : vector<2x32xf32>
    %101 = tpu.matmul %99, %100, %cst_56 {dimension_numbers = #tpu.dot_dimension_numbers<[1], [0], [0], [1], [0, 0, 1, 1], [], []>} : vector<2x4xf32>, vector<4x32xf32>, vector<2x32xf32> -> vector<2x32xf32>
    %c1560 = arith.constant 1560 : index
    %c0_57 = arith.constant 0 : index
    %102 = vector.load %arg1[%c1560, %c0_57] : memref<1632x128xf32, #tpu.memory_space<vmem>>, vector<1x32xf32>
    %103 = vector.broadcast %102 : vector<1x32xf32> to vector<2x32xf32>
    %104 = arith.addf %101, %103 : vector<2x32xf32>
    %cst_58 = arith.constant 0.000000e+00 : f32
    %105 = vector.broadcast %cst_58 : f32 to vector<2x32xf32>
    %106 = arith.maximumf %104, %105 : vector<2x32xf32>
    %c1568 = arith.constant 1568 : index
    %c0_59 = arith.constant 0 : index
    %107 = vector.load %arg1[%c1568, %c0_59] : memref<1632x128xf32, #tpu.memory_space<vmem>>, vector<32x16xf32>
    %cst_60 = arith.constant dense<0.000000e+00> : vector<2x16xf32>
    %108 = tpu.matmul %106, %107, %cst_60 {dimension_numbers = #tpu.dot_dimension_numbers<[1], [0], [0], [1], [0, 0, 1, 1], [], []>} : vector<2x32xf32>, vector<32x16xf32>, vector<2x16xf32> -> vector<2x16xf32>
    %c1600 = arith.constant 1600 : index
    %c0_61 = arith.constant 0 : index
    %109 = vector.load %arg1[%c1600, %c0_61] : memref<1632x128xf32, #tpu.memory_space<vmem>>, vector<1x16xf32>
    %110 = vector.broadcast %109 : vector<1x16xf32> to vector<2x16xf32>
    %111 = arith.addf %108, %110 : vector<2x16xf32>
    %cst_62 = arith.constant 0.000000e+00 : f32
    %112 = vector.broadcast %cst_62 : f32 to vector<2x16xf32>
    %113 = arith.maximumf %111, %112 : vector<2x16xf32>
    %c1608 = arith.constant 1608 : index
    %c0_63 = arith.constant 0 : index
    %114 = vector.load %arg1[%c1608, %c0_63] : memref<1632x128xf32, #tpu.memory_space<vmem>>, vector<16x10xf32>
    %cst_64 = arith.constant dense<0.000000e+00> : vector<2x10xf32>
    %115 = tpu.matmul %113, %114, %cst_64 {dimension_numbers = #tpu.dot_dimension_numbers<[1], [0], [0], [1], [0, 0, 1, 1], [], []>} : vector<2x16xf32>, vector<16x10xf32>, vector<2x10xf32> -> vector<2x10xf32>
    %c1624 = arith.constant 1624 : index
    %c0_65 = arith.constant 0 : index
    %116 = vector.load %arg1[%c1624, %c0_65] : memref<1632x128xf32, #tpu.memory_space<vmem>>, vector<1x10xf32>
    %117 = vector.broadcast %116 : vector<1x10xf32> to vector<2x10xf32>
    %118 = arith.addf %115, %117 : vector<2x10xf32>
    %c0_66 = arith.constant 0 : index
    %c0_67 = arith.constant 0 : index
    %119 = vector.load %arg2[%c0_66, %c0_67] : memref<2x10xf32, #tpu.memory_space<vmem>>, vector<2x10xf32>
    tpu.vector_store %arg2[%c0_66, %c0_67], %118 {strides = array<i32>} : memref<2x10xf32, #tpu.memory_space<vmem>>, vector<2x10xf32>,
    return
  }
}

</mosaic_0001>

<llo_original>
// kernel: forward.1
$region0: #{forward.1}
  #allocation0 [shape = 'u32[]', space=smem, size = 0x4, offset = 0x4, fixed_abs, tag = 'smem constant byte address 0x4 - core index']
  #allocation1 [shape = 'u32[144,128]{1,0:T(1,128)}', space=vmem, size = 0x12000, scoped, tag = 'internal scratch']
  %s0 = inlined_call_operand.hbm [shape: f32[56,28], index: 0, kind: input, shape index: {}]
  %s1 = inlined_call_operand.hbm [shape: f32[1632,128], index: 1, kind: input, shape index: {}]
  %s2 = inlined_call_operand.hbm [shape: f32[2,10], index: 2, kind: output, shape index: {}]
  %s3 = sld [smem:[#allocation0]]
  $region26: #{forward.1} parent=0
    _
  %s5 = ssub.s32 1, %s3
  %s6 = scalar_select 0, %s5, %s3
  $region1: #{forward.1} parent=0
    #allocation2 [shape = 'u8[28672]{0}', space=vmem, size = 0x7000, scoped, tag = 'input window, operand 0, single buffered']
    #allocation3 [shape = 's32[1]{0}', space=sflag, size = 0x4, scoped, tag = 'scoped memory for forward.1']
    #allocation4 [shape = 's32[1]{0}', space=sflag, size = 0x4, scoped, tag = 'scoped memory for forward.1']
    #allocation5 [shape = 'u8[835584]{0}', space=vmem, size = 0xcc000, scoped, tag = 'input window, operand 1, single buffered']
    #allocation6 [shape = 's32[1]{0}', space=sflag, size = 0x4, scoped, tag = 'scoped memory for forward.1']
    #allocation7 [shape = 'u8[1024]{0}', space=vmem, size = 0x400, scoped, tag = 'output window, operand 0, single buffered']
    %7 = vsyncpa [#allocation3], 0
    %8 = vsyncpa [#allocation6], 0
    %9 = vsyncpa [#allocation4], 0
    // Predicated region
    $region2: #{forward.1} parent=1 // pred_check
      _
    $region3: #{forward.1} parent=1 // pred_check_branch
      %11 = sbr.rel (0) target = $region5
    $region4: #{forward.1} parent=1 // pred_region
      %s13 = ssub.s32 896, 896
      %14 = vsyncadd [#allocation3], %s13
      %s15 = sshll.u32 [#allocation2], 4
      %s16 = int_to_ptr.vmem [resolvable:$true] %s15
      %21 = dma.hbm_to_vmem [thread:$0]  %s0, 896, %s16, [#allocation3], 128, 128, 8
    $region5: #{forward.1} parent=1 // pred_fallthru
      _
    // Predicated region
    $region6: #{forward.1} parent=1 // pred_check
      _
    $region7: #{forward.1} parent=1 // pred_check_branch
      %23 = sbr.rel (0) target = $region9
    $region8: #{forward.1} parent=1 // pred_region
      %s25 = ssub.s32 26112, 26112
      %26 = vsyncadd [#allocation6], %s25
      %s27 = sshll.u32 [#allocation5], 4
      %s28 = int_to_ptr.vmem [resolvable:$true] %s27
      %33 = dma.hbm_to_vmem [thread:$0]  %s1, 26112, %s28, [#allocation6], 128, 128, 8
    $region9: #{forward.1} parent=1 // pred_fallthru
      _
    // Predicated region
    $region10: #{forward.1} parent=1 // pred_check
      _
    $region11: #{forward.1} parent=1 // pred_check_branch
      %35 = sbr.rel (0) target = $region13
    $region12: #{forward.1} parent=1 // pred_region
      %36 = dma.done [#allocation3], 896
    $region13: #{forward.1} parent=1 // pred_fallthru
      _
    // Predicated region
    $region14: #{forward.1} parent=1 // pred_check
      _
    $region15: #{forward.1} parent=1 // pred_check_branch
      %38 = sbr.rel (0) target = $region17
    $region16: #{forward.1} parent=1 // pred_region
      %39 = dma.done [#allocation6], 26112
    $region17: #{forward.1} parent=1 // pred_fallthru
      _
    %v40 = vld [vmem:[#allocation2] sm:$0xff]
    %v41 = vld [vmem:[#allocation2 + $0x8] sm:$0xff]
    %v42 = vld [vmem:[#allocation2 + $0x10] sm:$0xff]
    %v43 = vld [vmem:[#allocation2 + $0x18] sm:$0xff]
    %v44 = vld [vmem:[#allocation2 + $0x20] sm:$0xff]
    %v45 = vld [vmem:[#allocation2 + $0x28] sm:$0xff]
    %v46 = vld [vmem:[#allocation2 + $0x30] sm:$0xff]
    %v47 = vld [vmem:[#allocation5] sm:$0xff]
    %v48 = vld [vmem:[#allocation5 + $0x8] sm:$0xff]
    %v49 = vld [vmem:[#allocation5 + $0x10] sm:$0xff]
    %v50 = vld [vmem:[#allocation5 + $0x18] sm:$0xff]
    %v51 = vld [vmem:[#allocation5 + $0x20] sm:$0xff]
    %v52 = vld [vmem:[#allocation5 + $0x28] sm:$0xff]
    %v53 = vld [vmem:[#allocation5 + $0x30] sm:$0xff]
    %v54 = vld [vmem:[#allocation5 + $0x38] sm:$0xff]
    %v55 = vld [vmem:[#allocation5 + $0x40] sm:$0xff]
    %v56 = vld [vmem:[#allocation5 + $0x48] sm:$0xff]
    %v57 = vld [vmem:[#allocation5 + $0x50] sm:$0xff]
    %v58 = vld [vmem:[#allocation5 + $0x58] sm:$0xff]
    %v59 = vld [vmem:[#allocation5 + $0x60] sm:$0xff]
    %v60 = vld [vmem:[#allocation5 + $0x68] sm:$0xff]
    %v61 = vld [vmem:[#allocation5 + $0x70] sm:$0xff]
    %v62 = vld [vmem:[#allocation5 + $0x78] sm:$0xff]
    %v63 = vld [vmem:[#allocation5 + $0x80] sm:$0xff]
    %v64 = vld [vmem:[#allocation5 + $0x88] sm:$0xff]
    %v65 = vld [vmem:[#allocation5 + $0x90] sm:$0xff]
    %v66 = vld [vmem:[#allocation5 + $0x98] sm:$0xff]
    %v67 = vld [vmem:[#allocation5 + $0xa0] sm:$0xff]
    %v68 = vld [vmem:[#allocation5 + $0xa8] sm:$0xff]
    %v69 = vld [vmem:[#allocation5 + $0xb0] sm:$0xff]
    %v70 = vld [vmem:[#allocation5 + $0xb8] sm:$0xff]
    %v71 = vld [vmem:[#allocation5 + $0xc0] sm:$0xff]
    %v72 = vld [vmem:[#allocation5 + $0xc8] sm:$0xff]
    %v73 = vld [vmem:[#allocation5 + $0xd0] sm:$0xff]
    %v74 = vld [vmem:[#allocation5 + $0xd8] sm:$0xff]
    %v75 = vld [vmem:[#allocation5 + $0xe0] sm:$0xff]
    %v76 = vld [vmem:[#allocation5 + $0xe8] sm:$0xff]
    %v77 = vld [vmem:[#allocation5 + $0xf0] sm:$0xff]
    %v78 = vld [vmem:[#allocation5 + $0xf8] sm:$0xff]
    %v79 = vld [vmem:[#allocation5 + $0x100] sm:$0xff]
    %v80 = vld [vmem:[#allocation5 + $0x108] sm:$0xff]
    %v81 = vld [vmem:[#allocation5 + $0x110] sm:$0xff]
    %v82 = vld [vmem:[#allocation5 + $0x118] sm:$0xff]
    %v83 = vld [vmem:[#allocation5 + $0x120] sm:$0xff]
    %v84 = vld [vmem:[#allocation5 + $0x128] sm:$0xff]
    %v85 = vld [vmem:[#allocation5 + $0x130] sm:$0xff]
    %v86 = vld [vmem:[#allocation5 + $0x138] sm:$0xff]
    %v87 = vld [vmem:[#allocation5 + $0x140] sm:$0xff]
    %v88 = vld [vmem:[#allocation5 + $0x148] sm:$0xff]
    %v89 = vld [vmem:[#allocation5 + $0x150] sm:$0xff]
    %v90 = vld [vmem:[#allocation5 + $0x158] sm:$0xff]
    %v91 = vld [vmem:[#allocation5 + $0x160] sm:$0xff]
    %v92 = vld [vmem:[#allocation5 + $0x168] sm:$0xff]
    %v93 = vld [vmem:[#allocation5 + $0x170] sm:$0xff]
    %v94 = vld [vmem:[#allocation5 + $0x178] sm:$0xff]
    %v95 = vld [vmem:[#allocation5 + $0x180] sm:$0xff]
    %v96 = vld [vmem:[#allocation5 + $0x188] sm:$0xff]
    %v97 = vld [vmem:[#allocation5 + $0x190] sm:$0xff]
    %v98 = vld [vmem:[#allocation5 + $0x198] sm:$0xff]
    %v99 = vld [vmem:[#allocation5 + $0x1a0] sm:$0xff]
    %v100 = vld [vmem:[#allocation5 + $0x1a8] sm:$0xff]
    %v101 = vld [vmem:[#allocation5 + $0x1b0] sm:$0xff]
    %v102 = vld [vmem:[#allocation5 + $0x1b8] sm:$0xff]
    %vm103 = vcmask 457728
    %v105 = vsel %vm103, %v47, 0
    %v108 = vsel %vm103, %v48, 0
    %v111 = vsel %vm103, %v49, 0
    %v114 = vsel %vm103, %v50, 0
    %v117 = vsel %vm103, %v51, 0
    %v120 = vsel %vm103, %v52, 0
    %v123 = vsel %vm103, %v53, 0
    %v126 = vsel %vm103, %v54, 0
    %v129 = vsel %vm103, %v55, 0
    %v132 = vsel %vm103, %v56, 0
    %v135 = vsel %vm103, %v57, 0
    %v138 = vsel %vm103, %v58, 0
    %v141 = vsel %vm103, %v59, 0
    %v144 = vsel %vm103, %v60, 0
    %v147 = vsel %vm103, %v61, 0
    %v150 = vsel %vm103, %v62, 0
    %v153 = vsel %vm103, %v63, 0
    %v156 = vsel %vm103, %v64, 0
    %v159 = vsel %vm103, %v65, 0
    %v162 = vsel %vm103, %v66, 0
    %v165 = vsel %vm103, %v67, 0
    %v168 = vsel %vm103, %v68, 0
    %v171 = vsel %vm103, %v69, 0
    %v174 = vsel %vm103, %v70, 0
    %v177 = vsel %vm103, %v71, 0
    %v180 = vsel %vm103, %v72, 0
    %v183 = vsel %vm103, %v73, 0
    %v186 = vsel %vm103, %v74, 0
    %v189 = vsel %vm103, %v75, 0
    %v192 = vsel %vm103, %v76, 0
    %v195 = vsel %vm103, %v77, 0
    %v198 = vsel %vm103, %v78, 0
    %v201 = vsel %vm103, %v79, 0
    %v204 = vsel %vm103, %v80, 0
    %v207 = vsel %vm103, %v81, 0
    %v210 = vsel %vm103, %v82, 0
    %v213 = vsel %vm103, %v83, 0
    %v216 = vsel %vm103, %v84, 0
    %v219 = vsel %vm103, %v85, 0
    %v222 = vsel %vm103, %v86, 0
    %v225 = vsel %vm103, %v87, 0
    %v228 = vsel %vm103, %v88, 0
    %v231 = vsel %vm103, %v89, 0
    %v234 = vsel %vm103, %v90, 0
    %v237 = vsel %vm103, %v91, 0
    %v240 = vsel %vm103, %v92, 0
    %v243 = vsel %vm103, %v93, 0
    %v246 = vsel %vm103, %v94, 0
    %v249 = vsel %vm103, %v95, 0
    %v252 = vsel %vm103, %v96, 0
    %v255 = vsel %vm103, %v97, 0
    %v258 = vsel %vm103, %v98, 0
    %v261 = vsel %vm103, %v99, 0
    %v264 = vsel %vm103, %v100, 0
    %v267 = vsel %vm103, %v101, 0
    %v270 = vsel %vm103, %v102, 0
    %272 = vmatprep.subr.mxu0 0.0
    %273 = vmatpush1.msra.mxu0 %v40
    %274 = vmatprep.subr.mxu0 0.0
    %275 = vmatpush1.msra.mxu0 %v41
    %276 = vmatprep.subr.mxu0 0.0
    %277 = vmatpush1.msra.mxu0 %v42
    %278 = vmatprep.subr.mxu0 0.0
    %279 = vmatpush1.msra.mxu0 %v43
    %280 = vmatprep.subr.mxu0 0.0
    %281 = vmatpush1.msra.mxu0 %v44
    %282 = vmatprep.subr.mxu0 0.0
    %283 = vmatpush1.msra.mxu0 %v45
    %284 = vmatprep.subr.mxu0 0.0
    %285 = vmatpush1.msra.mxu0 %v46
    %286 = vmatprep.subr.mxu0 0.0
    %287 = vmatpush1.msra.mxu0 0.0
    %288 = vmatprep.subr.mxu0 0.0
    %289 = vmatpush1.msra.mxu0 0.0
    %290 = vmatprep.subr.mxu0 0.0
    %291 = vmatpush1.msra.mxu0 0.0
    %292 = vmatprep.subr.mxu0 0.0
    %293 = vmatpush1.msra.mxu0 0.0
    %294 = vmatprep.subr.mxu0 0.0
    %295 = vmatpush1.msra.mxu0 0.0
    %296 = vmatprep.subr.mxu0 0.0
    %297 = vmatpush1.msra.mxu0 0.0
    %298 = vmatprep.subr.mxu0 0.0
    %299 = vmatpush1.msra.mxu0 0.0
    %300 = vmatprep.subr.mxu0 0.0
    %301 = vmatpush1.msra.mxu0 0.0
    %302 = vmatprep.subr.mxu0 0.0
    %303 = vmatpush1.msra.mxu0 0.0
    %304 = vmatprep.subr.mxu0 0.0
    %305 = vmatpush1.msra.mxu0 0.0
    %306 = vmatprep.subr.mxu0 0.0
    %307 = vmatpush1.msra.mxu0 0.0
    %308 = vmatprep.subr.mxu0 0.0
    %309 = vmatpush1.msra.mxu0 0.0
    %310 = vmatprep.subr.mxu0 0.0
    %311 = vmatpush1.msra.mxu0 0.0
    %312 = vmatprep.subr.mxu0 0.0
    %313 = vmatpush1.msra.mxu0 0.0
    %314 = vmatprep.subr.mxu0 0.0
    %315 = vmatpush1.msra.mxu0 0.0
    %316 = vmatprep.subr.mxu0 0.0
    %317 = vmatpush1.msra.mxu0 0.0
    %318 = vmatprep.subr.mxu0 0.0
    %319 = vmatpush1.msra.mxu0 0.0
    %320 = vmatprep.subr.mxu0 0.0
    %321 = vmatpush1.msra.mxu0 0.0
    %322 = vmatprep.subr.mxu0 0.0
    %323 = vmatpush1.msra.mxu0 0.0
    %324 = vmatprep.subr.mxu0 0.0
    %325 = vmatpush1.msra.mxu0 0.0
    %326 = vmatprep.subr.mxu0 0.0
    %327 = vmatpush1.msra.mxu0 0.0
    %328 = vmatprep.subr.mxu0 0.0
    %329 = vmatpush1.msra.mxu0 0.0
    %330 = vmatprep.subr.mxu0 0.0
    %331 = vmatpush1.msra.mxu0 0.0
    %332 = vmatprep.subr.mxu0 0.0
    %333 = vmatpush1.msra.mxu0 0.0
    %334 = vmatprep.subr.mxu0 0.0
    %335 = vmatpush1.msra.mxu0 0.0
    %336 = vmatprep.mubr.f32.mxu0 0.0
    %337 = vmatmul.mubr.f32.gmra.mrb[0].mxu0 %v105
    %v338 = vpop.f32.mrb[0].mxu0
    %v339 = vadd.f32 0.0, %v338
    %v340 = vpop.f32.mrb[0].mxu0
    %341 = vmatprep.mubr.f32.mxu0 0.0
    %342 = vmatmul.mubr.f32.gmra.mrb[0].mxu0 %v108
    %v343 = vpop.f32.mrb[0].mxu0
    %v344 = vadd.f32 0.0, %v343
    %v345 = vpop.f32.mrb[0].mxu0
    %346 = vmatprep.mubr.f32.mxu0 0.0
    %347 = vmatmul.mubr.f32.gmra.mrb[0].mxu0 %v111
    %v348 = vpop.f32.mrb[0].mxu0
    %v349 = vadd.f32 0.0, %v348
    %v350 = vpop.f32.mrb[0].mxu0
    %351 = vmatprep.mubr.f32.mxu0 0.0
    %352 = vmatmul.mubr.f32.gmra.mrb[0].mxu0 %v114
    %v353 = vpop.f32.mrb[0].mxu0
    %v354 = vadd.f32 0.0, %v353
    %v355 = vpop.f32.mrb[0].mxu0
    %356 = vmatprep.mubr.f32.mxu0 0.0
    %357 = vmatmul.mubr.f32.gmra.mrb[0].mxu0 %v117
    %v358 = vpop.f32.mrb[0].mxu0
    %v359 = vadd.f32 0.0, %v358
    %v360 = vpop.f32.mrb[0].mxu0
    %361 = vmatprep.mubr.f32.mxu0 0.0
    %362 = vmatmul.mubr.f32.gmra.mrb[0].mxu0 %v120
    %v363 = vpop.f32.mrb[0].mxu0
    %v364 = vadd.f32 0.0, %v363
    %v365 = vpop.f32.mrb[0].mxu0
    %366 = vmatprep.mubr.f32.mxu0 0.0
    %367 = vmatmul.mubr.f32.gmra.mrb[0].mxu0 %v123
    %v368 = vpop.f32.mrb[0].mxu0
    %v369 = vadd.f32 0.0, %v368
    %v370 = vpop.f32.mrb[0].mxu0
    %371 = vmatprep.mubr.f32.mxu0 0.0
    %372 = vmatmul.mubr.f32.gmra.mrb[0].mxu0 %v126
    %v373 = vpop.f32.mrb[0].mxu0
    %v374 = vadd.f32 0.0, %v373
    %v375 = vpop.f32.mrb[0].mxu0
    %376 = vmatprep.mubr.f32.mxu0 0.0
    %377 = vmatmul.mubr.f32.gmra.mrb[0].mxu0 %v129
    %v378 = vpop.f32.mrb[0].mxu0
    %v379 = vadd.f32 0.0, %v378
    %v380 = vpop.f32.mrb[0].mxu0
    %381 = vmatprep.mubr.f32.mxu0 0.0
    %382 = vmatmul.mubr.f32.gmra.mrb[0].mxu0 %v132
    %v383 = vpop.f32.mrb[0].mxu0
    %v384 = vadd.f32 0.0, %v383
    %v385 = vpop.f32.mrb[0].mxu0
    %386 = vmatprep.mubr.f32.mxu0 0.0
    %387 = vmatmul.mubr.f32.gmra.mrb[0].mxu0 %v135
    %v388 = vpop.f32.mrb[0].mxu0
    %v389 = vadd.f32 0.0, %v388
    %v390 = vpop.f32.mrb[0].mxu0
    %391 = vmatprep.mubr.f32.mxu0 0.0
    %392 = vmatmul.mubr.f32.gmra.mrb[0].mxu0 %v138
    %v393 = vpop.f32.mrb[0].mxu0
    %v394 = vadd.f32 0.0, %v393
    %v395 = vpop.f32.mrb[0].mxu0
    %396 = vmatprep.mubr.f32.mxu0 0.0
    %397 = vmatmul.mubr.f32.gmra.mrb[0].mxu0 %v141
    %v398 = vpop.f32.mrb[0].mxu0
    %v399 = vadd.f32 0.0, %v398
    %v400 = vpop.f32.mrb[0].mxu0
    %401 = vmatprep.mubr.f32.mxu0 0.0
    %402 = vmatmul.mubr.f32.gmra.mrb[0].mxu0 %v144
    %v403 = vpop.f32.mrb[0].mxu0
    %v404 = vadd.f32 0.0, %v403
    %v405 = vpop.f32.mrb[0].mxu0
    %406 = vmatprep.mubr.f32.mxu0 0.0
    %407 = vmatmul.mubr.f32.gmra.mrb[0].mxu0 %v147
    %v408 = vpop.f32.mrb[0].mxu0
    %v409 = vadd.f32 0.0, %v408
    %v410 = vpop.f32.mrb[0].mxu0
    %411 = vmatprep.mubr.f32.mxu0 0.0
    %412 = vmatmul.mubr.f32.gmra.mrb[0].mxu0 %v150
    %v413 = vpop.f32.mrb[0].mxu0
    %v414 = vadd.f32 0.0, %v413
    %v415 = vpop.f32.mrb[0].mxu0
    %416 = vmatprep.mubr.f32.mxu0 0.0
    %417 = vmatmul.mubr.f32.gmra.mrb[0].mxu0 %v153
    %v418 = vpop.f32.mrb[0].mxu0
    %v419 = vadd.f32 0.0, %v418
    %v420 = vpop.f32.mrb[0].mxu0
    %421 = vmatprep.mubr.f32.mxu0 0.0
    %422 = vmatmul.mubr.f32.gmra.mrb[0].mxu0 %v156
    %v423 = vpop.f32.mrb[0].mxu0
    %v424 = vadd.f32 0.0, %v423
    %v425 = vpop.f32.mrb[0].mxu0
    %426 = vmatprep.mubr.f32.mxu0 0.0
    %427 = vmatmul.mubr.f32.gmra.mrb[0].mxu0 %v159
    %v428 = vpop.f32.mrb[0].mxu0
    %v429 = vadd.f32 0.0, %v428
    %v430 = vpop.f32.mrb[0].mxu0
    %431 = vmatprep.mubr.f32.mxu0 0.0
    %432 = vmatmul.mubr.f32.gmra.mrb[0].mxu0 %v162
    %v433 = vpop.f32.mrb[0].mxu0
    %v434 = vadd.f32 0.0, %v433
    %v435 = vpop.f32.mrb[0].mxu0
    %436 = vmatprep.mubr.f32.mxu0 0.0
    %437 = vmatmul.mubr.f32.gmra.mrb[0].mxu0 %v165
    %v438 = vpop.f32.mrb[0].mxu0
    %v439 = vadd.f32 0.0, %v438
    %v440 = vpop.f32.mrb[0].mxu0
    %441 = vmatprep.mubr.f32.mxu0 0.0
    %442 = vmatmul.mubr.f32.gmra.mrb[0].mxu0 %v168
    %v443 = vpop.f32.mrb[0].mxu0
    %v444 = vadd.f32 0.0, %v443
    %v445 = vpop.f32.mrb[0].mxu0
    %446 = vmatprep.mubr.f32.mxu0 0.0
    %447 = vmatmul.mubr.f32.gmra.mrb[0].mxu0 %v171
    %v448 = vpop.f32.mrb[0].mxu0
    %v449 = vadd.f32 0.0, %v448
    %v450 = vpop.f32.mrb[0].mxu0
    %451 = vmatprep.mubr.f32.mxu0 0.0
    %452 = vmatmul.mubr.f32.gmra.mrb[0].mxu0 %v174
    %v453 = vpop.f32.mrb[0].mxu0
    %v454 = vadd.f32 0.0, %v453
    %v455 = vpop.f32.mrb[0].mxu0
    %456 = vmatprep.mubr.f32.mxu0 0.0
    %457 = vmatmul.mubr.f32.gmra.mrb[0].mxu0 %v177
    %v458 = vpop.f32.mrb[0].mxu0
    %v459 = vadd.f32 0.0, %v458
    %v460 = vpop.f32.mrb[0].mxu0
    %461 = vmatprep.mubr.f32.mxu0 0.0
    %462 = vmatmul.mubr.f32.gmra.mrb[0].mxu0 %v180
    %v463 = vpop.f32.mrb[0].mxu0
    %v464 = vadd.f32 0.0, %v463
    %v465 = vpop.f32.mrb[0].mxu0
    %466 = vmatprep.mubr.f32.mxu0 0.0
    %467 = vmatmul.mubr.f32.gmra.mrb[0].mxu0 %v183
    %v468 = vpop.f32.mrb[0].mxu0
    %v469 = vadd.f32 0.0, %v468
    %v470 = vpop.f32.mrb[0].mxu0
    %471 = vmatprep.mubr.f32.mxu0 0.0
    %472 = vmatmul.mubr.f32.gmra.mrb[0].mxu0 %v186
    %v473 = vpop.f32.mrb[0].mxu0
    %v474 = vadd.f32 0.0, %v473
    %v475 = vpop.f32.mrb[0].mxu0
    %476 = vmatprep.mubr.f32.mxu0 0.0
    %477 = vmatmul.mubr.f32.gmra.mrb[0].mxu0 %v189
    %v478 = vpop.f32.mrb[0].mxu0
    %v479 = vadd.f32 0.0, %v478
    %v480 = vpop.f32.mrb[0].mxu0
    %481 = vmatprep.mubr.f32.mxu0 0.0
    %482 = vmatmul.mubr.f32.gmra.mrb[0].mxu0 %v192
    %v483 = vpop.f32.mrb[0].mxu0
    %v484 = vadd.f32 0.0, %v483
    %v485 = vpop.f32.mrb[0].mxu0
    %486 = vmatprep.mubr.f32.mxu0 0.0
    %487 = vmatmul.mubr.f32.gmra.mrb[0].mxu0 %v195
    %v488 = vpop.f32.mrb[0].mxu0
    %v489 = vadd.f32 0.0, %v488
    %v490 = vpop.f32.mrb[0].mxu0
    %491 = vmatprep.mubr.f32.mxu0 0.0
    %492 = vmatmul.mubr.f32.gmra.mrb[0].mxu0 %v198
    %v493 = vpop.f32.mrb[0].mxu0
    %v494 = vadd.f32 0.0, %v493
    %v495 = vpop.f32.mrb[0].mxu0
    %496 = vmatprep.mubr.f32.mxu0 0.0
    %497 = vmatmul.mubr.f32.gmra.mrb[0].mxu0 %v201
    %v498 = vpop.f32.mrb[0].mxu0
    %v499 = vadd.f32 0.0, %v498
    %v500 = vpop.f32.mrb[0].mxu0
    %501 = vmatprep.mubr.f32.mxu0 0.0
    %502 = vmatmul.mubr.f32.gmra.mrb[0].mxu0 %v204
    %v503 = vpop.f32.mrb[0].mxu0
    %v504 = vadd.f32 0.0, %v503
    %v505 = vpop.f32.mrb[0].mxu0
    %506 = vmatprep.mubr.f32.mxu0 0.0
    %507 = vmatmul.mubr.f32.gmra.mrb[0].mxu0 %v207
    %v508 = vpop.f32.mrb[0].mxu0
    %v509 = vadd.f32 0.0, %v508
    %v510 = vpop.f32.mrb[0].mxu0
    %511 = vmatprep.mubr.f32.mxu0 0.0
    %512 = vmatmul.mubr.f32.gmra.mrb[0].mxu0 %v210
    %v513 = vpop.f32.mrb[0].mxu0
    %v514 = vadd.f32 0.0, %v513
    %v515 = vpop.f32.mrb[0].mxu0
    %516 = vmatprep.mubr.f32.mxu0 0.0
    %517 = vmatmul.mubr.f32.gmra.mrb[0].mxu0 %v213
    %v518 = vpop.f32.mrb[0].mxu0
    %v519 = vadd.f32 0.0, %v518
    %v520 = vpop.f32.mrb[0].mxu0
    %521 = vmatprep.mubr.f32.mxu0 0.0
    %522 = vmatmul.mubr.f32.gmra.mrb[0].mxu0 %v216
    %v523 = vpop.f32.mrb[0].mxu0
    %v524 = vadd.f32 0.0, %v523
    %v525 = vpop.f32.mrb[0].mxu0
    %526 = vmatprep.mubr.f32.mxu0 0.0
    %527 = vmatmul.mubr.f32.gmra.mrb[0].mxu0 %v219
    %v528 = vpop.f32.mrb[0].mxu0
    %v529 = vadd.f32 0.0, %v528
    %v530 = vpop.f32.mrb[0].mxu0
    %531 = vmatprep.mubr.f32.mxu0 0.0
    %532 = vmatmul.mubr.f32.gmra.mrb[0].mxu0 %v222
    %v533 = vpop.f32.mrb[0].mxu0
    %v534 = vadd.f32 0.0, %v533
    %v535 = vpop.f32.mrb[0].mxu0
    %536 = vmatprep.mubr.f32.mxu0 0.0
    %537 = vmatmul.mubr.f32.gmra.mrb[0].mxu0 %v225
    %v538 = vpop.f32.mrb[0].mxu0
    %v539 = vadd.f32 0.0, %v538
    %v540 = vpop.f32.mrb[0].mxu0
    %541 = vmatprep.mubr.f32.mxu0 0.0
    %542 = vmatmul.mubr.f32.gmra.mrb[0].mxu0 %v228
    %v543 = vpop.f32.mrb[0].mxu0
    %v544 = vadd.f32 0.0, %v543
    %v545 = vpop.f32.mrb[0].mxu0
    %546 = vmatprep.mubr.f32.mxu0 0.0
    %547 = vmatmul.mubr.f32.gmra.mrb[0].mxu0 %v231
    %v548 = vpop.f32.mrb[0].mxu0
    %v549 = vadd.f32 0.0, %v548
    %v550 = vpop.f32.mrb[0].mxu0
    %551 = vmatprep.mubr.f32.mxu0 0.0
    %552 = vmatmul.mubr.f32.gmra.mrb[0].mxu0 %v234
    %v553 = vpop.f32.mrb[0].mxu0
    %v554 = vadd.f32 0.0, %v553
    %v555 = vpop.f32.mrb[0].mxu0
    %556 = vmatprep.mubr.f32.mxu0 0.0
    %557 = vmatmul.mubr.f32.gmra.mrb[0].mxu0 %v237
    %v558 = vpop.f32.mrb[0].mxu0
    %v559 = vadd.f32 0.0, %v558
    %v560 = vpop.f32.mrb[0].mxu0
    %561 = vmatprep.mubr.f32.mxu0 0.0
    %562 = vmatmul.mubr.f32.gmra.mrb[0].mxu0 %v240
    %v563 = vpop.f32.mrb[0].mxu0
    %v564 = vadd.f32 0.0, %v563
    %v565 = vpop.f32.mrb[0].mxu0
    %566 = vmatprep.mubr.f32.mxu0 0.0
    %567 = vmatmul.mubr.f32.gmra.mrb[0].mxu0 %v243
    %v568 = vpop.f32.mrb[0].mxu0
    %v569 = vadd.f32 0.0, %v568
    %v570 = vpop.f32.mrb[0].mxu0
    %571 = vmatprep.mubr.f32.mxu0 0.0
    %572 = vmatmul.mubr.f32.gmra.mrb[0].mxu0 %v246
    %v573 = vpop.f32.mrb[0].mxu0
    %v574 = vadd.f32 0.0, %v573
    %v575 = vpop.f32.mrb[0].mxu0
    %576 = vmatprep.mubr.f32.mxu0 0.0
    %577 = vmatmul.mubr.f32.gmra.mrb[0].mxu0 %v249
    %v578 = vpop.f32.mrb[0].mxu0
    %v579 = vadd.f32 0.0, %v578
    %v580 = vpop.f32.mrb[0].mxu0
    %581 = vmatprep.mubr.f32.mxu0 0.0
    %582 = vmatmul.mubr.f32.gmra.mrb[0].mxu0 %v252
    %v583 = vpop.f32.mrb[0].mxu0
    %v584 = vadd.f32 0.0, %v583
    %v585 = vpop.f32.mrb[0].mxu0
    %586 = vmatprep.mubr.f32.mxu0 0.0
    %587 = vmatmul.mubr.f32.gmra.mrb[0].mxu0 %v255
    %v588 = vpop.f32.mrb[0].mxu0
    %v589 = vadd.f32 0.0, %v588
    %v590 = vpop.f32.mrb[0].mxu0
    %591 = vmatprep.mubr.f32.mxu0 0.0
    %592 = vmatmul.mubr.f32.gmra.mrb[0].mxu0 %v258
    %v593 = vpop.f32.mrb[0].mxu0
    %v594 = vadd.f32 0.0, %v593
    %v595 = vpop.f32.mrb[0].mxu0
    %596 = vmatprep.mubr.f32.mxu0 0.0
    %597 = vmatmul.mubr.f32.gmra.mrb[0].mxu0 %v261
    %v598 = vpop.f32.mrb[0].mxu0
    %v599 = vadd.f32 0.0, %v598
    %v600 = vpop.f32.mrb[0].mxu0
    %601 = vmatprep.mubr.f32.mxu0 0.0
    %602 = vmatmul.mubr.f32.gmra.mrb[0].mxu0 %v264
    %v603 = vpop.f32.mrb[0].mxu0
    %v604 = vadd.f32 0.0, %v603
    %v605 = vpop.f32.mrb[0].mxu0
    %606 = vmatprep.mubr.f32.mxu0 0.0
    %607 = vmatmul.mubr.f32.gmra.mrb[0].mxu0 %v267
    %v608 = vpop.f32.mrb[0].mxu0
    %v609 = vadd.f32 0.0, %v608
    %v610 = vpop.f32.mrb[0].mxu0
    %611 = vmatprep.mubr.f32.mxu0 0.0
    %612 = vmatmul.mubr.f32.gmra.mrb[0].mxu0 %v270
    %v613 = vpop.f32.mrb[0].mxu0
    %v614 = vadd.f32 0.0, %v613
    %v615 = vpop.f32.mrb[0].mxu0
    %616 = vdwg.mxu0
    %v617 = vld [vmem:[#allocation5 + $0x1c0] sm:$0xff]
    %v618 = vld [vmem:[#allocation5 + $0x1c8] sm:$0xff]
    %v619 = vld [vmem:[#allocation5 + $0x1d0] sm:$0xff]
    %v620 = vld [vmem:[#allocation5 + $0x1d8] sm:$0xf]
    %v621 = vld [vmem:[#allocation5 + $0x1e0] sm:$0xff]
    %v622 = vld [vmem:[#allocation5 + $0x1e8] sm:$0xff]
    %v623 = vld [vmem:[#allocation5 + $0x1f0] sm:$0xff]
    %v624 = vld [vmem:[#allocation5 + $0x1f8] sm:$0xf]
    %vm625 = vcmask 228352
    %v627 = vsel %vm625, %v379, 0
    %v630 = vsel %vm625, %v384, 0
    %v633 = vsel %vm625, %v389, 0
    %v636 = vsel %vm625, %v394, 0
    %v639 = vsel %vm625, %v399, 0
    %v642 = vsel %vm625, %v404, 0
    %v645 = vsel %vm625, %v409, 0
    %v648 = vsel %vm625, %v414, 0
    %vm650 = vcmask 1043456
    %v652 = vsel %vm650, %v624, 0
    %654 = vmatprep.subr.mxu0 0.0
    %655 = vmatpush1.msra.mxu0 %v621
    %656 = vmatprep.subr.mxu0 0.0
    %657 = vmatpush1.msra.mxu0 %v622
    %658 = vmatprep.subr.mxu0 0.0
    %659 = vmatpush1.msra.mxu0 %v623
    %660 = vmatprep.subr.mxu0 0.0
    %661 = vmatpush1.msra.mxu0 %v652
    %662 = vmatprep.subr.mxu0 0.0
    %663 = vmatpush1.msra.mxu0 0.0
    %664 = vmatprep.subr.mxu0 0.0
    %665 = vmatpush1.msra.mxu0 0.0
    %666 = vmatprep.subr.mxu0 0.0
    %667 = vmatpush1.msra.mxu0 0.0
    %668 = vmatprep.subr.mxu0 0.0
    %669 = vmatpush1.msra.mxu0 0.0
    %670 = vmatprep.subr.mxu0 0.0
    %671 = vmatpush1.msra.mxu0 0.0
    %672 = vmatprep.subr.mxu0 0.0
    %673 = vmatpush1.msra.mxu0 0.0
    %674 = vmatprep.subr.mxu0 0.0
    %675 = vmatpush1.msra.mxu0 0.0
    %676 = vmatprep.subr.mxu0 0.0
    %677 = vmatpush1.msra.mxu0 0.0
    %678 = vmatprep.subr.mxu0 0.0
    %679 = vmatpush1.msra.mxu0 0.0
    %680 = vmatprep.subr.mxu0 0.0
    %681 = vmatpush1.msra.mxu0 0.0
    %682 = vmatprep.subr.mxu0 0.0
    %683 = vmatpush1.msra.mxu0 0.0
    %684 = vmatprep.subr.mxu0 0.0
    %685 = vmatpush1.msra.mxu0 0.0
    %686 = vmatprep.subr.mxu0 0.0
    %687 = vmatpush1.msra.mxu0 0.0
    %688 = vmatprep.subr.mxu0 0.0
    %689 = vmatpush1.msra.mxu0 0.0
    %690 = vmatprep.subr.mxu0 0.0
    %691 = vmatpush1.msra.mxu0 0.0
    %692 = vmatprep.subr.mxu0 0.0
    %693 = vmatpush1.msra.mxu0 0.0
    %694 = vmatprep.subr.mxu0 0.0
    %695 = vmatpush1.msra.mxu0 0.0
    %696 = vmatprep.subr.mxu0 0.0
    %697 = vmatpush1.msra.mxu0 0.0
    %698 = vmatprep.subr.mxu0 0.0
    %699 = vmatpush1.msra.mxu0 0.0
    %700 = vmatprep.subr.mxu0 0.0
    %701 = vmatpush1.msra.mxu0 0.0
    %702 = vmatprep.subr.mxu0 0.0
    %703 = vmatpush1.msra.mxu0 0.0
    %704 = vmatprep.subr.mxu0 0.0
    %705 = vmatpush1.msra.mxu0 0.0
    %706 = vmatprep.subr.mxu0 0.0
    %707 = vmatpush1.msra.mxu0 0.0
    %708 = vmatprep.subr.mxu0 0.0
    %709 = vmatpush1.msra.mxu0 0.0
    %710 = vmatprep.subr.mxu0 0.0
    %711 = vmatpush1.msra.mxu0 0.0
    %712 = vmatprep.subr.mxu0 0.0
    %713 = vmatpush1.msra.mxu0 0.0
    %714 = vmatprep.subr.mxu0 0.0
    %715 = vmatpush1.msra.mxu0 0.0
    %716 = vmatprep.subr.mxu0 0.0
    %717 = vmatpush1.msra.mxu0 0.0
    %718 = vmatprep.mubr.f32.mxu0 0.0
    %719 = vmatmul.mubr.f32.gmra.mrb[0].mxu0 %v627
    %v720 = vpop.f32.mrb[0].mxu0
    %v721 = vadd.f32 0.0, %v720
    %v722 = vpop.f32.mrb[0].mxu0
    %723 = vmatprep.mubr.f32.mxu0 0.0
    %724 = vmatmul.mubr.f32.gmra.mrb[0].mxu0 %v630
    %v725 = vpop.f32.mrb[0].mxu0
    %v726 = vadd.f32 0.0, %v725
    %v727 = vpop.f32.mrb[0].mxu0
    %728 = vmatprep.mubr.f32.mxu0 0.0
    %729 = vmatmul.mubr.f32.gmra.mrb[0].mxu0 %v633
    %v730 = vpop.f32.mrb[0].mxu0
    %v731 = vadd.f32 0.0, %v730
    %v732 = vpop.f32.mrb[0].mxu0
    %733 = vmatprep.mubr.f32.mxu0 0.0
    %734 = vmatmul.mubr.f32.gmra.mrb[0].mxu0 %v636
    %v735 = vpop.f32.mrb[0].mxu0
    %v736 = vadd.f32 0.0, %v735
    %v737 = vpop.f32.mrb[0].mxu0
    %738 = vmatprep.mubr.f32.mxu0 0.0
    %739 = vmatmul.mubr.f32.gmra.mrb[0].mxu0 %v639
    %v740 = vpop.f32.mrb[0].mxu0
    %v741 = vadd.f32 0.0, %v740
    %v742 = vpop.f32.mrb[0].mxu0
    %743 = vmatprep.mubr.f32.mxu0 0.0
    %744 = vmatmul.mubr.f32.gmra.mrb[0].mxu0 %v642
    %v745 = vpop.f32.mrb[0].mxu0
    %v746 = vadd.f32 0.0, %v745
    %v747 = vpop.f32.mrb[0].mxu0
    %748 = vmatprep.mubr.f32.mxu0 0.0
    %749 = vmatmul.mubr.f32.gmra.mrb[0].mxu0 %v645
    %v750 = vpop.f32.mrb[0].mxu0
    %v751 = vadd.f32 0.0, %v750
    %v752 = vpop.f32.mrb[0].mxu0
    %753 = vmatprep.mubr.f32.mxu0 0.0
    %754 = vmatmul.mubr.f32.gmra.mrb[0].mxu0 %v648
    %v755 = vpop.f32.mrb[0].mxu0
    %v756 = vadd.f32 0.0, %v755
    %v757 = vpop.f32.mrb[0].mxu0
    %758 = vdwg.mxu0
    %v760 = vsel %vm625, %v339, 0
    %v763 = vsel %vm625, %v344, 0
    %v766 = vsel %vm625, %v349, 0
    %v769 = vsel %vm625, %v354, 0
    %v772 = vsel %vm625, %v359, 0
    %v775 = vsel %vm625, %v364, 0
    %v778 = vsel %vm625, %v369, 0
    %v781 = vsel %vm625, %v374, 0
    %v784 = vsel %vm650, %v620, 0
    %786 = vmatprep.subr.mxu0 0.0
    %787 = vmatpush1.msra.mxu0 %v617
    %788 = vmatprep.subr.mxu0 0.0
    %789 = vmatpush1.msra.mxu0 %v618
    %790 = vmatprep.subr.mxu0 0.0
    %791 = vmatpush1.msra.mxu0 %v619
    %792 = vmatprep.subr.mxu0 0.0
    %793 = vmatpush1.msra.mxu0 %v784
    %794 = vmatprep.subr.mxu0 0.0
    %795 = vmatpush1.msra.mxu0 0.0
    %796 = vmatprep.subr.mxu0 0.0
    %797 = vmatpush1.msra.mxu0 0.0
    %798 = vmatprep.subr.mxu0 0.0
    %799 = vmatpush1.msra.mxu0 0.0
    %800 = vmatprep.subr.mxu0 0.0
    %801 = vmatpush1.msra.mxu0 0.0
    %802 = vmatprep.subr.mxu0 0.0
    %803 = vmatpush1.msra.mxu0 0.0
    %804 = vmatprep.subr.mxu0 0.0
    %805 = vmatpush1.msra.mxu0 0.0
    %806 = vmatprep.subr.mxu0 0.0
    %807 = vmatpush1.msra.mxu0 0.0
    %808 = vmatprep.subr.mxu0 0.0
    %809 = vmatpush1.msra.mxu0 0.0
    %810 = vmatprep.subr.mxu0 0.0
    %811 = vmatpush1.msra.mxu0 0.0
    %812 = vmatprep.subr.mxu0 0.0
    %813 = vmatpush1.msra.mxu0 0.0
    %814 = vmatprep.subr.mxu0 0.0
    %815 = vmatpush1.msra.mxu0 0.0
    %816 = vmatprep.subr.mxu0 0.0
    %817 = vmatpush1.msra.mxu0 0.0
    %818 = vmatprep.subr.mxu0 0.0
    %819 = vmatpush1.msra.mxu0 0.0
    %820 = vmatprep.subr.mxu0 0.0
    %821 = vmatpush1.msra.mxu0 0.0
    %822 = vmatprep.subr.mxu0 0.0
    %823 = vmatpush1.msra.mxu0 0.0
    %824 = vmatprep.subr.mxu0 0.0
    %825 = vmatpush1.msra.mxu0 0.0
    %826 = vmatprep.subr.mxu0 0.0
    %827 = vmatpush1.msra.mxu0 0.0
    %828 = vmatprep.subr.mxu0 0.0
    %829 = vmatpush1.msra.mxu0 0.0
    %830 = vmatprep.subr.mxu0 0.0
    %831 = vmatpush1.msra.mxu0 0.0
    %832 = vmatprep.subr.mxu0 0.0
    %833 = vmatpush1.msra.mxu0 0.0
    %834 = vmatprep.subr.mxu0 0.0
    %835 = vmatpush1.msra.mxu0 0.0
    %836 = vmatprep.subr.mxu0 0.0
    %837 = vmatpush1.msra.mxu0 0.0
    %838 = vmatprep.subr.mxu0 0.0
    %839 = vmatpush1.msra.mxu0 0.0
    %840 = vmatprep.subr.mxu0 0.0
    %841 = vmatpush1.msra.mxu0 0.0
    %842 = vmatprep.subr.mxu0 0.0
    %843 = vmatpush1.msra.mxu0 0.0
    %844 = vmatprep.subr.mxu0 0.0
    %845 = vmatpush1.msra.mxu0 0.0
    %846 = vmatprep.subr.mxu0 0.0
    %847 = vmatpush1.msra.mxu0 0.0
    %848 = vmatprep.subr.mxu0 0.0
    %849 = vmatpush1.msra.mxu0 0.0
    %850 = vmatprep.mubr.f32.mxu0 0.0
    %851 = vmatmul.mubr.f32.gmra.mrb[0].mxu0 %v760
    %v852 = vpop.f32.mrb[0].mxu0
    %v853 = vadd.f32 %v721, %v852
    %v854 = vpop.f32.mrb[0].mxu0
    %855 = vmatprep.mubr.f32.mxu0 0.0
    %856 = vmatmul.mubr.f32.gmra.mrb[0].mxu0 %v763
    %v857 = vpop.f32.mrb[0].mxu0
    %v858 = vadd.f32 %v726, %v857
    %v859 = vpop.f32.mrb[0].mxu0
    %860 = vmatprep.mubr.f32.mxu0 0.0
    %861 = vmatmul.mubr.f32.gmra.mrb[0].mxu0 %v766
    %v862 = vpop.f32.mrb[0].mxu0
    %v863 = vadd.f32 %v731, %v862
    %v864 = vpop.f32.mrb[0].mxu0
    %865 = vmatprep.mubr.f32.mxu0 0.0
    %866 = vmatmul.mubr.f32.gmra.mrb[0].mxu0 %v769
    %v867 = vpop.f32.mrb[0].mxu0
    %v868 = vadd.f32 %v736, %v867
    %v869 = vpop.f32.mrb[0].mxu0
    %870 = vmatprep.mubr.f32.mxu0 0.0
    %871 = vmatmul.mubr.f32.gmra.mrb[0].mxu0 %v772
    %v872 = vpop.f32.mrb[0].mxu0
    %v873 = vadd.f32 %v741, %v872
    %v874 = vpop.f32.mrb[0].mxu0
    %875 = vmatprep.mubr.f32.mxu0 0.0
    %876 = vmatmul.mubr.f32.gmra.mrb[0].mxu0 %v775
    %v877 = vpop.f32.mrb[0].mxu0
    %v878 = vadd.f32 %v746, %v877
    %v879 = vpop.f32.mrb[0].mxu0
    %880 = vmatprep.mubr.f32.mxu0 0.0
    %881 = vmatmul.mubr.f32.gmra.mrb[0].mxu0 %v778
    %v882 = vpop.f32.mrb[0].mxu0
    %v883 = vadd.f32 %v751, %v882
    %v884 = vpop.f32.mrb[0].mxu0
    %885 = vmatprep.mubr.f32.mxu0 0.0
    %886 = vmatmul.mubr.f32.gmra.mrb[0].mxu0 %v781
    %v887 = vpop.f32.mrb[0].mxu0
    %v888 = vadd.f32 %v756, %v887
    %v889 = vpop.f32.mrb[0].mxu0
    %890 = vdwg.mxu0
    %v891 = vld [vmem:[#allocation5 + $0x200] sm:$0xff]
    %v892 = vld [vmem:[#allocation5 + $0x208] sm:$0xff]
    %v893 = vld [vmem:[#allocation5 + $0x210] sm:$0xff]
    %v894 = vld [vmem:[#allocation5 + $0x218] sm:$0xf]
    %v896 = vsel %vm625, %v419, 0
    %v899 = vsel %vm625, %v424, 0
    %v902 = vsel %vm625, %v429, 0
    %v905 = vsel %vm625, %v434, 0
    %v908 = vsel %vm625, %v439, 0
    %v911 = vsel %vm625, %v444, 0
    %v914 = vsel %vm625, %v449, 0
    %v917 = vsel %vm625, %v454, 0
    %v920 = vsel %vm650, %v894, 0
    %922 = vmatprep.subr.mxu0 0.0
    %923 = vmatpush1.msra.mxu0 %v891
    %924 = vmatprep.subr.mxu0 0.0
    %925 = vmatpush1.msra.mxu0 %v892
    %926 = vmatprep.subr.mxu0 0.0
    %927 = vmatpush1.msra.mxu0 %v893
    %928 = vmatprep.subr.mxu0 0.0
    %929 = vmatpush1.msra.mxu0 %v920
    %930 = vmatprep.subr.mxu0 0.0
    %931 = vmatpush1.msra.mxu0 0.0
    %932 = vmatprep.subr.mxu0 0.0
    %933 = vmatpush1.msra.mxu0 0.0
    %934 = vmatprep.subr.mxu0 0.0
    %935 = vmatpush1.msra.mxu0 0.0
    %936 = vmatprep.subr.mxu0 0.0
    %937 = vmatpush1.msra.mxu0 0.0
    %938 = vmatprep.subr.mxu0 0.0
    %939 = vmatpush1.msra.mxu0 0.0
    %940 = vmatprep.subr.mxu0 0.0
    %941 = vmatpush1.msra.mxu0 0.0
    %942 = vmatprep.subr.mxu0 0.0
    %943 = vmatpush1.msra.mxu0 0.0
    %944 = vmatprep.subr.mxu0 0.0
    %945 = vmatpush1.msra.mxu0 0.0
    %946 = vmatprep.subr.mxu0 0.0
    %947 = vmatpush1.msra.mxu0 0.0
    %948 = vmatprep.subr.mxu0 0.0
    %949 = vmatpush1.msra.mxu0 0.0
    %950 = vmatprep.subr.mxu0 0.0
    %951 = vmatpush1.msra.mxu0 0.0
    %952 = vmatprep.subr.mxu0 0.0
    %953 = vmatpush1.msra.mxu0 0.0
    %954 = vmatprep.subr.mxu0 0.0
    %955 = vmatpush1.msra.mxu0 0.0
    %956 = vmatprep.subr.mxu0 0.0
    %957 = vmatpush1.msra.mxu0 0.0
    %958 = vmatprep.subr.mxu0 0.0
    %959 = vmatpush1.msra.mxu0 0.0
    %960 = vmatprep.subr.mxu0 0.0
    %961 = vmatpush1.msra.mxu0 0.0
    %962 = vmatprep.subr.mxu0 0.0
    %963 = vmatpush1.msra.mxu0 0.0
    %964 = vmatprep.subr.mxu0 0.0
    %965 = vmatpush1.msra.mxu0 0.0
    %966 = vmatprep.subr.mxu0 0.0
    %967 = vmatpush1.msra.mxu0 0.0
    %968 = vmatprep.subr.mxu0 0.0
    %969 = vmatpush1.msra.mxu0 0.0
    %970 = vmatprep.subr.mxu0 0.0
    %971 = vmatpush1.msra.mxu0 0.0
    %972 = vmatprep.subr.mxu0 0.0
    %973 = vmatpush1.msra.mxu0 0.0
    %974 = vmatprep.subr.mxu0 0.0
    %975 = vmatpush1.msra.mxu0 0.0
    %976 = vmatprep.subr.mxu0 0.0
    %977 = vmatpush1.msra.mxu0 0.0
    %978 = vmatprep.subr.mxu0 0.0
    %979 = vmatpush1.msra.mxu0 0.0
    %980 = vmatprep.subr.mxu0 0.0
    %981 = vmatpush1.msra.mxu0 0.0
    %982 = vmatprep.subr.mxu0 0.0
    %983 = vmatpush1.msra.mxu0 0.0
    %984 = vmatprep.subr.mxu0 0.0
    %985 = vmatpush1.msra.mxu0 0.0
    %986 = vmatprep.mubr.f32.mxu0 0.0
    %987 = vmatmul.mubr.f32.gmra.mrb[0].mxu0 %v896
    %v988 = vpop.f32.mrb[0].mxu0
    %v989 = vadd.f32 0.0, %v988
    %v990 = vpop.f32.mrb[0].mxu0
    %991 = vmatprep.mubr.f32.mxu0 0.0
    %992 = vmatmul.mubr.f32.gmra.mrb[0].mxu0 %v899
    %v993 = vpop.f32.mrb[0].mxu0
    %v994 = vadd.f32 0.0, %v993
    %v995 = vpop.f32.mrb[0].mxu0
    %996 = vmatprep.mubr.f32.mxu0 0.0
    %997 = vmatmul.mubr.f32.gmra.mrb[0].mxu0 %v902
    %v998 = vpop.f32.mrb[0].mxu0
    %v999 = vadd.f32 0.0, %v998
    %v1000 = vpop.f32.mrb[0].mxu0
    %1001 = vmatprep.mubr.f32.mxu0 0.0
    %1002 = vmatmul.mubr.f32.gmra.mrb[0].mxu0 %v905
    %v1003 = vpop.f32.mrb[0].mxu0
    %v1004 = vadd.f32 0.0, %v1003
    %v1005 = vpop.f32.mrb[0].mxu0
    %1006 = vmatprep.mubr.f32.mxu0 0.0
    %1007 = vmatmul.mubr.f32.gmra.mrb[0].mxu0 %v908
    %v1008 = vpop.f32.mrb[0].mxu0
    %v1009 = vadd.f32 0.0, %v1008
    %v1010 = vpop.f32.mrb[0].mxu0
    %1011 = vmatprep.mubr.f32.mxu0 0.0
    %1012 = vmatmul.mubr.f32.gmra.mrb[0].mxu0 %v911
    %v1013 = vpop.f32.mrb[0].mxu0
    %v1014 = vadd.f32 0.0, %v1013
    %v1015 = vpop.f32.mrb[0].mxu0
    %1016 = vmatprep.mubr.f32.mxu0 0.0
    %1017 = vmatmul.mubr.f32.gmra.mrb[0].mxu0 %v914
    %v1018 = vpop.f32.mrb[0].mxu0
    %v1019 = vadd.f32 0.0, %v1018
    %v1020 = vpop.f32.mrb[0].mxu0
    %1021 = vmatprep.mubr.f32.mxu0 0.0
    %1022 = vmatmul.mubr.f32.gmra.mrb[0].mxu0 %v917
    %v1023 = vpop.f32.mrb[0].mxu0
    %v1024 = vadd.f32 0.0, %v1023
    %v1025 = vpop.f32.mrb[0].mxu0
    %1026 = vdwg.mxu0
    %v1027 = vadd.f32 %v853, %v989
    %v1028 = vadd.f32 %v858, %v994
    %v1029 = vadd.f32 %v863, %v999
    %v1030 = vadd.f32 %v868, %v1004
    %v1031 = vadd.f32 %v873, %v1009
    %v1032 = vadd.f32 %v878, %v1014
    %v1033 = vadd.f32 %v883, %v1019
    %v1034 = vadd.f32 %v888, %v1024
    %v1035 = vld [vmem:[#allocation5 + $0x220] sm:$0xff]
    %v1036 = vld [vmem:[#allocation5 + $0x228] sm:$0xff]
    %v1037 = vld [vmem:[#allocation5 + $0x230] sm:$0xff]
    %v1038 = vld [vmem:[#allocation5 + $0x238] sm:$0xf]
    %v1040 = vsel %vm625, %v459, 0
    %v1043 = vsel %vm625, %v464, 0
    %v1046 = vsel %vm625, %v469, 0
    %v1049 = vsel %vm625, %v474, 0
    %v1052 = vsel %vm625, %v479, 0
    %v1055 = vsel %vm625, %v484, 0
    %v1058 = vsel %vm625, %v489, 0
    %v1061 = vsel %vm625, %v494, 0
    %v1064 = vsel %vm650, %v1038, 0
    %1066 = vmatprep.subr.mxu0 0.0
    %1067 = vmatpush1.msra.mxu0 %v1035
    %1068 = vmatprep.subr.mxu0 0.0
    %1069 = vmatpush1.msra.mxu0 %v1036
    %1070 = vmatprep.subr.mxu0 0.0
    %1071 = vmatpush1.msra.mxu0 %v1037
    %1072 = vmatprep.subr.mxu0 0.0
    %1073 = vmatpush1.msra.mxu0 %v1064
    %1074 = vmatprep.subr.mxu0 0.0
    %1075 = vmatpush1.msra.mxu0 0.0
    %1076 = vmatprep.subr.mxu0 0.0
    %1077 = vmatpush1.msra.mxu0 0.0
    %1078 = vmatprep.subr.mxu0 0.0
    %1079 = vmatpush1.msra.mxu0 0.0
    %1080 = vmatprep.subr.mxu0 0.0
    %1081 = vmatpush1.msra.mxu0 0.0
    %1082 = vmatprep.subr.mxu0 0.0
    %1083 = vmatpush1.msra.mxu0 0.0
    %1084 = vmatprep.subr.mxu0 0.0
    %1085 = vmatpush1.msra.mxu0 0.0
    %1086 = vmatprep.subr.mxu0 0.0
    %1087 = vmatpush1.msra.mxu0 0.0
    %1088 = vmatprep.subr.mxu0 0.0
    %1089 = vmatpush1.msra.mxu0 0.0
    %1090 = vmatprep.subr.mxu0 0.0
    %1091 = vmatpush1.msra.mxu0 0.0
    %1092 = vmatprep.subr.mxu0 0.0
    %1093 = vmatpush1.msra.mxu0 0.0
    %1094 = vmatprep.subr.mxu0 0.0
    %1095 = vmatpush1.msra.mxu0 0.0
    %1096 = vmatprep.subr.mxu0 0.0
    %1097 = vmatpush1.msra.mxu0 0.0
    %1098 = vmatprep.subr.mxu0 0.0
    %1099 = vmatpush1.msra.mxu0 0.0
    %1100 = vmatprep.subr.mxu0 0.0
    %1101 = vmatpush1.msra.mxu0 0.0
    %1102 = vmatprep.subr.mxu0 0.0
    %1103 = vmatpush1.msra.mxu0 0.0
    %1104 = vmatprep.subr.mxu0 0.0
    %1105 = vmatpush1.msra.mxu0 0.0
    %1106 = vmatprep.subr.mxu0 0.0
    %1107 = vmatpush1.msra.mxu0 0.0
    %1108 = vmatprep.subr.mxu0 0.0
    %1109 = vmatpush1.msra.mxu0 0.0
    %1110 = vmatprep.subr.mxu0 0.0
    %1111 = vmatpush1.msra.mxu0 0.0
    %1112 = vmatprep.subr.mxu0 0.0
    %1113 = vmatpush1.msra.mxu0 0.0
    %1114 = vmatprep.subr.mxu0 0.0
    %1115 = vmatpush1.msra.mxu0 0.0
    %1116 = vmatprep.subr.mxu0 0.0
    %1117 = vmatpush1.msra.mxu0 0.0
    %1118 = vmatprep.subr.mxu0 0.0
    %1119 = vmatpush1.msra.mxu0 0.0
    %1120 = vmatprep.subr.mxu0 0.0
    %1121 = vmatpush1.msra.mxu0 0.0
    %1122 = vmatprep.subr.mxu0 0.0
    %1123 = vmatpush1.msra.mxu0 0.0
    %1124 = vmatprep.subr.mxu0 0.0
    %1125 = vmatpush1.msra.mxu0 0.0
    %1126 = vmatprep.subr.mxu0 0.0
    %1127 = vmatpush1.msra.mxu0 0.0
    %1128 = vmatprep.subr.mxu0 0.0
    %1129 = vmatpush1.msra.mxu0 0.0
    %1130 = vmatprep.mubr.f32.mxu0 0.0
    %1131 = vmatmul.mubr.f32.gmra.mrb[0].mxu0 %v1040
    %v1132 = vpop.f32.mrb[0].mxu0
    %v1133 = vadd.f32 0.0, %v1132
    %v1134 = vpop.f32.mrb[0].mxu0
    %1135 = vmatprep.mubr.f32.mxu0 0.0
    %1136 = vmatmul.mubr.f32.gmra.mrb[0].mxu0 %v1043
    %v1137 = vpop.f32.mrb[0].mxu0
    %v1138 = vadd.f32 0.0, %v1137
    %v1139 = vpop.f32.mrb[0].mxu0
    %1140 = vmatprep.mubr.f32.mxu0 0.0
    %1141 = vmatmul.mubr.f32.gmra.mrb[0].mxu0 %v1046
    %v1142 = vpop.f32.mrb[0].mxu0
    %v1143 = vadd.f32 0.0, %v1142
    %v1144 = vpop.f32.mrb[0].mxu0
    %1145 = vmatprep.mubr.f32.mxu0 0.0
    %1146 = vmatmul.mubr.f32.gmra.mrb[0].mxu0 %v1049
    %v1147 = vpop.f32.mrb[0].mxu0
    %v1148 = vadd.f32 0.0, %v1147
    %v1149 = vpop.f32.mrb[0].mxu0
    %1150 = vmatprep.mubr.f32.mxu0 0.0
    %1151 = vmatmul.mubr.f32.gmra.mrb[0].mxu0 %v1052
    %v1152 = vpop.f32.mrb[0].mxu0
    %v1153 = vadd.f32 0.0, %v1152
    %v1154 = vpop.f32.mrb[0].mxu0
    %1155 = vmatprep.mubr.f32.mxu0 0.0
    %1156 = vmatmul.mubr.f32.gmra.mrb[0].mxu0 %v1055
    %v1157 = vpop.f32.mrb[0].mxu0
    %v1158 = vadd.f32 0.0, %v1157
    %v1159 = vpop.f32.mrb[0].mxu0
    %1160 = vmatprep.mubr.f32.mxu0 0.0
    %1161 = vmatmul.mubr.f32.gmra.mrb[0].mxu0 %v1058
    %v1162 = vpop.f32.mrb[0].mxu0
    %v1163 = vadd.f32 0.0, %v1162
    %v1164 = vpop.f32.mrb[0].mxu0
    %1165 = vmatprep.mubr.f32.mxu0 0.0
    %1166 = vmatmul.mubr.f32.gmra.mrb[0].mxu0 %v1061
    %v1167 = vpop.f32.mrb[0].mxu0
    %v1168 = vadd.f32 0.0, %v1167
    %v1169 = vpop.f32.mrb[0].mxu0
    %1170 = vdwg.mxu0
    %v1171 = vadd.f32 %v1027, %v1133
    %v1172 = vadd.f32 %v1028, %v1138
    %v1173 = vadd.f32 %v1029, %v1143
    %v1174 = vadd.f32 %v1030, %v1148
    %v1175 = vadd.f32 %v1031, %v1153
    %v1176 = vadd.f32 %v1032, %v1158
    %v1177 = vadd.f32 %v1033, %v1163
    %v1178 = vadd.f32 %v1034, %v1168
    %v1179 = vld [vmem:[#allocation5 + $0x240] sm:$0xff]
    %v1180 = vld [vmem:[#allocation5 + $0x248] sm:$0xff]
    %v1181 = vld [vmem:[#allocation5 + $0x250] sm:$0xff]
    %v1182 = vld [vmem:[#allocation5 + $0x258] sm:$0xf]
    %v1184 = vsel %vm625, %v499, 0
    %v1187 = vsel %vm625, %v504, 0
    %v1190 = vsel %vm625, %v509, 0
    %v1193 = vsel %vm625, %v514, 0
    %v1196 = vsel %vm625, %v519, 0
    %v1199 = vsel %vm625, %v524, 0
    %v1202 = vsel %vm625, %v529, 0
    %v1205 = vsel %vm625, %v534, 0
    %v1208 = vsel %vm650, %v1182, 0
    %1210 = vmatprep.subr.mxu0 0.0
    %1211 = vmatpush1.msra.mxu0 %v1179
    %1212 = vmatprep.subr.mxu0 0.0
    %1213 = vmatpush1.msra.mxu0 %v1180
    %1214 = vmatprep.subr.mxu0 0.0
    %1215 = vmatpush1.msra.mxu0 %v1181
    %1216 = vmatprep.subr.mxu0 0.0
    %1217 = vmatpush1.msra.mxu0 %v1208
    %1218 = vmatprep.subr.mxu0 0.0
    %1219 = vmatpush1.msra.mxu0 0.0
    %1220 = vmatprep.subr.mxu0 0.0
    %1221 = vmatpush1.msra.mxu0 0.0
    %1222 = vmatprep.subr.mxu0 0.0
    %1223 = vmatpush1.msra.mxu0 0.0
    %1224 = vmatprep.subr.mxu0 0.0
    %1225 = vmatpush1.msra.mxu0 0.0
    %1226 = vmatprep.subr.mxu0 0.0
    %1227 = vmatpush1.msra.mxu0 0.0
    %1228 = vmatprep.subr.mxu0 0.0
    %1229 = vmatpush1.msra.mxu0 0.0
    %1230 = vmatprep.subr.mxu0 0.0
    %1231 = vmatpush1.msra.mxu0 0.0
    %1232 = vmatprep.subr.mxu0 0.0
    %1233 = vmatpush1.msra.mxu0 0.0
    %1234 = vmatprep.subr.mxu0 0.0
    %1235 = vmatpush1.msra.mxu0 0.0
    %1236 = vmatprep.subr.mxu0 0.0
    %1237 = vmatpush1.msra.mxu0 0.0
    %1238 = vmatprep.subr.mxu0 0.0
    %1239 = vmatpush1.msra.mxu0 0.0
    %1240 = vmatprep.subr.mxu0 0.0
    %1241 = vmatpush1.msra.mxu0 0.0
    %1242 = vmatprep.subr.mxu0 0.0
    %1243 = vmatpush1.msra.mxu0 0.0
    %1244 = vmatprep.subr.mxu0 0.0
    %1245 = vmatpush1.msra.mxu0 0.0
    %1246 = vmatprep.subr.mxu0 0.0
    %1247 = vmatpush1.msra.mxu0 0.0
    %1248 = vmatprep.subr.mxu0 0.0
    %1249 = vmatpush1.msra.mxu0 0.0
    %1250 = vmatprep.subr.mxu0 0.0
    %1251 = vmatpush1.msra.mxu0 0.0
    %1252 = vmatprep.subr.mxu0 0.0
    %1253 = vmatpush1.msra.mxu0 0.0
    %1254 = vmatprep.subr.mxu0 0.0
    %1255 = vmatpush1.msra.mxu0 0.0
    %1256 = vmatprep.subr.mxu0 0.0
    %1257 = vmatpush1.msra.mxu0 0.0
    %1258 = vmatprep.subr.mxu0 0.0
    %1259 = vmatpush1.msra.mxu0 0.0
    %1260 = vmatprep.subr.mxu0 0.0
    %1261 = vmatpush1.msra.mxu0 0.0
    %1262 = vmatprep.subr.mxu0 0.0
    %1263 = vmatpush1.msra.mxu0 0.0
    %1264 = vmatprep.subr.mxu0 0.0
    %1265 = vmatpush1.msra.mxu0 0.0
    %1266 = vmatprep.subr.mxu0 0.0
    %1267 = vmatpush1.msra.mxu0 0.0
    %1268 = vmatprep.subr.mxu0 0.0
    %1269 = vmatpush1.msra.mxu0 0.0
    %1270 = vmatprep.subr.mxu0 0.0
    %1271 = vmatpush1.msra.mxu0 0.0
    %1272 = vmatprep.subr.mxu0 0.0
    %1273 = vmatpush1.msra.mxu0 0.0
    %1274 = vmatprep.mubr.f32.mxu0 0.0
    %1275 = vmatmul.mubr.f32.gmra.mrb[0].mxu0 %v1184
    %v1276 = vpop.f32.mrb[0].mxu0
    %v1277 = vadd.f32 0.0, %v1276
    %v1278 = vpop.f32.mrb[0].mxu0
    %1279 = vmatprep.mubr.f32.mxu0 0.0
    %1280 = vmatmul.mubr.f32.gmra.mrb[0].mxu0 %v1187
    %v1281 = vpop.f32.mrb[0].mxu0
    %v1282 = vadd.f32 0.0, %v1281
    %v1283 = vpop.f32.mrb[0].mxu0
    %1284 = vmatprep.mubr.f32.mxu0 0.0
    %1285 = vmatmul.mubr.f32.gmra.mrb[0].mxu0 %v1190
    %v1286 = vpop.f32.mrb[0].mxu0
    %v1287 = vadd.f32 0.0, %v1286
    %v1288 = vpop.f32.mrb[0].mxu0
    %1289 = vmatprep.mubr.f32.mxu0 0.0
    %1290 = vmatmul.mubr.f32.gmra.mrb[0].mxu0 %v1193
    %v1291 = vpop.f32.mrb[0].mxu0
    %v1292 = vadd.f32 0.0, %v1291
    %v1293 = vpop.f32.mrb[0].mxu0
    %1294 = vmatprep.mubr.f32.mxu0 0.0
    %1295 = vmatmul.mubr.f32.gmra.mrb[0].mxu0 %v1196
    %v1296 = vpop.f32.mrb[0].mxu0
    %v1297 = vadd.f32 0.0, %v1296
    %v1298 = vpop.f32.mrb[0].mxu0
    %1299 = vmatprep.mubr.f32.mxu0 0.0
    %1300 = vmatmul.mubr.f32.gmra.mrb[0].mxu0 %v1199
    %v1301 = vpop.f32.mrb[0].mxu0
    %v1302 = vadd.f32 0.0, %v1301
    %v1303 = vpop.f32.mrb[0].mxu0
    %1304 = vmatprep.mubr.f32.mxu0 0.0
    %1305 = vmatmul.mubr.f32.gmra.mrb[0].mxu0 %v1202
    %v1306 = vpop.f32.mrb[0].mxu0
    %v1307 = vadd.f32 0.0, %v1306
    %v1308 = vpop.f32.mrb[0].mxu0
    %1309 = vmatprep.mubr.f32.mxu0 0.0
    %1310 = vmatmul.mubr.f32.gmra.mrb[0].mxu0 %v1205
    %v1311 = vpop.f32.mrb[0].mxu0
    %v1312 = vadd.f32 0.0, %v1311
    %v1313 = vpop.f32.mrb[0].mxu0
    %1314 = vdwg.mxu0
    %v1315 = vadd.f32 %v1171, %v1277
    %v1316 = vadd.f32 %v1172, %v1282
    %v1317 = vadd.f32 %v1173, %v1287
    %v1318 = vadd.f32 %v1174, %v1292
    %v1319 = vadd.f32 %v1175, %v1297
    %v1320 = vadd.f32 %v1176, %v1302
    %v1321 = vadd.f32 %v1177, %v1307
    %v1322 = vadd.f32 %v1178, %v1312
    %v1323 = vld [vmem:[#allocation5 + $0x260] sm:$0xff]
    %v1324 = vld [vmem:[#allocation5 + $0x268] sm:$0xff]
    %v1325 = vld [vmem:[#allocation5 + $0x270] sm:$0xff]
    %v1326 = vld [vmem:[#allocation5 + $0x278] sm:$0xf]
    %v1328 = vsel %vm625, %v539, 0
    %v1331 = vsel %vm625, %v544, 0
    %v1334 = vsel %vm625, %v549, 0
    %v1337 = vsel %vm625, %v554, 0
    %v1340 = vsel %vm625, %v559, 0
    %v1343 = vsel %vm625, %v564, 0
    %v1346 = vsel %vm625, %v569, 0
    %v1349 = vsel %vm625, %v574, 0
    %v1352 = vsel %vm650, %v1326, 0
    %1354 = vmatprep.subr.mxu0 0.0
    %1355 = vmatpush1.msra.mxu0 %v1323
    %1356 = vmatprep.subr.mxu0 0.0
    %1357 = vmatpush1.msra.mxu0 %v1324
    %1358 = vmatprep.subr.mxu0 0.0
    %1359 = vmatpush1.msra.mxu0 %v1325
    %1360 = vmatprep.subr.mxu0 0.0
    %1361 = vmatpush1.msra.mxu0 %v1352
    %1362 = vmatprep.subr.mxu0 0.0
    %1363 = vmatpush1.msra.mxu0 0.0
    %1364 = vmatprep.subr.mxu0 0.0
    %1365 = vmatpush1.msra.mxu0 0.0
    %1366 = vmatprep.subr.mxu0 0.0
    %1367 = vmatpush1.msra.mxu0 0.0
    %1368 = vmatprep.subr.mxu0 0.0
    %1369 = vmatpush1.msra.mxu0 0.0
    %1370 = vmatprep.subr.mxu0 0.0
    %1371 = vmatpush1.msra.mxu0 0.0
    %1372 = vmatprep.subr.mxu0 0.0
    %1373 = vmatpush1.msra.mxu0 0.0
    %1374 = vmatprep.subr.mxu0 0.0
    %1375 = vmatpush1.msra.mxu0 0.0
    %1376 = vmatprep.subr.mxu0 0.0
    %1377 = vmatpush1.msra.mxu0 0.0
    %1378 = vmatprep.subr.mxu0 0.0
    %1379 = vmatpush1.msra.mxu0 0.0
    %1380 = vmatprep.subr.mxu0 0.0
    %1381 = vmatpush1.msra.mxu0 0.0
    %1382 = vmatprep.subr.mxu0 0.0
    %1383 = vmatpush1.msra.mxu0 0.0
    %1384 = vmatprep.subr.mxu0 0.0
    %1385 = vmatpush1.msra.mxu0 0.0
    %1386 = vmatprep.subr.mxu0 0.0
    %1387 = vmatpush1.msra.mxu0 0.0
    %1388 = vmatprep.subr.mxu0 0.0
    %1389 = vmatpush1.msra.mxu0 0.0
    %1390 = vmatprep.subr.mxu0 0.0
    %1391 = vmatpush1.msra.mxu0 0.0
    %1392 = vmatprep.subr.mxu0 0.0
    %1393 = vmatpush1.msra.mxu0 0.0
    %1394 = vmatprep.subr.mxu0 0.0
    %1395 = vmatpush1.msra.mxu0 0.0
    %1396 = vmatprep.subr.mxu0 0.0
    %1397 = vmatpush1.msra.mxu0 0.0
    %1398 = vmatprep.subr.mxu0 0.0
    %1399 = vmatpush1.msra.mxu0 0.0
    %1400 = vmatprep.subr.mxu0 0.0
    %1401 = vmatpush1.msra.mxu0 0.0
    %1402 = vmatprep.subr.mxu0 0.0
    %1403 = vmatpush1.msra.mxu0 0.0
    %1404 = vmatprep.subr.mxu0 0.0
    %1405 = vmatpush1.msra.mxu0 0.0
    %1406 = vmatprep.subr.mxu0 0.0
    %1407 = vmatpush1.msra.mxu0 0.0
    %1408 = vmatprep.subr.mxu0 0.0
    %1409 = vmatpush1.msra.mxu0 0.0
    %1410 = vmatprep.subr.mxu0 0.0
    %1411 = vmatpush1.msra.mxu0 0.0
    %1412 = vmatprep.subr.mxu0 0.0
    %1413 = vmatpush1.msra.mxu0 0.0
    %1414 = vmatprep.subr.mxu0 0.0
    %1415 = vmatpush1.msra.mxu0 0.0
    %1416 = vmatprep.subr.mxu0 0.0
    %1417 = vmatpush1.msra.mxu0 0.0
    %1418 = vmatprep.mubr.f32.mxu0 0.0
    %1419 = vmatmul.mubr.f32.gmra.mrb[0].mxu0 %v1328
    %v1420 = vpop.f32.mrb[0].mxu0
    %v1421 = vadd.f32 0.0, %v1420
    %v1422 = vpop.f32.mrb[0].mxu0
    %1423 = vmatprep.mubr.f32.mxu0 0.0
    %1424 = vmatmul.mubr.f32.gmra.mrb[0].mxu0 %v1331
    %v1425 = vpop.f32.mrb[0].mxu0
    %v1426 = vadd.f32 0.0, %v1425
    %v1427 = vpop.f32.mrb[0].mxu0
    %1428 = vmatprep.mubr.f32.mxu0 0.0
    %1429 = vmatmul.mubr.f32.gmra.mrb[0].mxu0 %v1334
    %v1430 = vpop.f32.mrb[0].mxu0
    %v1431 = vadd.f32 0.0, %v1430
    %v1432 = vpop.f32.mrb[0].mxu0
    %1433 = vmatprep.mubr.f32.mxu0 0.0
    %1434 = vmatmul.mubr.f32.gmra.mrb[0].mxu0 %v1337
    %v1435 = vpop.f32.mrb[0].mxu0
    %v1436 = vadd.f32 0.0, %v1435
    %v1437 = vpop.f32.mrb[0].mxu0
    %1438 = vmatprep.mubr.f32.mxu0 0.0
    %1439 = vmatmul.mubr.f32.gmra.mrb[0].mxu0 %v1340
    %v1440 = vpop.f32.mrb[0].mxu0
    %v1441 = vadd.f32 0.0, %v1440
    %v1442 = vpop.f32.mrb[0].mxu0
    %1443 = vmatprep.mubr.f32.mxu0 0.0
    %1444 = vmatmul.mubr.f32.gmra.mrb[0].mxu0 %v1343
    %v1445 = vpop.f32.mrb[0].mxu0
    %v1446 = vadd.f32 0.0, %v1445
    %v1447 = vpop.f32.mrb[0].mxu0
    %1448 = vmatprep.mubr.f32.mxu0 0.0
    %1449 = vmatmul.mubr.f32.gmra.mrb[0].mxu0 %v1346
    %v1450 = vpop.f32.mrb[0].mxu0
    %v1451 = vadd.f32 0.0, %v1450
    %v1452 = vpop.f32.mrb[0].mxu0
    %1453 = vmatprep.mubr.f32.mxu0 0.0
    %1454 = vmatmul.mubr.f32.gmra.mrb[0].mxu0 %v1349
    %v1455 = vpop.f32.mrb[0].mxu0
    %v1456 = vadd.f32 0.0, %v1455
    %v1457 = vpop.f32.mrb[0].mxu0
    %1458 = vdwg.mxu0
    %v1459 = vadd.f32 %v1315, %v1421
    %v1460 = vadd.f32 %v1316, %v1426
    %v1461 = vadd.f32 %v1317, %v1431
    %v1462 = vadd.f32 %v1318, %v1436
    %v1463 = vadd.f32 %v1319, %v1441
    %v1464 = vadd.f32 %v1320, %v1446
    %v1465 = vadd.f32 %v1321, %v1451
    %v1466 = vadd.f32 %v1322, %v1456
    %v1467 = vld [vmem:[#allocation5 + $0x280] sm:$0xff]
    %v1468 = vld [vmem:[#allocation5 + $0x288] sm:$0xff]
    %v1469 = vld [vmem:[#allocation5 + $0x290] sm:$0xff]
    %v1470 = vld [vmem:[#allocation5 + $0x298] sm:$0xf]
    %v1472 = vsel %vm625, %v579, 0
    %v1475 = vsel %vm625, %v584, 0
    %v1478 = vsel %vm625, %v589, 0
    %v1481 = vsel %vm625, %v594, 0
    %v1484 = vsel %vm625, %v599, 0
    %v1487 = vsel %vm625, %v604, 0
    %v1490 = vsel %vm625, %v609, 0
    %v1493 = vsel %vm625, %v614, 0
    %v1496 = vsel %vm650, %v1470, 0
    %1498 = vmatprep.subr.mxu0 0.0
    %1499 = vmatpush1.msra.mxu0 %v1467
    %1500 = vmatprep.subr.mxu0 0.0
    %1501 = vmatpush1.msra.mxu0 %v1468
    %1502 = vmatprep.subr.mxu0 0.0
    %1503 = vmatpush1.msra.mxu0 %v1469
    %1504 = vmatprep.subr.mxu0 0.0
    %1505 = vmatpush1.msra.mxu0 %v1496
    %1506 = vmatprep.subr.mxu0 0.0
    %1507 = vmatpush1.msra.mxu0 0.0
    %1508 = vmatprep.subr.mxu0 0.0
    %1509 = vmatpush1.msra.mxu0 0.0
    %1510 = vmatprep.subr.mxu0 0.0
    %1511 = vmatpush1.msra.mxu0 0.0
    %1512 = vmatprep.subr.mxu0 0.0
    %1513 = vmatpush1.msra.mxu0 0.0
    %1514 = vmatprep.subr.mxu0 0.0
    %1515 = vmatpush1.msra.mxu0 0.0
    %1516 = vmatprep.subr.mxu0 0.0
    %1517 = vmatpush1.msra.mxu0 0.0
    %1518 = vmatprep.subr.mxu0 0.0
    %1519 = vmatpush1.msra.mxu0 0.0
    %1520 = vmatprep.subr.mxu0 0.0
    %1521 = vmatpush1.msra.mxu0 0.0
    %1522 = vmatprep.subr.mxu0 0.0
    %1523 = vmatpush1.msra.mxu0 0.0
    %1524 = vmatprep.subr.mxu0 0.0
    %1525 = vmatpush1.msra.mxu0 0.0
    %1526 = vmatprep.subr.mxu0 0.0
    %1527 = vmatpush1.msra.mxu0 0.0
    %1528 = vmatprep.subr.mxu0 0.0
    %1529 = vmatpush1.msra.mxu0 0.0
    %1530 = vmatprep.subr.mxu0 0.0
    %1531 = vmatpush1.msra.mxu0 0.0
    %1532 = vmatprep.subr.mxu0 0.0
    %1533 = vmatpush1.msra.mxu0 0.0
    %1534 = vmatprep.subr.mxu0 0.0
    %1535 = vmatpush1.msra.mxu0 0.0
    %1536 = vmatprep.subr.mxu0 0.0
    %1537 = vmatpush1.msra.mxu0 0.0
    %1538 = vmatprep.subr.mxu0 0.0
    %1539 = vmatpush1.msra.mxu0 0.0
    %1540 = vmatprep.subr.mxu0 0.0
    %1541 = vmatpush1.msra.mxu0 0.0
    %1542 = vmatprep.subr.mxu0 0.0
    %1543 = vmatpush1.msra.mxu0 0.0
    %1544 = vmatprep.subr.mxu0 0.0
    %1545 = vmatpush1.msra.mxu0 0.0
    %1546 = vmatprep.subr.mxu0 0.0
    %1547 = vmatpush1.msra.mxu0 0.0
    %1548 = vmatprep.subr.mxu0 0.0
    %1549 = vmatpush1.msra.mxu0 0.0
    %1550 = vmatprep.subr.mxu0 0.0
    %1551 = vmatpush1.msra.mxu0 0.0
    %1552 = vmatprep.subr.mxu0 0.0
    %1553 = vmatpush1.msra.mxu0 0.0
    %1554 = vmatprep.subr.mxu0 0.0
    %1555 = vmatpush1.msra.mxu0 0.0
    %1556 = vmatprep.subr.mxu0 0.0
    %1557 = vmatpush1.msra.mxu0 0.0
    %1558 = vmatprep.subr.mxu0 0.0
    %1559 = vmatpush1.msra.mxu0 0.0
    %1560 = vmatprep.subr.mxu0 0.0
    %1561 = vmatpush1.msra.mxu0 0.0
    %1562 = vmatprep.mubr.f32.mxu0 0.0
    %1563 = vmatmul.mubr.f32.gmra.mrb[0].mxu0 %v1472
    %v1564 = vpop.f32.mrb[0].mxu0
    %v1565 = vadd.f32 0.0, %v1564
    %v1566 = vpop.f32.mrb[0].mxu0
    %1567 = vmatprep.mubr.f32.mxu0 0.0
    %1568 = vmatmul.mubr.f32.gmra.mrb[0].mxu0 %v1475
    %v1569 = vpop.f32.mrb[0].mxu0
    %v1570 = vadd.f32 0.0, %v1569
    %v1571 = vpop.f32.mrb[0].mxu0
    %1572 = vmatprep.mubr.f32.mxu0 0.0
    %1573 = vmatmul.mubr.f32.gmra.mrb[0].mxu0 %v1478
    %v1574 = vpop.f32.mrb[0].mxu0
    %v1575 = vadd.f32 0.0, %v1574
    %v1576 = vpop.f32.mrb[0].mxu0
    %1577 = vmatprep.mubr.f32.mxu0 0.0
    %1578 = vmatmul.mubr.f32.gmra.mrb[0].mxu0 %v1481
    %v1579 = vpop.f32.mrb[0].mxu0
    %v1580 = vadd.f32 0.0, %v1579
    %v1581 = vpop.f32.mrb[0].mxu0
    %1582 = vmatprep.mubr.f32.mxu0 0.0
    %1583 = vmatmul.mubr.f32.gmra.mrb[0].mxu0 %v1484
    %v1584 = vpop.f32.mrb[0].mxu0
    %v1585 = vadd.f32 0.0, %v1584
    %v1586 = vpop.f32.mrb[0].mxu0
    %1587 = vmatprep.mubr.f32.mxu0 0.0
    %1588 = vmatmul.mubr.f32.gmra.mrb[0].mxu0 %v1487
    %v1589 = vpop.f32.mrb[0].mxu0
    %v1590 = vadd.f32 0.0, %v1589
    %v1591 = vpop.f32.mrb[0].mxu0
    %1592 = vmatprep.mubr.f32.mxu0 0.0
    %1593 = vmatmul.mubr.f32.gmra.mrb[0].mxu0 %v1490
    %v1594 = vpop.f32.mrb[0].mxu0
    %v1595 = vadd.f32 0.0, %v1594
    %v1596 = vpop.f32.mrb[0].mxu0
    %1597 = vmatprep.mubr.f32.mxu0 0.0
    %1598 = vmatmul.mubr.f32.gmra.mrb[0].mxu0 %v1493
    %v1599 = vpop.f32.mrb[0].mxu0
    %v1600 = vadd.f32 0.0, %v1599
    %v1601 = vpop.f32.mrb[0].mxu0
    %1602 = vdwg.mxu0
    %v1603 = vadd.f32 %v1459, %v1565
    %v1604 = vadd.f32 %v1460, %v1570
    %v1605 = vadd.f32 %v1461, %v1575
    %v1606 = vadd.f32 %v1462, %v1580
    %v1607 = vadd.f32 %v1463, %v1585
    %v1608 = vadd.f32 %v1464, %v1590
    %v1609 = vadd.f32 %v1465, %v1595
    %v1610 = vadd.f32 %v1466, %v1600
    %v1611 = vld [vmem:[#allocation5 + $0x2a0] sm:$0x1]
    %v1612 = vlaneseq
    %v1613 = vshrl.u32 %v1612, 7
    %v1614 = vsub.s32 0, %v1613
    %v1615 = vrot.slane %v1611, %v1614
    %v1616 = vadd.f32 %v1603, %v1615
    %v1617 = vadd.f32 %v1604, %v1615
    %v1618 = vadd.f32 %v1605, %v1615
    %v1619 = vadd.f32 %v1606, %v1615
    %v1620 = vadd.f32 %v1607, %v1615
    %v1621 = vadd.f32 %v1608, %v1615
    %v1622 = vadd.f32 %v1609, %v1615
    %v1623 = vadd.f32 %v1610, %v1615
    %v1624 = vmax.f32 %v1616, 0.0
    %v1625 = vmax.f32 %v1617, 0.0
    %v1626 = vmax.f32 %v1618, 0.0
    %v1627 = vmax.f32 %v1619, 0.0
    %v1628 = vmax.f32 %v1620, 0.0
    %v1629 = vmax.f32 %v1621, 0.0
    %v1630 = vmax.f32 %v1622, 0.0
    %v1631 = vmax.f32 %v1623, 0.0
    %v1632 = vld [vmem:[#allocation5 + $0x2a8] sm:$0xff]
    %v1633 = vld [vmem:[#allocation5 + $0x2b0] sm:$0xff]
    %v1634 = vld [vmem:[#allocation5 + $0x2b8] sm:$0xff]
    %v1635 = vld [vmem:[#allocation5 + $0x2c0] sm:$0xff]
    %v1636 = vld [vmem:[#allocation5 + $0x2c8] sm:$0xff]
    %v1637 = vld [vmem:[#allocation5 + $0x2d0] sm:$0xff]
    %v1638 = vld [vmem:[#allocation5 + $0x2d8] sm:$0xff]
    %v1639 = vld [vmem:[#allocation5 + $0x2e0] sm:$0xff]
    %v1640 = vld [vmem:[#allocation5 + $0x2e8] sm:$0xff]
    %v1641 = vld [vmem:[#allocation5 + $0x2f0] sm:$0xff]
    %v1642 = vld [vmem:[#allocation5 + $0x2f8] sm:$0xff]
    %v1643 = vld [vmem:[#allocation5 + $0x300] sm:$0xff]
    %v1644 = vld [vmem:[#allocation5 + $0x308] sm:$0xff]
    %v1645 = vld [vmem:[#allocation5 + $0x310] sm:$0xff]
    %v1646 = vld [vmem:[#allocation5 + $0x318] sm:$0xff]
    %vm1647 = vcmask 982016
    %v1649 = vsel %vm1647, %v1624, 0
    %v1652 = vsel %vm1647, %v1625, 0
    %v1655 = vsel %vm1647, %v1626, 0
    %v1658 = vsel %vm1647, %v1627, 0
    %v1661 = vsel %vm1647, %v1628, 0
    %v1664 = vsel %vm1647, %v1629, 0
    %v1667 = vsel %vm1647, %v1630, 0
    %v1670 = vsel %vm1647, %v1631, 0
    %1672 = vmatprep.subr.mxu0 0.0
    %1673 = vmatpush1.msra.mxu0 %v1632
    %1674 = vmatprep.subr.mxu0 0.0
    %1675 = vmatpush1.msra.mxu0 %v1633
    %1676 = vmatprep.subr.mxu0 0.0
    %1677 = vmatpush1.msra.mxu0 %v1634
    %1678 = vmatprep.subr.mxu0 0.0
    %1679 = vmatpush1.msra.mxu0 %v1635
    %1680 = vmatprep.subr.mxu0 0.0
    %1681 = vmatpush1.msra.mxu0 %v1636
    %1682 = vmatprep.subr.mxu0 0.0
    %1683 = vmatpush1.msra.mxu0 %v1637
    %1684 = vmatprep.subr.mxu0 0.0
    %1685 = vmatpush1.msra.mxu0 %v1638
    %1686 = vmatprep.subr.mxu0 0.0
    %1687 = vmatpush1.msra.mxu0 %v1639
    %1688 = vmatprep.subr.mxu0 0.0
    %1689 = vmatpush1.msra.mxu0 %v1640
    %1690 = vmatprep.subr.mxu0 0.0
    %1691 = vmatpush1.msra.mxu0 %v1641
    %1692 = vmatprep.subr.mxu0 0.0
    %1693 = vmatpush1.msra.mxu0 %v1642
    %1694 = vmatprep.subr.mxu0 0.0
    %1695 = vmatpush1.msra.mxu0 %v1643
    %1696 = vmatprep.subr.mxu0 0.0
    %1697 = vmatpush1.msra.mxu0 %v1644
    %1698 = vmatprep.subr.mxu0 0.0
    %1699 = vmatpush1.msra.mxu0 %v1645
    %1700 = vmatprep.subr.mxu0 0.0
    %1701 = vmatpush1.msra.mxu0 %v1646
    %1702 = vmatprep.subr.mxu0 0.0
    %1703 = vmatpush1.msra.mxu0 0.0
    %1704 = vmatprep.subr.mxu0 0.0
    %1705 = vmatpush1.msra.mxu0 0.0
    %1706 = vmatprep.subr.mxu0 0.0
    %1707 = vmatpush1.msra.mxu0 0.0
    %1708 = vmatprep.subr.mxu0 0.0
    %1709 = vmatpush1.msra.mxu0 0.0
    %1710 = vmatprep.subr.mxu0 0.0
    %1711 = vmatpush1.msra.mxu0 0.0
    %1712 = vmatprep.subr.mxu0 0.0
    %1713 = vmatpush1.msra.mxu0 0.0
    %1714 = vmatprep.subr.mxu0 0.0
    %1715 = vmatpush1.msra.mxu0 0.0
    %1716 = vmatprep.subr.mxu0 0.0
    %1717 = vmatpush1.msra.mxu0 0.0
    %1718 = vmatprep.subr.mxu0 0.0
    %1719 = vmatpush1.msra.mxu0 0.0
    %1720 = vmatprep.subr.mxu0 0.0
    %1721 = vmatpush1.msra.mxu0 0.0
    %1722 = vmatprep.subr.mxu0 0.0
    %1723 = vmatpush1.msra.mxu0 0.0
    %1724 = vmatprep.subr.mxu0 0.0
    %1725 = vmatpush1.msra.mxu0 0.0
    %1726 = vmatprep.subr.mxu0 0.0
    %1727 = vmatpush1.msra.mxu0 0.0
    %1728 = vmatprep.subr.mxu0 0.0
    %1729 = vmatpush1.msra.mxu0 0.0
    %1730 = vmatprep.subr.mxu0 0.0
    %1731 = vmatpush1.msra.mxu0 0.0
    %1732 = vmatprep.subr.mxu0 0.0
    %1733 = vmatpush1.msra.mxu0 0.0
    %1734 = vmatprep.subr.mxu0 0.0
    %1735 = vmatpush1.msra.mxu0 0.0
    %1736 = vmatprep.mubr.f32.mxu0 0.0
    %1737 = vmatmul.mubr.f32.gmra.mrb[0].mxu0 %v1649
    %v1738 = vpop.f32.mrb[0].mxu0
    %v1739 = vadd.f32 0.0, %v1738
    %v1740 = vpop.f32.mrb[0].mxu0
    %1741 = vmatprep.mubr.f32.mxu0 0.0
    %1742 = vmatmul.mubr.f32.gmra.mrb[0].mxu0 %v1652
    %v1743 = vpop.f32.mrb[0].mxu0
    %v1744 = vadd.f32 0.0, %v1743
    %v1745 = vpop.f32.mrb[0].mxu0
    %1746 = vmatprep.mubr.f32.mxu0 0.0
    %1747 = vmatmul.mubr.f32.gmra.mrb[0].mxu0 %v1655
    %v1748 = vpop.f32.mrb[0].mxu0
    %v1749 = vadd.f32 0.0, %v1748
    %v1750 = vpop.f32.mrb[0].mxu0
    %1751 = vmatprep.mubr.f32.mxu0 0.0
    %1752 = vmatmul.mubr.f32.gmra.mrb[0].mxu0 %v1658
    %v1753 = vpop.f32.mrb[0].mxu0
    %v1754 = vadd.f32 0.0, %v1753
    %v1755 = vpop.f32.mrb[0].mxu0
    %1756 = vmatprep.mubr.f32.mxu0 0.0
    %1757 = vmatmul.mubr.f32.gmra.mrb[0].mxu0 %v1661
    %v1758 = vpop.f32.mrb[0].mxu0
    %v1759 = vadd.f32 0.0, %v1758
    %v1760 = vpop.f32.mrb[0].mxu0
    %1761 = vmatprep.mubr.f32.mxu0 0.0
    %1762 = vmatmul.mubr.f32.gmra.mrb[0].mxu0 %v1664
    %v1763 = vpop.f32.mrb[0].mxu0
    %v1764 = vadd.f32 0.0, %v1763
    %v1765 = vpop.f32.mrb[0].mxu0
    %1766 = vmatprep.mubr.f32.mxu0 0.0
    %1767 = vmatmul.mubr.f32.gmra.mrb[0].mxu0 %v1667
    %v1768 = vpop.f32.mrb[0].mxu0
    %v1769 = vadd.f32 0.0, %v1768
    %v1770 = vpop.f32.mrb[0].mxu0
    %1771 = vmatprep.mubr.f32.mxu0 0.0
    %1772 = vmatmul.mubr.f32.gmra.mrb[0].mxu0 %v1670
    %v1773 = vpop.f32.mrb[0].mxu0
    %v1774 = vadd.f32 0.0, %v1773
    %v1775 = vpop.f32.mrb[0].mxu0
    %1776 = vdwg.mxu0
    %v1777 = vld [vmem:[#allocation5 + $0x320] sm:$0xff]
    %v1778 = vld [vmem:[#allocation5 + $0x328] sm:$0xff]
    %v1779 = vld [vmem:[#allocation5 + $0x330] sm:$0xff]
    %v1780 = vld [vmem:[#allocation5 + $0x338] sm:$0xff]
    %v1781 = vld [vmem:[#allocation5 + $0x340] sm:$0xff]
    %v1782 = vld [vmem:[#allocation5 + $0x348] sm:$0xff]
    %v1783 = vld [vmem:[#allocation5 + $0x350] sm:$0xff]
    %v1784 = vld [vmem:[#allocation5 + $0x358] sm:$0xff]
    %v1785 = vld [vmem:[#allocation5 + $0x360] sm:$0xff]
    %v1786 = vld [vmem:[#allocation5 + $0x368] sm:$0xff]
    %v1787 = vld [vmem:[#allocation5 + $0x370] sm:$0xff]
    %v1788 = vld [vmem:[#allocation5 + $0x378] sm:$0xff]
    %v1789 = vld [vmem:[#allocation5 + $0x380] sm:$0xff]
    %v1790 = vld [vmem:[#allocation5 + $0x388] sm:$0xff]
    %v1791 = vld [vmem:[#allocation5 + $0x390] sm:$0xff]
    %1792 = vmatprep.subr.mxu0 0.0
    %1793 = vmatpush1.msra.mxu0 %v1777
    %1794 = vmatprep.subr.mxu0 0.0
    %1795 = vmatpush1.msra.mxu0 %v1778
    %1796 = vmatprep.subr.mxu0 0.0
    %1797 = vmatpush1.msra.mxu0 %v1779
    %1798 = vmatprep.subr.mxu0 0.0
    %1799 = vmatpush1.msra.mxu0 %v1780
    %1800 = vmatprep.subr.mxu0 0.0
    %1801 = vmatpush1.msra.mxu0 %v1781
    %1802 = vmatprep.subr.mxu0 0.0
    %1803 = vmatpush1.msra.mxu0 %v1782
    %1804 = vmatprep.subr.mxu0 0.0
    %1805 = vmatpush1.msra.mxu0 %v1783
    %1806 = vmatprep.subr.mxu0 0.0
    %1807 = vmatpush1.msra.mxu0 %v1784
    %1808 = vmatprep.subr.mxu0 0.0
    %1809 = vmatpush1.msra.mxu0 %v1785
    %1810 = vmatprep.subr.mxu0 0.0
    %1811 = vmatpush1.msra.mxu0 %v1786
    %1812 = vmatprep.subr.mxu0 0.0
    %1813 = vmatpush1.msra.mxu0 %v1787
    %1814 = vmatprep.subr.mxu0 0.0
    %1815 = vmatpush1.msra.mxu0 %v1788
    %1816 = vmatprep.subr.mxu0 0.0
    %1817 = vmatpush1.msra.mxu0 %v1789
    %1818 = vmatprep.subr.mxu0 0.0
    %1819 = vmatpush1.msra.mxu0 %v1790
    %1820 = vmatprep.subr.mxu0 0.0
    %1821 = vmatpush1.msra.mxu0 %v1791
    %1822 = vmatprep.subr.mxu0 0.0
    %1823 = vmatpush1.msra.mxu0 0.0
    %1824 = vmatprep.subr.mxu0 0.0
    %1825 = vmatpush1.msra.mxu0 0.0
    %1826 = vmatprep.subr.mxu0 0.0
    %1827 = vmatpush1.msra.mxu0 0.0
    %1828 = vmatprep.subr.mxu0 0.0
    %1829 = vmatpush1.msra.mxu0 0.0
    %1830 = vmatprep.subr.mxu0 0.0
    %1831 = vmatpush1.msra.mxu0 0.0
    %1832 = vmatprep.subr.mxu0 0.0
    %1833 = vmatpush1.msra.mxu0 0.0
    %1834 = vmatprep.subr.mxu0 0.0
    %1835 = vmatpush1.msra.mxu0 0.0
    %1836 = vmatprep.subr.mxu0 0.0
    %1837 = vmatpush1.msra.mxu0 0.0
    %1838 = vmatprep.subr.mxu0 0.0
    %1839 = vmatpush1.msra.mxu0 0.0
    %1840 = vmatprep.subr.mxu0 0.0
    %1841 = vmatpush1.msra.mxu0 0.0
    %1842 = vmatprep.subr.mxu0 0.0
    %1843 = vmatpush1.msra.mxu0 0.0
    %1844 = vmatprep.subr.mxu0 0.0
    %1845 = vmatpush1.msra.mxu0 0.0
    %1846 = vmatprep.subr.mxu0 0.0
    %1847 = vmatpush1.msra.mxu0 0.0
    %1848 = vmatprep.subr.mxu0 0.0
    %1849 = vmatpush1.msra.mxu0 0.0
    %1850 = vmatprep.subr.mxu0 0.0
    %1851 = vmatpush1.msra.mxu0 0.0
    %1852 = vmatprep.subr.mxu0 0.0
    %1853 = vmatpush1.msra.mxu0 0.0
    %1854 = vmatprep.subr.mxu0 0.0
    %1855 = vmatpush1.msra.mxu0 0.0
    %1856 = vmatprep.mubr.f32.mxu0 0.0
    %1857 = vmatmul.mubr.f32.gmra.mrb[0].mxu0 %v1649
    %v1858 = vpop.f32.mrb[0].mxu0
    %v1859 = vadd.f32 0.0, %v1858
    %v1860 = vpop.f32.mrb[0].mxu0
    %1861 = vmatprep.mubr.f32.mxu0 0.0
    %1862 = vmatmul.mubr.f32.gmra.mrb[0].mxu0 %v1652
    %v1863 = vpop.f32.mrb[0].mxu0
    %v1864 = vadd.f32 0.0, %v1863
    %v1865 = vpop.f32.mrb[0].mxu0
    %1866 = vmatprep.mubr.f32.mxu0 0.0
    %1867 = vmatmul.mubr.f32.gmra.mrb[0].mxu0 %v1655
    %v1868 = vpop.f32.mrb[0].mxu0
    %v1869 = vadd.f32 0.0, %v1868
    %v1870 = vpop.f32.mrb[0].mxu0
    %1871 = vmatprep.mubr.f32.mxu0 0.0
    %1872 = vmatmul.mubr.f32.gmra.mrb[0].mxu0 %v1658
    %v1873 = vpop.f32.mrb[0].mxu0
    %v1874 = vadd.f32 0.0, %v1873
    %v1875 = vpop.f32.mrb[0].mxu0
    %1876 = vmatprep.mubr.f32.mxu0 0.0
    %1877 = vmatmul.mubr.f32.gmra.mrb[0].mxu0 %v1661
    %v1878 = vpop.f32.mrb[0].mxu0
    %v1879 = vadd.f32 0.0, %v1878
    %v1880 = vpop.f32.mrb[0].mxu0
    %1881 = vmatprep.mubr.f32.mxu0 0.0
    %1882 = vmatmul.mubr.f32.gmra.mrb[0].mxu0 %v1664
    %v1883 = vpop.f32.mrb[0].mxu0
    %v1884 = vadd.f32 0.0, %v1883
    %v1885 = vpop.f32.mrb[0].mxu0
    %1886 = vmatprep.mubr.f32.mxu0 0.0
    %1887 = vmatmul.mubr.f32.gmra.mrb[0].mxu0 %v1667
    %v1888 = vpop.f32.mrb[0].mxu0
    %v1889 = vadd.f32 0.0, %v1888
    %v1890 = vpop.f32.mrb[0].mxu0
    %1891 = vmatprep.mubr.f32.mxu0 0.0
    %1892 = vmatmul.mubr.f32.gmra.mrb[0].mxu0 %v1670
    %v1893 = vpop.f32.mrb[0].mxu0
    %v1894 = vadd.f32 0.0, %v1893
    %v1895 = vpop.f32.mrb[0].mxu0
    %1896 = vdwg.mxu0
    %v1897 = vmax.f32 %v1739, %v1859
    %v1898 = vmax.f32 %v1744, %v1864
    %v1899 = vmax.f32 %v1749, %v1869
    %v1900 = vmax.f32 %v1754, %v1874
    %v1901 = vmax.f32 %v1759, %v1879
    %v1902 = vmax.f32 %v1764, %v1884
    %v1903 = vmax.f32 %v1769, %v1889
    %v1904 = vmax.f32 %v1774, %v1894
    %v1905 = vld [vmem:[#allocation5 + $0x398] sm:$0xff]
    %v1906 = vld [vmem:[#allocation5 + $0x3a0] sm:$0xff]
    %v1907 = vld [vmem:[#allocation5 + $0x3a8] sm:$0xff]
    %v1908 = vld [vmem:[#allocation5 + $0x3b0] sm:$0xff]
    %v1909 = vld [vmem:[#allocation5 + $0x3b8] sm:$0xff]
    %v1910 = vld [vmem:[#allocation5 + $0x3c0] sm:$0xff]
    %v1911 = vld [vmem:[#allocation5 + $0x3c8] sm:$0xff]
    %v1912 = vld [vmem:[#allocation5 + $0x3d0] sm:$0xff]
    %vm1913 = vcmask 523264
    %v1915 = vsel %vm1913, %v1905, 0
    %v1918 = vsel %vm1913, %v1906, 0
    %v1921 = vsel %vm1913, %v1907, 0
    %v1924 = vsel %vm1913, %v1908, 0
    %v1927 = vsel %vm1913, %v1909, 0
    %v1930 = vsel %vm1913, %v1910, 0
    %v1933 = vsel %vm1913, %v1911, 0
    %v1936 = vsel %vm1913, %v1912, 0
    %1938 = vmatprep.subr.mxu0 0.0
    %1939 = vmatpush1.msra.mxu0 %v1897
    %1940 = vmatprep.subr.mxu0 0.0
    %1941 = vmatpush1.msra.mxu0 %v1898
    %1942 = vmatprep.subr.mxu0 0.0
    %1943 = vmatpush1.msra.mxu0 %v1899
    %1944 = vmatprep.subr.mxu0 0.0
    %1945 = vmatpush1.msra.mxu0 %v1900
    %1946 = vmatprep.subr.mxu0 0.0
    %1947 = vmatpush1.msra.mxu0 %v1901
    %1948 = vmatprep.subr.mxu0 0.0
    %1949 = vmatpush1.msra.mxu0 %v1902
    %1950 = vmatprep.subr.mxu0 0.0
    %1951 = vmatpush1.msra.mxu0 %v1903
    %1952 = vmatprep.subr.mxu0 0.0
    %1953 = vmatpush1.msra.mxu0 %v1904
    %1954 = vmatprep.subr.mxu0 0.0
    %1955 = vmatpush1.msra.mxu0 0.0
    %1956 = vmatprep.subr.mxu0 0.0
    %1957 = vmatpush1.msra.mxu0 0.0
    %1958 = vmatprep.subr.mxu0 0.0
    %1959 = vmatpush1.msra.mxu0 0.0
    %1960 = vmatprep.subr.mxu0 0.0
    %1961 = vmatpush1.msra.mxu0 0.0
    %1962 = vmatprep.subr.mxu0 0.0
    %1963 = vmatpush1.msra.mxu0 0.0
    %1964 = vmatprep.subr.mxu0 0.0
    %1965 = vmatpush1.msra.mxu0 0.0
    %1966 = vmatprep.subr.mxu0 0.0
    %1967 = vmatpush1.msra.mxu0 0.0
    %1968 = vmatprep.subr.mxu0 0.0
    %1969 = vmatpush1.msra.mxu0 0.0
    %1970 = vmatprep.subr.mxu0 0.0
    %1971 = vmatpush1.msra.mxu0 0.0
    %1972 = vmatprep.subr.mxu0 0.0
    %1973 = vmatpush1.msra.mxu0 0.0
    %1974 = vmatprep.subr.mxu0 0.0
    %1975 = vmatpush1.msra.mxu0 0.0
    %1976 = vmatprep.subr.mxu0 0.0
    %1977 = vmatpush1.msra.mxu0 0.0
    %1978 = vmatprep.subr.mxu0 0.0
    %1979 = vmatpush1.msra.mxu0 0.0
    %1980 = vmatprep.subr.mxu0 0.0
    %1981 = vmatpush1.msra.mxu0 0.0
    %1982 = vmatprep.subr.mxu0 0.0
    %1983 = vmatpush1.msra.mxu0 0.0
    %1984 = vmatprep.subr.mxu0 0.0
    %1985 = vmatpush1.msra.mxu0 0.0
    %1986 = vmatprep.subr.mxu0 0.0
    %1987 = vmatpush1.msra.mxu0 0.0
    %1988 = vmatprep.subr.mxu0 0.0
    %1989 = vmatpush1.msra.mxu0 0.0
    %1990 = vmatprep.subr.mxu0 0.0
    %1991 = vmatpush1.msra.mxu0 0.0
    %1992 = vmatprep.subr.mxu0 0.0
    %1993 = vmatpush1.msra.mxu0 0.0
    %1994 = vmatprep.subr.mxu0 0.0
    %1995 = vmatpush1.msra.mxu0 0.0
    %1996 = vmatprep.subr.mxu0 0.0
    %1997 = vmatpush1.msra.mxu0 0.0
    %1998 = vmatprep.subr.mxu0 0.0
    %1999 = vmatpush1.msra.mxu0 0.0
    %2000 = vmatprep.subr.mxu0 0.0
    %2001 = vmatpush1.msra.mxu0 0.0
    %2002 = vmatprep.mubr.f32.mxu0 0.0
    %2003 = vmatmul.mubr.f32.gmra.mrb[0].mxu0 %v1915
    %v2004 = vpop.f32.mrb[0].mxu0
    %v2005 = vadd.f32 0.0, %v2004
    %v2006 = vpop.f32.mrb[0].mxu0
    %2007 = vmatprep.mubr.f32.mxu0 0.0
    %2008 = vmatmul.mubr.f32.gmra.mrb[0].mxu0 %v1918
    %v2009 = vpop.f32.mrb[0].mxu0
    %v2010 = vadd.f32 0.0, %v2009
    %v2011 = vpop.f32.mrb[0].mxu0
    %2012 = vmatprep.mubr.f32.mxu0 0.0
    %2013 = vmatmul.mubr.f32.gmra.mrb[0].mxu0 %v1921
    %v2014 = vpop.f32.mrb[0].mxu0
    %v2015 = vadd.f32 0.0, %v2014
    %v2016 = vpop.f32.mrb[0].mxu0
    %2017 = vmatprep.mubr.f32.mxu0 0.0
    %2018 = vmatmul.mubr.f32.gmra.mrb[0].mxu0 %v1924
    %v2019 = vpop.f32.mrb[0].mxu0
    %v2020 = vadd.f32 0.0, %v2019
    %v2021 = vpop.f32.mrb[0].mxu0
    %2022 = vmatprep.mubr.f32.mxu0 0.0
    %2023 = vmatmul.mubr.f32.gmra.mrb[0].mxu0 %v1927
    %v2024 = vpop.f32.mrb[0].mxu0
    %v2025 = vadd.f32 0.0, %v2024
    %v2026 = vpop.f32.mrb[0].mxu0
    %2027 = vmatprep.mubr.f32.mxu0 0.0
    %2028 = vmatmul.mubr.f32.gmra.mrb[0].mxu0 %v1930
    %v2029 = vpop.f32.mrb[0].mxu0
    %v2030 = vadd.f32 0.0, %v2029
    %v2031 = vpop.f32.mrb[0].mxu0
    %2032 = vmatprep.mubr.f32.mxu0 0.0
    %2033 = vmatmul.mubr.f32.gmra.mrb[0].mxu0 %v1933
    %v2034 = vpop.f32.mrb[0].mxu0
    %v2035 = vadd.f32 0.0, %v2034
    %v2036 = vpop.f32.mrb[0].mxu0
    %2037 = vmatprep.mubr.f32.mxu0 0.0
    %2038 = vmatmul.mubr.f32.gmra.mrb[0].mxu0 %v1936
    %v2039 = vpop.f32.mrb[0].mxu0
    %v2040 = vadd.f32 0.0, %v2039
    %v2041 = vpop.f32.mrb[0].mxu0
    %2042 = vdwg.mxu0
    %v2043 = vmax.f32 %v2005, %v2025
    %v2044 = vmax.f32 %v2010, %v2030
    %v2045 = vmax.f32 %v2015, %v2035
    %v2046 = vmax.f32 %v2020, %v2040
    %v2047 = vld [vmem:[#allocation5 + $0x3d8] sm:$0xff]
    %v2048 = vld [vmem:[#allocation5 + $0x3e0] sm:$0xff]
    %v2049 = vld [vmem:[#allocation5 + $0x3e8] sm:$0xff]
    %v2050 = vld [vmem:[#allocation5 + $0x3f0] sm:$0xff]
    %v2051 = vld [vmem:[#allocation5 + $0x3f8] sm:$0xff]
    %v2052 = vld [vmem:[#allocation5 + $0x400] sm:$0xff]
    %v2053 = vld [vmem:[#allocation5 + $0x408] sm:$0xff]
    %v2054 = vld [vmem:[#allocation5 + $0x410] sm:$0xff]
    %v2055 = vld [vmem:[#allocation5 + $0x418] sm:$0xff]
    %v2056 = vld [vmem:[#allocation5 + $0x420] sm:$0xff]
    %vm2057 = vcmask 261120
    %v2059 = vsel %vm2057, %v2047, 0
    %v2062 = vsel %vm2057, %v2048, 0
    %v2065 = vsel %vm2057, %v2049, 0
    %v2068 = vsel %vm2057, %v2050, 0
    %v2071 = vsel %vm2057, %v2051, 0
    %v2074 = vsel %vm2057, %v2052, 0
    %v2077 = vsel %vm2057, %v2053, 0
    %v2080 = vsel %vm2057, %v2054, 0
    %v2083 = vsel %vm2057, %v2055, 0
    %v2086 = vsel %vm2057, %v2056, 0
    %2088 = vmatprep.subr.mxu0 0.0
    %2089 = vmatpush1.msra.mxu0 %v2043
    %2090 = vmatprep.subr.mxu0 0.0
    %2091 = vmatpush1.msra.mxu0 %v2044
    %2092 = vmatprep.subr.mxu0 0.0
    %2093 = vmatpush1.msra.mxu0 %v2045
    %2094 = vmatprep.subr.mxu0 0.0
    %2095 = vmatpush1.msra.mxu0 %v2046
    %2096 = vmatprep.subr.mxu0 0.0
    %2097 = vmatpush1.msra.mxu0 0.0
    %2098 = vmatprep.subr.mxu0 0.0
    %2099 = vmatpush1.msra.mxu0 0.0
    %2100 = vmatprep.subr.mxu0 0.0
    %2101 = vmatpush1.msra.mxu0 0.0
    %2102 = vmatprep.subr.mxu0 0.0
    %2103 = vmatpush1.msra.mxu0 0.0
    %2104 = vmatprep.subr.mxu0 0.0
    %2105 = vmatpush1.msra.mxu0 0.0
    %2106 = vmatprep.subr.mxu0 0.0
    %2107 = vmatpush1.msra.mxu0 0.0
    %2108 = vmatprep.subr.mxu0 0.0
    %2109 = vmatpush1.msra.mxu0 0.0
    %2110 = vmatprep.subr.mxu0 0.0
    %2111 = vmatpush1.msra.mxu0 0.0
    %2112 = vmatprep.subr.mxu0 0.0
    %2113 = vmatpush1.msra.mxu0 0.0
    %2114 = vmatprep.subr.mxu0 0.0
    %2115 = vmatpush1.msra.mxu0 0.0
    %2116 = vmatprep.subr.mxu0 0.0
    %2117 = vmatpush1.msra.mxu0 0.0
    %2118 = vmatprep.subr.mxu0 0.0
    %2119 = vmatpush1.msra.mxu0 0.0
    %2120 = vmatprep.subr.mxu0 0.0
    %2121 = vmatpush1.msra.mxu0 0.0
    %2122 = vmatprep.subr.mxu0 0.0
    %2123 = vmatpush1.msra.mxu0 0.0
    %2124 = vmatprep.subr.mxu0 0.0
    %2125 = vmatpush1.msra.mxu0 0.0
    %2126 = vmatprep.subr.mxu0 0.0
    %2127 = vmatpush1.msra.mxu0 0.0
    %2128 = vmatprep.subr.mxu0 0.0
    %2129 = vmatpush1.msra.mxu0 0.0
    %2130 = vmatprep.subr.mxu0 0.0
    %2131 = vmatpush1.msra.mxu0 0.0
    %2132 = vmatprep.subr.mxu0 0.0
    %2133 = vmatpush1.msra.mxu0 0.0
    %2134 = vmatprep.subr.mxu0 0.0
    %2135 = vmatpush1.msra.mxu0 0.0
    %2136 = vmatprep.subr.mxu0 0.0
    %2137 = vmatpush1.msra.mxu0 0.0
    %2138 = vmatprep.subr.mxu0 0.0
    %2139 = vmatpush1.msra.mxu0 0.0
    %2140 = vmatprep.subr.mxu0 0.0
    %2141 = vmatpush1.msra.mxu0 0.0
    %2142 = vmatprep.subr.mxu0 0.0
    %2143 = vmatpush1.msra.mxu0 0.0
    %2144 = vmatprep.subr.mxu0 0.0
    %2145 = vmatpush1.msra.mxu0 0.0
    %2146 = vmatprep.subr.mxu0 0.0
    %2147 = vmatpush1.msra.mxu0 0.0
    %2148 = vmatprep.subr.mxu0 0.0
    %2149 = vmatpush1.msra.mxu0 0.0
    %2150 = vmatprep.subr.mxu0 0.0
    %2151 = vmatpush1.msra.mxu0 0.0
    %2152 = vmatprep.mubr.f32.mxu0 0.0
    %2153 = vmatmul.mubr.f32.gmra.mrb[0].mxu0 %v2059
    %v2154 = vpop.f32.mrb[0].mxu0
    %v2155 = vadd.f32 0.0, %v2154
    %v2156 = vpop.f32.mrb[0].mxu0
    %2157 = vmatprep.mubr.f32.mxu0 0.0
    %2158 = vmatmul.mubr.f32.gmra.mrb[0].mxu0 %v2062
    %v2159 = vpop.f32.mrb[0].mxu0
    %v2160 = vadd.f32 0.0, %v2159
    %v2161 = vpop.f32.mrb[0].mxu0
    %2162 = vmatprep.mubr.f32.mxu0 0.0
    %2163 = vmatmul.mubr.f32.gmra.mrb[0].mxu0 %v2065
    %v2164 = vpop.f32.mrb[0].mxu0
    %v2165 = vadd.f32 0.0, %v2164
    %v2166 = vpop.f32.mrb[0].mxu0
    %2167 = vmatprep.mubr.f32.mxu0 0.0
    %2168 = vmatmul.mubr.f32.gmra.mrb[0].mxu0 %v2068
    %v2169 = vpop.f32.mrb[0].mxu0
    %v2170 = vadd.f32 0.0, %v2169
    %v2171 = vpop.f32.mrb[0].mxu0
    %2172 = vmatprep.mubr.f32.mxu0 0.0
    %2173 = vmatmul.mubr.f32.gmra.mrb[0].mxu0 %v2071
    %v2174 = vpop.f32.mrb[0].mxu0
    %v2175 = vadd.f32 0.0, %v2174
    %v2176 = vpop.f32.mrb[0].mxu0
    %2177 = vmatprep.mubr.f32.mxu0 0.0
    %2178 = vmatmul.mubr.f32.gmra.mrb[0].mxu0 %v2074
    %v2179 = vpop.f32.mrb[0].mxu0
    %v2180 = vadd.f32 0.0, %v2179
    %v2181 = vpop.f32.mrb[0].mxu0
    %2182 = vmatprep.mubr.f32.mxu0 0.0
    %2183 = vmatmul.mubr.f32.gmra.mrb[0].mxu0 %v2077
    %v2184 = vpop.f32.mrb[0].mxu0
    %v2185 = vadd.f32 0.0, %v2184
    %v2186 = vpop.f32.mrb[0].mxu0
    %2187 = vmatprep.mubr.f32.mxu0 0.0
    %2188 = vmatmul.mubr.f32.gmra.mrb[0].mxu0 %v2080
    %v2189 = vpop.f32.mrb[0].mxu0
    %v2190 = vadd.f32 0.0, %v2189
    %v2191 = vpop.f32.mrb[0].mxu0
    %2192 = vmatprep.mubr.f32.mxu0 0.0
    %2193 = vmatmul.mubr.f32.gmra.mrb[0].mxu0 %v2083
    %v2194 = vpop.f32.mrb[0].mxu0
    %v2195 = vadd.f32 0.0, %v2194
    %v2196 = vpop.f32.mrb[0].mxu0
    %2197 = vmatprep.mubr.f32.mxu0 0.0
    %2198 = vmatmul.mubr.f32.gmra.mrb[0].mxu0 %v2086
    %v2199 = vpop.f32.mrb[0].mxu0
    %v2200 = vadd.f32 0.0, %v2199
    %v2201 = vpop.f32.mrb[0].mxu0
    %2202 = vdwg.mxu0
    %v2203 = vld [vmem:[#allocation5 + $0x428] sm:$0xff]
    %v2204 = vld [vmem:[#allocation5 + $0x430] sm:$0xff]
    %v2205 = vld [vmem:[#allocation5 + $0x438] sm:$0xff]
    %v2206 = vld [vmem:[#allocation5 + $0x440] sm:$0xff]
    %v2207 = vld [vmem:[#allocation5 + $0x448] sm:$0xff]
    %v2208 = vld [vmem:[#allocation5 + $0x450] sm:$0xff]
    %v2209 = vld [vmem:[#allocation5 + $0x458] sm:$0xff]
    %v2210 = vld [vmem:[#allocation5 + $0x460] sm:$0xf]
    %v2211 = vld [vmem:[#allocation5 + $0x468] sm:$0xff]
    %v2212 = vld [vmem:[#allocation5 + $0x470] sm:$0xff]
    %v2213 = vld [vmem:[#allocation5 + $0x478] sm:$0xff]
    %v2214 = vld [vmem:[#allocation5 + $0x480] sm:$0xff]
    %v2215 = vld [vmem:[#allocation5 + $0x488] sm:$0xff]
    %v2216 = vld [vmem:[#allocation5 + $0x490] sm:$0xff]
    %v2217 = vld [vmem:[#allocation5 + $0x498] sm:$0xff]
    %v2218 = vld [vmem:[#allocation5 + $0x4a0] sm:$0xf]
    %vm2219 = vcmask 490496
    %v2221 = vsel %vm2219, %v2165, 0
    %v2224 = vsel %vm2219, %v2170, 0
    %v2227 = vsel %vm650, %v2218, 0
    %2229 = vmatprep.subr.mxu0 0.0
    %2230 = vmatpush1.msra.mxu0 %v2211
    %2231 = vmatprep.subr.mxu0 0.0
    %2232 = vmatpush1.msra.mxu0 %v2212
    %2233 = vmatprep.subr.mxu0 0.0
    %2234 = vmatpush1.msra.mxu0 %v2213
    %2235 = vmatprep.subr.mxu0 0.0
    %2236 = vmatpush1.msra.mxu0 %v2214
    %2237 = vmatprep.subr.mxu0 0.0
    %2238 = vmatpush1.msra.mxu0 %v2215
    %2239 = vmatprep.subr.mxu0 0.0
    %2240 = vmatpush1.msra.mxu0 %v2216
    %2241 = vmatprep.subr.mxu0 0.0
    %2242 = vmatpush1.msra.mxu0 %v2217
    %2243 = vmatprep.subr.mxu0 0.0
    %2244 = vmatpush1.msra.mxu0 %v2227
    %2245 = vmatprep.subr.mxu0 0.0
    %2246 = vmatpush1.msra.mxu0 0.0
    %2247 = vmatprep.subr.mxu0 0.0
    %2248 = vmatpush1.msra.mxu0 0.0
    %2249 = vmatprep.subr.mxu0 0.0
    %2250 = vmatpush1.msra.mxu0 0.0
    %2251 = vmatprep.subr.mxu0 0.0
    %2252 = vmatpush1.msra.mxu0 0.0
    %2253 = vmatprep.subr.mxu0 0.0
    %2254 = vmatpush1.msra.mxu0 0.0
    %2255 = vmatprep.subr.mxu0 0.0
    %2256 = vmatpush1.msra.mxu0 0.0
    %2257 = vmatprep.subr.mxu0 0.0
    %2258 = vmatpush1.msra.mxu0 0.0
    %2259 = vmatprep.subr.mxu0 0.0
    %2260 = vmatpush1.msra.mxu0 0.0
    %2261 = vmatprep.subr.mxu0 0.0
    %2262 = vmatpush1.msra.mxu0 0.0
    %2263 = vmatprep.subr.mxu0 0.0
    %2264 = vmatpush1.msra.mxu0 0.0
    %2265 = vmatprep.subr.mxu0 0.0
    %2266 = vmatpush1.msra.mxu0 0.0
    %2267 = vmatprep.subr.mxu0 0.0
    %2268 = vmatpush1.msra.mxu0 0.0
    %2269 = vmatprep.subr.mxu0 0.0
    %2270 = vmatpush1.msra.mxu0 0.0
    %2271 = vmatprep.subr.mxu0 0.0
    %2272 = vmatpush1.msra.mxu0 0.0
    %2273 = vmatprep.subr.mxu0 0.0
    %2274 = vmatpush1.msra.mxu0 0.0
    %2275 = vmatprep.subr.mxu0 0.0
    %2276 = vmatpush1.msra.mxu0 0.0
    %2277 = vmatprep.subr.mxu0 0.0
    %2278 = vmatpush1.msra.mxu0 0.0
    %2279 = vmatprep.subr.mxu0 0.0
    %2280 = vmatpush1.msra.mxu0 0.0
    %2281 = vmatprep.subr.mxu0 0.0
    %2282 = vmatpush1.msra.mxu0 0.0
    %2283 = vmatprep.subr.mxu0 0.0
    %2284 = vmatpush1.msra.mxu0 0.0
    %2285 = vmatprep.subr.mxu0 0.0
    %2286 = vmatpush1.msra.mxu0 0.0
    %2287 = vmatprep.subr.mxu0 0.0
    %2288 = vmatpush1.msra.mxu0 0.0
    %2289 = vmatprep.subr.mxu0 0.0
    %2290 = vmatpush1.msra.mxu0 0.0
    %2291 = vmatprep.subr.mxu0 0.0
    %2292 = vmatpush1.msra.mxu0 0.0
    %2293 = vmatprep.mubr.f32.mxu0 0.0
    %2294 = vmatmul.mubr.f32.gmra.mrb[0].mxu0 %v2221
    %v2295 = vpop.f32.mrb[0].mxu0
    %v2296 = vadd.f32 0.0, %v2295
    %v2297 = vpop.f32.mrb[0].mxu0
    %2298 = vmatprep.mubr.f32.mxu0 0.0
    %2299 = vmatmul.mubr.f32.gmra.mrb[0].mxu0 %v2224
    %v2300 = vpop.f32.mrb[0].mxu0
    %v2301 = vadd.f32 0.0, %v2300
    %v2302 = vpop.f32.mrb[0].mxu0
    %2303 = vdwg.mxu0
    %v2305 = vsel %vm2219, %v2155, 0
    %v2308 = vsel %vm2219, %v2160, 0
    %v2311 = vsel %vm650, %v2210, 0
    %2313 = vmatprep.subr.mxu0 0.0
    %2314 = vmatpush1.msra.mxu0 %v2203
    %2315 = vmatprep.subr.mxu0 0.0
    %2316 = vmatpush1.msra.mxu0 %v2204
    %2317 = vmatprep.subr.mxu0 0.0
    %2318 = vmatpush1.msra.mxu0 %v2205
    %2319 = vmatprep.subr.mxu0 0.0
    %2320 = vmatpush1.msra.mxu0 %v2206
    %2321 = vmatprep.subr.mxu0 0.0
    %2322 = vmatpush1.msra.mxu0 %v2207
    %2323 = vmatprep.subr.mxu0 0.0
    %2324 = vmatpush1.msra.mxu0 %v2208
    %2325 = vmatprep.subr.mxu0 0.0
    %2326 = vmatpush1.msra.mxu0 %v2209
    %2327 = vmatprep.subr.mxu0 0.0
    %2328 = vmatpush1.msra.mxu0 %v2311
    %2329 = vmatprep.subr.mxu0 0.0
    %2330 = vmatpush1.msra.mxu0 0.0
    %2331 = vmatprep.subr.mxu0 0.0
    %2332 = vmatpush1.msra.mxu0 0.0
    %2333 = vmatprep.subr.mxu0 0.0
    %2334 = vmatpush1.msra.mxu0 0.0
    %2335 = vmatprep.subr.mxu0 0.0
    %2336 = vmatpush1.msra.mxu0 0.0
    %2337 = vmatprep.subr.mxu0 0.0
    %2338 = vmatpush1.msra.mxu0 0.0
    %2339 = vmatprep.subr.mxu0 0.0
    %2340 = vmatpush1.msra.mxu0 0.0
    %2341 = vmatprep.subr.mxu0 0.0
    %2342 = vmatpush1.msra.mxu0 0.0
    %2343 = vmatprep.subr.mxu0 0.0
    %2344 = vmatpush1.msra.mxu0 0.0
    %2345 = vmatprep.subr.mxu0 0.0
    %2346 = vmatpush1.msra.mxu0 0.0
    %2347 = vmatprep.subr.mxu0 0.0
    %2348 = vmatpush1.msra.mxu0 0.0
    %2349 = vmatprep.subr.mxu0 0.0
    %2350 = vmatpush1.msra.mxu0 0.0
    %2351 = vmatprep.subr.mxu0 0.0
    %2352 = vmatpush1.msra.mxu0 0.0
    %2353 = vmatprep.subr.mxu0 0.0
    %2354 = vmatpush1.msra.mxu0 0.0
    %2355 = vmatprep.subr.mxu0 0.0
    %2356 = vmatpush1.msra.mxu0 0.0
    %2357 = vmatprep.subr.mxu0 0.0
    %2358 = vmatpush1.msra.mxu0 0.0
    %2359 = vmatprep.subr.mxu0 0.0
    %2360 = vmatpush1.msra.mxu0 0.0
    %2361 = vmatprep.subr.mxu0 0.0
    %2362 = vmatpush1.msra.mxu0 0.0
    %2363 = vmatprep.subr.mxu0 0.0
    %2364 = vmatpush1.msra.mxu0 0.0
    %2365 = vmatprep.subr.mxu0 0.0
    %2366 = vmatpush1.msra.mxu0 0.0
    %2367 = vmatprep.subr.mxu0 0.0
    %2368 = vmatpush1.msra.mxu0 0.0
    %2369 = vmatprep.subr.mxu0 0.0
    %2370 = vmatpush1.msra.mxu0 0.0
    %2371 = vmatprep.subr.mxu0 0.0
    %2372 = vmatpush1.msra.mxu0 0.0
    %2373 = vmatprep.subr.mxu0 0.0
    %2374 = vmatpush1.msra.mxu0 0.0
    %2375 = vmatprep.subr.mxu0 0.0
    %2376 = vmatpush1.msra.mxu0 0.0
    %2377 = vmatprep.mubr.f32.mxu0 0.0
    %2378 = vmatmul.mubr.f32.gmra.mrb[0].mxu0 %v2305
    %v2379 = vpop.f32.mrb[0].mxu0
    %v2380 = vadd.f32 %v2296, %v2379
    %v2381 = vpop.f32.mrb[0].mxu0
    %2382 = vmatprep.mubr.f32.mxu0 0.0
    %2383 = vmatmul.mubr.f32.gmra.mrb[0].mxu0 %v2308
    %v2384 = vpop.f32.mrb[0].mxu0
    %v2385 = vadd.f32 %v2301, %v2384
    %v2386 = vpop.f32.mrb[0].mxu0
    %2387 = vdwg.mxu0
    %v2388 = vld [vmem:[#allocation5 + $0x4a8] sm:$0xff]
    %v2389 = vld [vmem:[#allocation5 + $0x4b0] sm:$0xff]
    %v2390 = vld [vmem:[#allocation5 + $0x4b8] sm:$0xff]
    %v2391 = vld [vmem:[#allocation5 + $0x4c0] sm:$0xff]
    %v2392 = vld [vmem:[#allocation5 + $0x4c8] sm:$0xff]
    %v2393 = vld [vmem:[#allocation5 + $0x4d0] sm:$0xff]
    %v2394 = vld [vmem:[#allocation5 + $0x4d8] sm:$0xff]
    %v2395 = vld [vmem:[#allocation5 + $0x4e0] sm:$0xf]
    %v2397 = vsel %vm2219, %v2175, 0
    %v2400 = vsel %vm2219, %v2180, 0
    %v2403 = vsel %vm650, %v2395, 0
    %2405 = vmatprep.subr.mxu0 0.0
    %2406 = vmatpush1.msra.mxu0 %v2388
    %2407 = vmatprep.subr.mxu0 0.0
    %2408 = vmatpush1.msra.mxu0 %v2389
    %2409 = vmatprep.subr.mxu0 0.0
    %2410 = vmatpush1.msra.mxu0 %v2390
    %2411 = vmatprep.subr.mxu0 0.0
    %2412 = vmatpush1.msra.mxu0 %v2391
    %2413 = vmatprep.subr.mxu0 0.0
    %2414 = vmatpush1.msra.mxu0 %v2392
    %2415 = vmatprep.subr.mxu0 0.0
    %2416 = vmatpush1.msra.mxu0 %v2393
    %2417 = vmatprep.subr.mxu0 0.0
    %2418 = vmatpush1.msra.mxu0 %v2394
    %2419 = vmatprep.subr.mxu0 0.0
    %2420 = vmatpush1.msra.mxu0 %v2403
    %2421 = vmatprep.subr.mxu0 0.0
    %2422 = vmatpush1.msra.mxu0 0.0
    %2423 = vmatprep.subr.mxu0 0.0
    %2424 = vmatpush1.msra.mxu0 0.0
    %2425 = vmatprep.subr.mxu0 0.0
    %2426 = vmatpush1.msra.mxu0 0.0
    %2427 = vmatprep.subr.mxu0 0.0
    %2428 = vmatpush1.msra.mxu0 0.0
    %2429 = vmatprep.subr.mxu0 0.0
    %2430 = vmatpush1.msra.mxu0 0.0
    %2431 = vmatprep.subr.mxu0 0.0
    %2432 = vmatpush1.msra.mxu0 0.0
    %2433 = vmatprep.subr.mxu0 0.0
    %2434 = vmatpush1.msra.mxu0 0.0
    %2435 = vmatprep.subr.mxu0 0.0
    %2436 = vmatpush1.msra.mxu0 0.0
    %2437 = vmatprep.subr.mxu0 0.0
    %2438 = vmatpush1.msra.mxu0 0.0
    %2439 = vmatprep.subr.mxu0 0.0
    %2440 = vmatpush1.msra.mxu0 0.0
    %2441 = vmatprep.subr.mxu0 0.0
    %2442 = vmatpush1.msra.mxu0 0.0
    %2443 = vmatprep.subr.mxu0 0.0
    %2444 = vmatpush1.msra.mxu0 0.0
    %2445 = vmatprep.subr.mxu0 0.0
    %2446 = vmatpush1.msra.mxu0 0.0
    %2447 = vmatprep.subr.mxu0 0.0
    %2448 = vmatpush1.msra.mxu0 0.0
    %2449 = vmatprep.subr.mxu0 0.0
    %2450 = vmatpush1.msra.mxu0 0.0
    %2451 = vmatprep.subr.mxu0 0.0
    %2452 = vmatpush1.msra.mxu0 0.0
    %2453 = vmatprep.subr.mxu0 0.0
    %2454 = vmatpush1.msra.mxu0 0.0
    %2455 = vmatprep.subr.mxu0 0.0
    %2456 = vmatpush1.msra.mxu0 0.0
    %2457 = vmatprep.subr.mxu0 0.0
    %2458 = vmatpush1.msra.mxu0 0.0
    %2459 = vmatprep.subr.mxu0 0.0
    %2460 = vmatpush1.msra.mxu0 0.0
    %2461 = vmatprep.subr.mxu0 0.0
    %2462 = vmatpush1.msra.mxu0 0.0
    %2463 = vmatprep.subr.mxu0 0.0
    %2464 = vmatpush1.msra.mxu0 0.0
    %2465 = vmatprep.subr.mxu0 0.0
    %2466 = vmatpush1.msra.mxu0 0.0
    %2467 = vmatprep.subr.mxu0 0.0
    %2468 = vmatpush1.msra.mxu0 0.0
    %2469 = vmatprep.mubr.f32.mxu0 0.0
    %2470 = vmatmul.mubr.f32.gmra.mrb[0].mxu0 %v2397
    %v2471 = vpop.f32.mrb[0].mxu0
    %v2472 = vadd.f32 0.0, %v2471
    %v2473 = vpop.f32.mrb[0].mxu0
    %2474 = vmatprep.mubr.f32.mxu0 0.0
    %2475 = vmatmul.mubr.f32.gmra.mrb[0].mxu0 %v2400
    %v2476 = vpop.f32.mrb[0].mxu0
    %v2477 = vadd.f32 0.0, %v2476
    %v2478 = vpop.f32.mrb[0].mxu0
    %2479 = vdwg.mxu0
    %v2480 = vadd.f32 %v2380, %v2472
    %v2481 = vadd.f32 %v2385, %v2477
    %v2482 = vld [vmem:[#allocation5 + $0x4e8] sm:$0xff]
    %v2483 = vld [vmem:[#allocation5 + $0x4f0] sm:$0xff]
    %v2484 = vld [vmem:[#allocation5 + $0x4f8] sm:$0xff]
    %v2485 = vld [vmem:[#allocation5 + $0x500] sm:$0xff]
    %v2486 = vld [vmem:[#allocation5 + $0x508] sm:$0xff]
    %v2487 = vld [vmem:[#allocation5 + $0x510] sm:$0xff]
    %v2488 = vld [vmem:[#allocation5 + $0x518] sm:$0xff]
    %v2489 = vld [vmem:[#allocation5 + $0x520] sm:$0xf]
    %v2491 = vsel %vm2219, %v2185, 0
    %v2494 = vsel %vm2219, %v2190, 0
    %v2497 = vsel %vm650, %v2489, 0
    %2499 = vmatprep.subr.mxu0 0.0
    %2500 = vmatpush1.msra.mxu0 %v2482
    %2501 = vmatprep.subr.mxu0 0.0
    %2502 = vmatpush1.msra.mxu0 %v2483
    %2503 = vmatprep.subr.mxu0 0.0
    %2504 = vmatpush1.msra.mxu0 %v2484
    %2505 = vmatprep.subr.mxu0 0.0
    %2506 = vmatpush1.msra.mxu0 %v2485
    %2507 = vmatprep.subr.mxu0 0.0
    %2508 = vmatpush1.msra.mxu0 %v2486
    %2509 = vmatprep.subr.mxu0 0.0
    %2510 = vmatpush1.msra.mxu0 %v2487
    %2511 = vmatprep.subr.mxu0 0.0
    %2512 = vmatpush1.msra.mxu0 %v2488
    %2513 = vmatprep.subr.mxu0 0.0
    %2514 = vmatpush1.msra.mxu0 %v2497
    %2515 = vmatprep.subr.mxu0 0.0
    %2516 = vmatpush1.msra.mxu0 0.0
    %2517 = vmatprep.subr.mxu0 0.0
    %2518 = vmatpush1.msra.mxu0 0.0
    %2519 = vmatprep.subr.mxu0 0.0
    %2520 = vmatpush1.msra.mxu0 0.0
    %2521 = vmatprep.subr.mxu0 0.0
    %2522 = vmatpush1.msra.mxu0 0.0
    %2523 = vmatprep.subr.mxu0 0.0
    %2524 = vmatpush1.msra.mxu0 0.0
    %2525 = vmatprep.subr.mxu0 0.0
    %2526 = vmatpush1.msra.mxu0 0.0
    %2527 = vmatprep.subr.mxu0 0.0
    %2528 = vmatpush1.msra.mxu0 0.0
    %2529 = vmatprep.subr.mxu0 0.0
    %2530 = vmatpush1.msra.mxu0 0.0
    %2531 = vmatprep.subr.mxu0 0.0
    %2532 = vmatpush1.msra.mxu0 0.0
    %2533 = vmatprep.subr.mxu0 0.0
    %2534 = vmatpush1.msra.mxu0 0.0
    %2535 = vmatprep.subr.mxu0 0.0
    %2536 = vmatpush1.msra.mxu0 0.0
    %2537 = vmatprep.subr.mxu0 0.0
    %2538 = vmatpush1.msra.mxu0 0.0
    %2539 = vmatprep.subr.mxu0 0.0
    %2540 = vmatpush1.msra.mxu0 0.0
    %2541 = vmatprep.subr.mxu0 0.0
    %2542 = vmatpush1.msra.mxu0 0.0
    %2543 = vmatprep.subr.mxu0 0.0
    %2544 = vmatpush1.msra.mxu0 0.0
    %2545 = vmatprep.subr.mxu0 0.0
    %2546 = vmatpush1.msra.mxu0 0.0
    %2547 = vmatprep.subr.mxu0 0.0
    %2548 = vmatpush1.msra.mxu0 0.0
    %2549 = vmatprep.subr.mxu0 0.0
    %2550 = vmatpush1.msra.mxu0 0.0
    %2551 = vmatprep.subr.mxu0 0.0
    %2552 = vmatpush1.msra.mxu0 0.0
    %2553 = vmatprep.subr.mxu0 0.0
    %2554 = vmatpush1.msra.mxu0 0.0
    %2555 = vmatprep.subr.mxu0 0.0
    %2556 = vmatpush1.msra.mxu0 0.0
    %2557 = vmatprep.subr.mxu0 0.0
    %2558 = vmatpush1.msra.mxu0 0.0
    %2559 = vmatprep.subr.mxu0 0.0
    %2560 = vmatpush1.msra.mxu0 0.0
    %2561 = vmatprep.subr.mxu0 0.0
    %2562 = vmatpush1.msra.mxu0 0.0
    %2563 = vmatprep.mubr.f32.mxu0 0.0
    %2564 = vmatmul.mubr.f32.gmra.mrb[0].mxu0 %v2491
    %v2565 = vpop.f32.mrb[0].mxu0
    %v2566 = vadd.f32 0.0, %v2565
    %v2567 = vpop.f32.mrb[0].mxu0
    %2568 = vmatprep.mubr.f32.mxu0 0.0
    %2569 = vmatmul.mubr.f32.gmra.mrb[0].mxu0 %v2494
    %v2570 = vpop.f32.mrb[0].mxu0
    %v2571 = vadd.f32 0.0, %v2570
    %v2572 = vpop.f32.mrb[0].mxu0
    %2573 = vdwg.mxu0
    %v2574 = vadd.f32 %v2480, %v2566
    %v2575 = vadd.f32 %v2481, %v2571
    %v2576 = vld [vmem:[#allocation5 + $0x528] sm:$0xff]
    %v2577 = vld [vmem:[#allocation5 + $0x530] sm:$0xff]
    %v2578 = vld [vmem:[#allocation5 + $0x538] sm:$0xff]
    %v2579 = vld [vmem:[#allocation5 + $0x540] sm:$0xff]
    %v2580 = vld [vmem:[#allocation5 + $0x548] sm:$0xff]
    %v2581 = vld [vmem:[#allocation5 + $0x550] sm:$0xff]
    %v2582 = vld [vmem:[#allocation5 + $0x558] sm:$0xff]
    %v2583 = vld [vmem:[#allocation5 + $0x560] sm:$0xf]
    %v2585 = vsel %vm2219, %v2195, 0
    %v2588 = vsel %vm2219, %v2200, 0
    %v2591 = vsel %vm650, %v2583, 0
    %2593 = vmatprep.subr.mxu0 0.0
    %2594 = vmatpush1.msra.mxu0 %v2576
    %2595 = vmatprep.subr.mxu0 0.0
    %2596 = vmatpush1.msra.mxu0 %v2577
    %2597 = vmatprep.subr.mxu0 0.0
    %2598 = vmatpush1.msra.mxu0 %v2578
    %2599 = vmatprep.subr.mxu0 0.0
    %2600 = vmatpush1.msra.mxu0 %v2579
    %2601 = vmatprep.subr.mxu0 0.0
    %2602 = vmatpush1.msra.mxu0 %v2580
    %2603 = vmatprep.subr.mxu0 0.0
    %2604 = vmatpush1.msra.mxu0 %v2581
    %2605 = vmatprep.subr.mxu0 0.0
    %2606 = vmatpush1.msra.mxu0 %v2582
    %2607 = vmatprep.subr.mxu0 0.0
    %2608 = vmatpush1.msra.mxu0 %v2591
    %2609 = vmatprep.subr.mxu0 0.0
    %2610 = vmatpush1.msra.mxu0 0.0
    %2611 = vmatprep.subr.mxu0 0.0
    %2612 = vmatpush1.msra.mxu0 0.0
    %2613 = vmatprep.subr.mxu0 0.0
    %2614 = vmatpush1.msra.mxu0 0.0
    %2615 = vmatprep.subr.mxu0 0.0
    %2616 = vmatpush1.msra.mxu0 0.0
    %2617 = vmatprep.subr.mxu0 0.0
    %2618 = vmatpush1.msra.mxu0 0.0
    %2619 = vmatprep.subr.mxu0 0.0
    %2620 = vmatpush1.msra.mxu0 0.0
    %2621 = vmatprep.subr.mxu0 0.0
    %2622 = vmatpush1.msra.mxu0 0.0
    %2623 = vmatprep.subr.mxu0 0.0
    %2624 = vmatpush1.msra.mxu0 0.0
    %2625 = vmatprep.subr.mxu0 0.0
    %2626 = vmatpush1.msra.mxu0 0.0
    %2627 = vmatprep.subr.mxu0 0.0
    %2628 = vmatpush1.msra.mxu0 0.0
    %2629 = vmatprep.subr.mxu0 0.0
    %2630 = vmatpush1.msra.mxu0 0.0
    %2631 = vmatprep.subr.mxu0 0.0
    %2632 = vmatpush1.msra.mxu0 0.0
    %2633 = vmatprep.subr.mxu0 0.0
    %2634 = vmatpush1.msra.mxu0 0.0
    %2635 = vmatprep.subr.mxu0 0.0
    %2636 = vmatpush1.msra.mxu0 0.0
    %2637 = vmatprep.subr.mxu0 0.0
    %2638 = vmatpush1.msra.mxu0 0.0
    %2639 = vmatprep.subr.mxu0 0.0
    %2640 = vmatpush1.msra.mxu0 0.0
    %2641 = vmatprep.subr.mxu0 0.0
    %2642 = vmatpush1.msra.mxu0 0.0
    %2643 = vmatprep.subr.mxu0 0.0
    %2644 = vmatpush1.msra.mxu0 0.0
    %2645 = vmatprep.subr.mxu0 0.0
    %2646 = vmatpush1.msra.mxu0 0.0
    %2647 = vmatprep.subr.mxu0 0.0
    %2648 = vmatpush1.msra.mxu0 0.0
    %2649 = vmatprep.subr.mxu0 0.0
    %2650 = vmatpush1.msra.mxu0 0.0
    %2651 = vmatprep.subr.mxu0 0.0
    %2652 = vmatpush1.msra.mxu0 0.0
    %2653 = vmatprep.subr.mxu0 0.0
    %2654 = vmatpush1.msra.mxu0 0.0
    %2655 = vmatprep.subr.mxu0 0.0
    %2656 = vmatpush1.msra.mxu0 0.0
    %2657 = vmatprep.mubr.f32.mxu0 0.0
    %2658 = vmatmul.mubr.f32.gmra.mrb[0].mxu0 %v2585
    %v2659 = vpop.f32.mrb[0].mxu0
    %v2660 = vadd.f32 0.0, %v2659
    %v2661 = vpop.f32.mrb[0].mxu0
    %2662 = vmatprep.mubr.f32.mxu0 0.0
    %2663 = vmatmul.mubr.f32.gmra.mrb[0].mxu0 %v2588
    %v2664 = vpop.f32.mrb[0].mxu0
    %v2665 = vadd.f32 0.0, %v2664
    %v2666 = vpop.f32.mrb[0].mxu0
    %2667 = vdwg.mxu0
    %v2668 = vadd.f32 %v2574, %v2660
    %v2669 = vadd.f32 %v2575, %v2665
    %v2670 = vld [vmem:[#allocation5 + $0x568] sm:$0x1]
    %v2671 = vlaneseq
    %v2672 = vshrl.u32 %v2671, 7
    %v2673 = vsub.s32 0, %v2672
    %v2674 = vrot.slane %v2670, %v2673
    %v2675 = vadd.f32 %v2668, %v2674
    %v2676 = vadd.f32 %v2669, %v2674
    %v2677 = vmax.f32 %v2675, 0.0
    %v2678 = vmax.f32 %v2676, 0.0
    %v2679 = vld [vmem:[#allocation5 + $0x570] sm:$0xff]
    %v2680 = vld [vmem:[#allocation5 + $0x578] sm:$0xff]
    %v2681 = vld [vmem:[#allocation5 + $0x580] sm:$0xff]
    %v2682 = vld [vmem:[#allocation5 + $0x588] sm:$0xf]
    %v2684 = vsel %vm625, %v2677, 0
    %v2687 = vsel %vm625, %v2678, 0
    %v2690 = vsel %vm650, %v2682, 0
    %2692 = vmatprep.subr.mxu0 0.0
    %2693 = vmatpush1.msra.mxu0 %v2679
    %2694 = vmatprep.subr.mxu0 0.0
    %2695 = vmatpush1.msra.mxu0 %v2680
    %2696 = vmatprep.subr.mxu0 0.0
    %2697 = vmatpush1.msra.mxu0 %v2681
    %2698 = vmatprep.subr.mxu0 0.0
    %2699 = vmatpush1.msra.mxu0 %v2690
    %2700 = vmatprep.subr.mxu0 0.0
    %2701 = vmatpush1.msra.mxu0 0.0
    %2702 = vmatprep.subr.mxu0 0.0
    %2703 = vmatpush1.msra.mxu0 0.0
    %2704 = vmatprep.subr.mxu0 0.0
    %2705 = vmatpush1.msra.mxu0 0.0
    %2706 = vmatprep.subr.mxu0 0.0
    %2707 = vmatpush1.msra.mxu0 0.0
    %2708 = vmatprep.subr.mxu0 0.0
    %2709 = vmatpush1.msra.mxu0 0.0
    %2710 = vmatprep.subr.mxu0 0.0
    %2711 = vmatpush1.msra.mxu0 0.0
    %2712 = vmatprep.subr.mxu0 0.0
    %2713 = vmatpush1.msra.mxu0 0.0
    %2714 = vmatprep.subr.mxu0 0.0
    %2715 = vmatpush1.msra.mxu0 0.0
    %2716 = vmatprep.subr.mxu0 0.0
    %2717 = vmatpush1.msra.mxu0 0.0
    %2718 = vmatprep.subr.mxu0 0.0
    %2719 = vmatpush1.msra.mxu0 0.0
    %2720 = vmatprep.subr.mxu0 0.0
    %2721 = vmatpush1.msra.mxu0 0.0
    %2722 = vmatprep.subr.mxu0 0.0
    %2723 = vmatpush1.msra.mxu0 0.0
    %2724 = vmatprep.subr.mxu0 0.0
    %2725 = vmatpush1.msra.mxu0 0.0
    %2726 = vmatprep.subr.mxu0 0.0
    %2727 = vmatpush1.msra.mxu0 0.0
    %2728 = vmatprep.subr.mxu0 0.0
    %2729 = vmatpush1.msra.mxu0 0.0
    %2730 = vmatprep.subr.mxu0 0.0
    %2731 = vmatpush1.msra.mxu0 0.0
    %2732 = vmatprep.subr.mxu0 0.0
    %2733 = vmatpush1.msra.mxu0 0.0
    %2734 = vmatprep.subr.mxu0 0.0
    %2735 = vmatpush1.msra.mxu0 0.0
    %2736 = vmatprep.subr.mxu0 0.0
    %2737 = vmatpush1.msra.mxu0 0.0
    %2738 = vmatprep.subr.mxu0 0.0
    %2739 = vmatpush1.msra.mxu0 0.0
    %2740 = vmatprep.subr.mxu0 0.0
    %2741 = vmatpush1.msra.mxu0 0.0
    %2742 = vmatprep.subr.mxu0 0.0
    %2743 = vmatpush1.msra.mxu0 0.0
    %2744 = vmatprep.subr.mxu0 0.0
    %2745 = vmatpush1.msra.mxu0 0.0
    %2746 = vmatprep.subr.mxu0 0.0
    %2747 = vmatpush1.msra.mxu0 0.0
    %2748 = vmatprep.subr.mxu0 0.0
    %2749 = vmatpush1.msra.mxu0 0.0
    %2750 = vmatprep.subr.mxu0 0.0
    %2751 = vmatpush1.msra.mxu0 0.0
    %2752 = vmatprep.subr.mxu0 0.0
    %2753 = vmatpush1.msra.mxu0 0.0
    %2754 = vmatprep.subr.mxu0 0.0
    %2755 = vmatpush1.msra.mxu0 0.0
    %2756 = vmatprep.mubr.f32.mxu0 0.0
    %2757 = vmatmul.mubr.f32.gmra.mrb[0].mxu0 %v2684
    %v2758 = vpop.f32.mrb[0].mxu0
    %v2759 = vadd.f32 0.0, %v2758
    %v2760 = vpop.f32.mrb[0].mxu0
    %2761 = vmatprep.mubr.f32.mxu0 0.0
    %2762 = vmatmul.mubr.f32.gmra.mrb[0].mxu0 %v2687
    %v2763 = vpop.f32.mrb[0].mxu0
    %v2764 = vadd.f32 0.0, %v2763
    %v2765 = vpop.f32.mrb[0].mxu0
    %2766 = vdwg.mxu0
    %v2767 = vld [vmem:[#allocation5 + $0x590] sm:$0xff]
    %v2768 = vld [vmem:[#allocation5 + $0x598] sm:$0xff]
    %v2769 = vld [vmem:[#allocation5 + $0x5a0] sm:$0xff]
    %v2770 = vld [vmem:[#allocation5 + $0x5a8] sm:$0xf]
    %v2772 = vsel %vm650, %v2770, 0
    %2774 = vmatprep.subr.mxu0 0.0
    %2775 = vmatpush1.msra.mxu0 %v2767
    %2776 = vmatprep.subr.mxu0 0.0
    %2777 = vmatpush1.msra.mxu0 %v2768
    %2778 = vmatprep.subr.mxu0 0.0
    %2779 = vmatpush1.msra.mxu0 %v2769
    %2780 = vmatprep.subr.mxu0 0.0
    %2781 = vmatpush1.msra.mxu0 %v2772
    %2782 = vmatprep.subr.mxu0 0.0
    %2783 = vmatpush1.msra.mxu0 0.0
    %2784 = vmatprep.subr.mxu0 0.0
    %2785 = vmatpush1.msra.mxu0 0.0
    %2786 = vmatprep.subr.mxu0 0.0
    %2787 = vmatpush1.msra.mxu0 0.0
    %2788 = vmatprep.subr.mxu0 0.0
    %2789 = vmatpush1.msra.mxu0 0.0
    %2790 = vmatprep.subr.mxu0 0.0
    %2791 = vmatpush1.msra.mxu0 0.0
    %2792 = vmatprep.subr.mxu0 0.0
    %2793 = vmatpush1.msra.mxu0 0.0
    %2794 = vmatprep.subr.mxu0 0.0
    %2795 = vmatpush1.msra.mxu0 0.0
    %2796 = vmatprep.subr.mxu0 0.0
    %2797 = vmatpush1.msra.mxu0 0.0
    %2798 = vmatprep.subr.mxu0 0.0
    %2799 = vmatpush1.msra.mxu0 0.0
    %2800 = vmatprep.subr.mxu0 0.0
    %2801 = vmatpush1.msra.mxu0 0.0
    %2802 = vmatprep.subr.mxu0 0.0
    %2803 = vmatpush1.msra.mxu0 0.0
    %2804 = vmatprep.subr.mxu0 0.0
    %2805 = vmatpush1.msra.mxu0 0.0
    %2806 = vmatprep.subr.mxu0 0.0
    %2807 = vmatpush1.msra.mxu0 0.0
    %2808 = vmatprep.subr.mxu0 0.0
    %2809 = vmatpush1.msra.mxu0 0.0
    %2810 = vmatprep.subr.mxu0 0.0
    %2811 = vmatpush1.msra.mxu0 0.0
    %2812 = vmatprep.subr.mxu0 0.0
    %2813 = vmatpush1.msra.mxu0 0.0
    %2814 = vmatprep.subr.mxu0 0.0
    %2815 = vmatpush1.msra.mxu0 0.0
    %2816 = vmatprep.subr.mxu0 0.0
    %2817 = vmatpush1.msra.mxu0 0.0
    %2818 = vmatprep.subr.mxu0 0.0
    %2819 = vmatpush1.msra.mxu0 0.0
    %2820 = vmatprep.subr.mxu0 0.0
    %2821 = vmatpush1.msra.mxu0 0.0
    %2822 = vmatprep.subr.mxu0 0.0
    %2823 = vmatpush1.msra.mxu0 0.0
    %2824 = vmatprep.subr.mxu0 0.0
    %2825 = vmatpush1.msra.mxu0 0.0
    %2826 = vmatprep.subr.mxu0 0.0
    %2827 = vmatpush1.msra.mxu0 0.0
    %2828 = vmatprep.subr.mxu0 0.0
    %2829 = vmatpush1.msra.mxu0 0.0
    %2830 = vmatprep.subr.mxu0 0.0
    %2831 = vmatpush1.msra.mxu0 0.0
    %2832 = vmatprep.subr.mxu0 0.0
    %2833 = vmatpush1.msra.mxu0 0.0
    %2834 = vmatprep.subr.mxu0 0.0
    %2835 = vmatpush1.msra.mxu0 0.0
    %2836 = vmatprep.subr.mxu0 0.0
    %2837 = vmatpush1.msra.mxu0 0.0
    %2838 = vmatprep.mubr.f32.mxu0 0.0
    %2839 = vmatmul.mubr.f32.gmra.mrb[0].mxu0 %v2684
    %v2840 = vpop.f32.mrb[0].mxu0
    %v2841 = vadd.f32 0.0, %v2840
    %v2842 = vpop.f32.mrb[0].mxu0
    %2843 = vmatprep.mubr.f32.mxu0 0.0
    %2844 = vmatmul.mubr.f32.gmra.mrb[0].mxu0 %v2687
    %v2845 = vpop.f32.mrb[0].mxu0
    %v2846 = vadd.f32 0.0, %v2845
    %v2847 = vpop.f32.mrb[0].mxu0
    %2848 = vdwg.mxu0
    %v2849 = vmax.f32 %v2759, %v2841
    %v2850 = vmax.f32 %v2764, %v2846
    %v2851 = vld [vmem:[#allocation5 + $0x5b0] sm:$0xff]
    %v2852 = vld [vmem:[#allocation5 + $0x5b8] sm:$0xff]
    %vm2853 = vcmask 130048
    %v2855 = vsel %vm2853, %v2851, 0
    %v2858 = vsel %vm2853, %v2852, 0
    %2860 = vmatprep.subr.mxu0 0.0
    %2861 = vmatpush1.msra.mxu0 %v2849
    %2862 = vmatprep.subr.mxu0 0.0
    %2863 = vmatpush1.msra.mxu0 %v2850
    %2864 = vmatprep.subr.mxu0 0.0
    %2865 = vmatpush1.msra.mxu0 0.0
    %2866 = vmatprep.subr.mxu0 0.0
    %2867 = vmatpush1.msra.mxu0 0.0
    %2868 = vmatprep.subr.mxu0 0.0
    %2869 = vmatpush1.msra.mxu0 0.0
    %2870 = vmatprep.subr.mxu0 0.0
    %2871 = vmatpush1.msra.mxu0 0.0
    %2872 = vmatprep.subr.mxu0 0.0
    %2873 = vmatpush1.msra.mxu0 0.0
    %2874 = vmatprep.subr.mxu0 0.0
    %2875 = vmatpush1.msra.mxu0 0.0
    %2876 = vmatprep.subr.mxu0 0.0
    %2877 = vmatpush1.msra.mxu0 0.0
    %2878 = vmatprep.subr.mxu0 0.0
    %2879 = vmatpush1.msra.mxu0 0.0
    %2880 = vmatprep.subr.mxu0 0.0
    %2881 = vmatpush1.msra.mxu0 0.0
    %2882 = vmatprep.subr.mxu0 0.0
    %2883 = vmatpush1.msra.mxu0 0.0
    %2884 = vmatprep.subr.mxu0 0.0
    %2885 = vmatpush1.msra.mxu0 0.0
    %2886 = vmatprep.subr.mxu0 0.0
    %2887 = vmatpush1.msra.mxu0 0.0
    %2888 = vmatprep.subr.mxu0 0.0
    %2889 = vmatpush1.msra.mxu0 0.0
    %2890 = vmatprep.subr.mxu0 0.0
    %2891 = vmatpush1.msra.mxu0 0.0
    %2892 = vmatprep.subr.mxu0 0.0
    %2893 = vmatpush1.msra.mxu0 0.0
    %2894 = vmatprep.subr.mxu0 0.0
    %2895 = vmatpush1.msra.mxu0 0.0
    %2896 = vmatprep.subr.mxu0 0.0
    %2897 = vmatpush1.msra.mxu0 0.0
    %2898 = vmatprep.subr.mxu0 0.0
    %2899 = vmatpush1.msra.mxu0 0.0
    %2900 = vmatprep.subr.mxu0 0.0
    %2901 = vmatpush1.msra.mxu0 0.0
    %2902 = vmatprep.subr.mxu0 0.0
    %2903 = vmatpush1.msra.mxu0 0.0
    %2904 = vmatprep.subr.mxu0 0.0
    %2905 = vmatpush1.msra.mxu0 0.0
    %2906 = vmatprep.subr.mxu0 0.0
    %2907 = vmatpush1.msra.mxu0 0.0
    %2908 = vmatprep.subr.mxu0 0.0
    %2909 = vmatpush1.msra.mxu0 0.0
    %2910 = vmatprep.subr.mxu0 0.0
    %2911 = vmatpush1.msra.mxu0 0.0
    %2912 = vmatprep.subr.mxu0 0.0
    %2913 = vmatpush1.msra.mxu0 0.0
    %2914 = vmatprep.subr.mxu0 0.0
    %2915 = vmatpush1.msra.mxu0 0.0
    %2916 = vmatprep.subr.mxu0 0.0
    %2917 = vmatpush1.msra.mxu0 0.0
    %2918 = vmatprep.subr.mxu0 0.0
    %2919 = vmatpush1.msra.mxu0 0.0
    %2920 = vmatprep.subr.mxu0 0.0
    %2921 = vmatpush1.msra.mxu0 0.0
    %2922 = vmatprep.subr.mxu0 0.0
    %2923 = vmatpush1.msra.mxu0 0.0
    %2924 = vmatprep.mubr.f32.mxu0 0.0
    %2925 = vmatmul.mubr.f32.gmra.mrb[0].mxu0 %v2855
    %v2926 = vpop.f32.mrb[0].mxu0
    %v2927 = vadd.f32 0.0, %v2926
    %v2928 = vpop.f32.mrb[0].mxu0
    %2929 = vmatprep.mubr.f32.mxu0 0.0
    %2930 = vmatmul.mubr.f32.gmra.mrb[0].mxu0 %v2858
    %v2931 = vpop.f32.mrb[0].mxu0
    %v2932 = vadd.f32 0.0, %v2931
    %v2933 = vpop.f32.mrb[0].mxu0
    %2934 = vdwg.mxu0
    %v2935 = vmax.f32 %v2927, %v2932
    %v2936 = vld [vmem:[#allocation5 + $0x5c0] sm:$0xff]
    %v2937 = vld [vmem:[#allocation5 + $0x5c8] sm:$0xff]
    %v2938 = vld [vmem:[#allocation5 + $0x5d0] sm:$0xff]
    %vm2939 = vcmask 64512
    %v2941 = vsel %vm2939, %v2936, 0
    %v2944 = vsel %vm2939, %v2937, 0
    %v2947 = vsel %vm2939, %v2938, 0
    %2949 = vmatprep.subr.mxu0 0.0
    %2950 = vmatpush1.msra.mxu0 %v2935
    %2951 = vmatprep.subr.mxu0 0.0
    %2952 = vmatpush1.msra.mxu0 0.0
    %2953 = vmatprep.subr.mxu0 0.0
    %2954 = vmatpush1.msra.mxu0 0.0
    %2955 = vmatprep.subr.mxu0 0.0
    %2956 = vmatpush1.msra.mxu0 0.0
    %2957 = vmatprep.subr.mxu0 0.0
    %2958 = vmatpush1.msra.mxu0 0.0
    %2959 = vmatprep.subr.mxu0 0.0
    %2960 = vmatpush1.msra.mxu0 0.0
    %2961 = vmatprep.subr.mxu0 0.0
    %2962 = vmatpush1.msra.mxu0 0.0
    %2963 = vmatprep.subr.mxu0 0.0
    %2964 = vmatpush1.msra.mxu0 0.0
    %2965 = vmatprep.subr.mxu0 0.0
    %2966 = vmatpush1.msra.mxu0 0.0
    %2967 = vmatprep.subr.mxu0 0.0
    %2968 = vmatpush1.msra.mxu0 0.0
    %2969 = vmatprep.subr.mxu0 0.0
    %2970 = vmatpush1.msra.mxu0 0.0
    %2971 = vmatprep.subr.mxu0 0.0
    %2972 = vmatpush1.msra.mxu0 0.0
    %2973 = vmatprep.subr.mxu0 0.0
    %2974 = vmatpush1.msra.mxu0 0.0
    %2975 = vmatprep.subr.mxu0 0.0
    %2976 = vmatpush1.msra.mxu0 0.0
    %2977 = vmatprep.subr.mxu0 0.0
    %2978 = vmatpush1.msra.mxu0 0.0
    %2979 = vmatprep.subr.mxu0 0.0
    %2980 = vmatpush1.msra.mxu0 0.0
    %2981 = vmatprep.subr.mxu0 0.0
    %2982 = vmatpush1.msra.mxu0 0.0
    %2983 = vmatprep.subr.mxu0 0.0
    %2984 = vmatpush1.msra.mxu0 0.0
    %2985 = vmatprep.subr.mxu0 0.0
    %2986 = vmatpush1.msra.mxu0 0.0
    %2987 = vmatprep.subr.mxu0 0.0
    %2988 = vmatpush1.msra.mxu0 0.0
    %2989 = vmatprep.subr.mxu0 0.0
    %2990 = vmatpush1.msra.mxu0 0.0
    %2991 = vmatprep.subr.mxu0 0.0
    %2992 = vmatpush1.msra.mxu0 0.0
    %2993 = vmatprep.subr.mxu0 0.0
    %2994 = vmatpush1.msra.mxu0 0.0
    %2995 = vmatprep.subr.mxu0 0.0
    %2996 = vmatpush1.msra.mxu0 0.0
    %2997 = vmatprep.subr.mxu0 0.0
    %2998 = vmatpush1.msra.mxu0 0.0
    %2999 = vmatprep.subr.mxu0 0.0
    %3000 = vmatpush1.msra.mxu0 0.0
    %3001 = vmatprep.subr.mxu0 0.0
    %3002 = vmatpush1.msra.mxu0 0.0
    %3003 = vmatprep.subr.mxu0 0.0
    %3004 = vmatpush1.msra.mxu0 0.0
    %3005 = vmatprep.subr.mxu0 0.0
    %3006 = vmatpush1.msra.mxu0 0.0
    %3007 = vmatprep.subr.mxu0 0.0
    %3008 = vmatpush1.msra.mxu0 0.0
    %3009 = vmatprep.subr.mxu0 0.0
    %3010 = vmatpush1.msra.mxu0 0.0
    %3011 = vmatprep.subr.mxu0 0.0
    %3012 = vmatpush1.msra.mxu0 0.0
    %3013 = vmatprep.mubr.f32.mxu0 0.0
    %3014 = vmatmul.mubr.f32.gmra.mrb[0].mxu0 %v2941
    %v3015 = vpop.f32.mrb[0].mxu0
    %v3016 = vadd.f32 0.0, %v3015
    %v3017 = vpop.f32.mrb[0].mxu0
    %3018 = vmatprep.mubr.f32.mxu0 0.0
    %3019 = vmatmul.mubr.f32.gmra.mrb[0].mxu0 %v2944
    %v3020 = vpop.f32.mrb[0].mxu0
    %v3021 = vadd.f32 0.0, %v3020
    %v3022 = vpop.f32.mrb[0].mxu0
    %3023 = vmatprep.mubr.f32.mxu0 0.0
    %3024 = vmatmul.mubr.f32.gmra.mrb[0].mxu0 %v2947
    %v3025 = vpop.f32.mrb[0].mxu0
    %v3026 = vadd.f32 0.0, %v3025
    %v3027 = vpop.f32.mrb[0].mxu0
    %3028 = vdwg.mxu0
    %v3029 = vld [vmem:[#allocation5 + $0x5d8] sm:$0xff]
    %v3030 = vld [vmem:[#allocation5 + $0x5e0] sm:$0xf]
    %v3031 = vld [vmem:[#allocation5 + $0x5e8] sm:$0xff]
    %v3032 = vld [vmem:[#allocation5 + $0x5f0] sm:$0xf]
    %vm3033 = vcmask 97280
    %v3035 = vsel %vm3033, %v3021, 0
    %v3038 = vsel %vm650, %v3032, 0
    %3040 = vmatprep.subr.mxu0 0.0
    %3041 = vmatpush1.msra.mxu0 %v3031
    %3042 = vmatprep.subr.mxu0 0.0
    %3043 = vmatpush1.msra.mxu0 %v3038
    %3044 = vmatprep.subr.mxu0 0.0
    %3045 = vmatpush1.msra.mxu0 0.0
    %3046 = vmatprep.subr.mxu0 0.0
    %3047 = vmatpush1.msra.mxu0 0.0
    %3048 = vmatprep.subr.mxu0 0.0
    %3049 = vmatpush1.msra.mxu0 0.0
    %3050 = vmatprep.subr.mxu0 0.0
    %3051 = vmatpush1.msra.mxu0 0.0
    %3052 = vmatprep.subr.mxu0 0.0
    %3053 = vmatpush1.msra.mxu0 0.0
    %3054 = vmatprep.subr.mxu0 0.0
    %3055 = vmatpush1.msra.mxu0 0.0
    %3056 = vmatprep.subr.mxu0 0.0
    %3057 = vmatpush1.msra.mxu0 0.0
    %3058 = vmatprep.subr.mxu0 0.0
    %3059 = vmatpush1.msra.mxu0 0.0
    %3060 = vmatprep.subr.mxu0 0.0
    %3061 = vmatpush1.msra.mxu0 0.0
    %3062 = vmatprep.subr.mxu0 0.0
    %3063 = vmatpush1.msra.mxu0 0.0
    %3064 = vmatprep.subr.mxu0 0.0
    %3065 = vmatpush1.msra.mxu0 0.0
    %3066 = vmatprep.subr.mxu0 0.0
    %3067 = vmatpush1.msra.mxu0 0.0
    %3068 = vmatprep.subr.mxu0 0.0
    %3069 = vmatpush1.msra.mxu0 0.0
    %3070 = vmatprep.subr.mxu0 0.0
    %3071 = vmatpush1.msra.mxu0 0.0
    %3072 = vmatprep.subr.mxu0 0.0
    %3073 = vmatpush1.msra.mxu0 0.0
    %3074 = vmatprep.subr.mxu0 0.0
    %3075 = vmatpush1.msra.mxu0 0.0
    %3076 = vmatprep.subr.mxu0 0.0
    %3077 = vmatpush1.msra.mxu0 0.0
    %3078 = vmatprep.subr.mxu0 0.0
    %3079 = vmatpush1.msra.mxu0 0.0
    %3080 = vmatprep.subr.mxu0 0.0
    %3081 = vmatpush1.msra.mxu0 0.0
    %3082 = vmatprep.subr.mxu0 0.0
    %3083 = vmatpush1.msra.mxu0 0.0
    %3084 = vmatprep.subr.mxu0 0.0
    %3085 = vmatpush1.msra.mxu0 0.0
    %3086 = vmatprep.subr.mxu0 0.0
    %3087 = vmatpush1.msra.mxu0 0.0
    %3088 = vmatprep.subr.mxu0 0.0
    %3089 = vmatpush1.msra.mxu0 0.0
    %3090 = vmatprep.subr.mxu0 0.0
    %3091 = vmatpush1.msra.mxu0 0.0
    %3092 = vmatprep.subr.mxu0 0.0
    %3093 = vmatpush1.msra.mxu0 0.0
    %3094 = vmatprep.subr.mxu0 0.0
    %3095 = vmatpush1.msra.mxu0 0.0
    %3096 = vmatprep.subr.mxu0 0.0
    %3097 = vmatpush1.msra.mxu0 0.0
    %3098 = vmatprep.subr.mxu0 0.0
    %3099 = vmatpush1.msra.mxu0 0.0
    %3100 = vmatprep.subr.mxu0 0.0
    %3101 = vmatpush1.msra.mxu0 0.0
    %3102 = vmatprep.subr.mxu0 0.0
    %3103 = vmatpush1.msra.mxu0 0.0
    %3104 = vmatprep.mubr.f32.mxu0 0.0
    %3105 = vmatmul.mubr.f32.gmra.mrb[0].mxu0 %v3035
    %v3106 = vpop.f32.mrb[0].mxu0
    %v3107 = vadd.f32 0.0, %v3106
    %v3108 = vpop.f32.mrb[0].mxu0
    %3109 = vdwg.mxu0
    %v3111 = vsel %vm3033, %v3016, 0
    %v3114 = vsel %vm650, %v3030, 0
    %3116 = vmatprep.subr.mxu0 0.0
    %3117 = vmatpush1.msra.mxu0 %v3029
    %3118 = vmatprep.subr.mxu0 0.0
    %3119 = vmatpush1.msra.mxu0 %v3114
    %3120 = vmatprep.subr.mxu0 0.0
    %3121 = vmatpush1.msra.mxu0 0.0
    %3122 = vmatprep.subr.mxu0 0.0
    %3123 = vmatpush1.msra.mxu0 0.0
    %3124 = vmatprep.subr.mxu0 0.0
    %3125 = vmatpush1.msra.mxu0 0.0
    %3126 = vmatprep.subr.mxu0 0.0
    %3127 = vmatpush1.msra.mxu0 0.0
    %3128 = vmatprep.subr.mxu0 0.0
    %3129 = vmatpush1.msra.mxu0 0.0
    %3130 = vmatprep.subr.mxu0 0.0
    %3131 = vmatpush1.msra.mxu0 0.0
    %3132 = vmatprep.subr.mxu0 0.0
    %3133 = vmatpush1.msra.mxu0 0.0
    %3134 = vmatprep.subr.mxu0 0.0
    %3135 = vmatpush1.msra.mxu0 0.0
    %3136 = vmatprep.subr.mxu0 0.0
    %3137 = vmatpush1.msra.mxu0 0.0
    %3138 = vmatprep.subr.mxu0 0.0
    %3139 = vmatpush1.msra.mxu0 0.0
    %3140 = vmatprep.subr.mxu0 0.0
    %3141 = vmatpush1.msra.mxu0 0.0
    %3142 = vmatprep.subr.mxu0 0.0
    %3143 = vmatpush1.msra.mxu0 0.0
    %3144 = vmatprep.subr.mxu0 0.0
    %3145 = vmatpush1.msra.mxu0 0.0
    %3146 = vmatprep.subr.mxu0 0.0
    %3147 = vmatpush1.msra.mxu0 0.0
    %3148 = vmatprep.subr.mxu0 0.0
    %3149 = vmatpush1.msra.mxu0 0.0
    %3150 = vmatprep.subr.mxu0 0.0
    %3151 = vmatpush1.msra.mxu0 0.0
    %3152 = vmatprep.subr.mxu0 0.0
    %3153 = vmatpush1.msra.mxu0 0.0
    %3154 = vmatprep.subr.mxu0 0.0
    %3155 = vmatpush1.msra.mxu0 0.0
    %3156 = vmatprep.subr.mxu0 0.0
    %3157 = vmatpush1.msra.mxu0 0.0
    %3158 = vmatprep.subr.mxu0 0.0
    %3159 = vmatpush1.msra.mxu0 0.0
    %3160 = vmatprep.subr.mxu0 0.0
    %3161 = vmatpush1.msra.mxu0 0.0
    %3162 = vmatprep.subr.mxu0 0.0
    %3163 = vmatpush1.msra.mxu0 0.0
    %3164 = vmatprep.subr.mxu0 0.0
    %3165 = vmatpush1.msra.mxu0 0.0
    %3166 = vmatprep.subr.mxu0 0.0
    %3167 = vmatpush1.msra.mxu0 0.0
    %3168 = vmatprep.subr.mxu0 0.0
    %3169 = vmatpush1.msra.mxu0 0.0
    %3170 = vmatprep.subr.mxu0 0.0
    %3171 = vmatpush1.msra.mxu0 0.0
    %3172 = vmatprep.subr.mxu0 0.0
    %3173 = vmatpush1.msra.mxu0 0.0
    %3174 = vmatprep.subr.mxu0 0.0
    %3175 = vmatpush1.msra.mxu0 0.0
    %3176 = vmatprep.subr.mxu0 0.0
    %3177 = vmatpush1.msra.mxu0 0.0
    %3178 = vmatprep.subr.mxu0 0.0
    %3179 = vmatpush1.msra.mxu0 0.0
    %3180 = vmatprep.mubr.f32.mxu0 0.0
    %3181 = vmatmul.mubr.f32.gmra.mrb[0].mxu0 %v3111
    %v3182 = vpop.f32.mrb[0].mxu0
    %v3183 = vadd.f32 %v3107, %v3182
    %v3184 = vpop.f32.mrb[0].mxu0
    %3185 = vdwg.mxu0
    %v3186 = vld [vmem:[#allocation5 + $0x5f8] sm:$0xff]
    %v3187 = vld [vmem:[#allocation5 + $0x600] sm:$0xf]
    %v3189 = vsel %vm3033, %v3026, 0
    %v3192 = vsel %vm650, %v3187, 0
    %3194 = vmatprep.subr.mxu0 0.0
    %3195 = vmatpush1.msra.mxu0 %v3186
    %3196 = vmatprep.subr.mxu0 0.0
    %3197 = vmatpush1.msra.mxu0 %v3192
    %3198 = vmatprep.subr.mxu0 0.0
    %3199 = vmatpush1.msra.mxu0 0.0
    %3200 = vmatprep.subr.mxu0 0.0
    %3201 = vmatpush1.msra.mxu0 0.0
    %3202 = vmatprep.subr.mxu0 0.0
    %3203 = vmatpush1.msra.mxu0 0.0
    %3204 = vmatprep.subr.mxu0 0.0
    %3205 = vmatpush1.msra.mxu0 0.0
    %3206 = vmatprep.subr.mxu0 0.0
    %3207 = vmatpush1.msra.mxu0 0.0
    %3208 = vmatprep.subr.mxu0 0.0
    %3209 = vmatpush1.msra.mxu0 0.0
    %3210 = vmatprep.subr.mxu0 0.0
    %3211 = vmatpush1.msra.mxu0 0.0
    %3212 = vmatprep.subr.mxu0 0.0
    %3213 = vmatpush1.msra.mxu0 0.0
    %3214 = vmatprep.subr.mxu0 0.0
    %3215 = vmatpush1.msra.mxu0 0.0
    %3216 = vmatprep.subr.mxu0 0.0
    %3217 = vmatpush1.msra.mxu0 0.0
    %3218 = vmatprep.subr.mxu0 0.0
    %3219 = vmatpush1.msra.mxu0 0.0
    %3220 = vmatprep.subr.mxu0 0.0
    %3221 = vmatpush1.msra.mxu0 0.0
    %3222 = vmatprep.subr.mxu0 0.0
    %3223 = vmatpush1.msra.mxu0 0.0
    %3224 = vmatprep.subr.mxu0 0.0
    %3225 = vmatpush1.msra.mxu0 0.0
    %3226 = vmatprep.subr.mxu0 0.0
    %3227 = vmatpush1.msra.mxu0 0.0
    %3228 = vmatprep.subr.mxu0 0.0
    %3229 = vmatpush1.msra.mxu0 0.0
    %3230 = vmatprep.subr.mxu0 0.0
    %3231 = vmatpush1.msra.mxu0 0.0
    %3232 = vmatprep.subr.mxu0 0.0
    %3233 = vmatpush1.msra.mxu0 0.0
    %3234 = vmatprep.subr.mxu0 0.0
    %3235 = vmatpush1.msra.mxu0 0.0
    %3236 = vmatprep.subr.mxu0 0.0
    %3237 = vmatpush1.msra.mxu0 0.0
    %3238 = vmatprep.subr.mxu0 0.0
    %3239 = vmatpush1.msra.mxu0 0.0
    %3240 = vmatprep.subr.mxu0 0.0
    %3241 = vmatpush1.msra.mxu0 0.0
    %3242 = vmatprep.subr.mxu0 0.0
    %3243 = vmatpush1.msra.mxu0 0.0
    %3244 = vmatprep.subr.mxu0 0.0
    %3245 = vmatpush1.msra.mxu0 0.0
    %3246 = vmatprep.subr.mxu0 0.0
    %3247 = vmatpush1.msra.mxu0 0.0
    %3248 = vmatprep.subr.mxu0 0.0
    %3249 = vmatpush1.msra.mxu0 0.0
    %3250 = vmatprep.subr.mxu0 0.0
    %3251 = vmatpush1.msra.mxu0 0.0
    %3252 = vmatprep.subr.mxu0 0.0
    %3253 = vmatpush1.msra.mxu0 0.0
    %3254 = vmatprep.subr.mxu0 0.0
    %3255 = vmatpush1.msra.mxu0 0.0
    %3256 = vmatprep.subr.mxu0 0.0
    %3257 = vmatpush1.msra.mxu0 0.0
    %3258 = vmatprep.mubr.f32.mxu0 0.0
    %3259 = vmatmul.mubr.f32.gmra.mrb[0].mxu0 %v3189
    %v3260 = vpop.f32.mrb[0].mxu0
    %v3261 = vadd.f32 0.0, %v3260
    %v3262 = vpop.f32.mrb[0].mxu0
    %3263 = vdwg.mxu0
    %v3264 = vadd.f32 %v3183, %v3261
    %v3265 = vld [vmem:[#allocation5 + $0x608] sm:$0x1]
    %v3266 = vlaneseq
    %v3267 = vshrl.u32 %v3266, 7
    %v3268 = vsub.s32 0, %v3267
    %v3269 = vrot.slane %v3265, %v3268
    %v3270 = vadd.f32 %v3264, %v3269
    %v3271 = vmax.f32 %v3270, 0.0
    %v3272 = vld [vmem:[#allocation5 + $0x610] sm:$0xf]
    %v3273 = vld [vmem:[#allocation5 + $0x618] sm:$0x1]
    %v3274 = vlaneseq
    %v3275 = vshrl.u32 %v3274, 7
    %v3276 = vsub.s32 0, %v3275
    %v3277 = vrot.slane %v3273, %v3276
    %vm3278 = vcmask 31744
    %v3280 = vsel %vm3278, %v3271, 0
    %v3283 = vsel %vm650, %v3272, 0
    %3285 = vmatprep.subr.mxu0 0.0
    %3286 = vmatpush1.msra.mxu0 %v3283
    %3287 = vmatprep.subr.mxu0 0.0
    %3288 = vmatpush1.msra.mxu0 0.0
    %3289 = vmatprep.subr.mxu0 0.0
    %3290 = vmatpush1.msra.mxu0 0.0
    %3291 = vmatprep.subr.mxu0 0.0
    %3292 = vmatpush1.msra.mxu0 0.0
    %3293 = vmatprep.subr.mxu0 0.0
    %3294 = vmatpush1.msra.mxu0 0.0
    %3295 = vmatprep.subr.mxu0 0.0
    %3296 = vmatpush1.msra.mxu0 0.0
    %3297 = vmatprep.subr.mxu0 0.0
    %3298 = vmatpush1.msra.mxu0 0.0
    %3299 = vmatprep.subr.mxu0 0.0
    %3300 = vmatpush1.msra.mxu0 0.0
    %3301 = vmatprep.subr.mxu0 0.0
    %3302 = vmatpush1.msra.mxu0 0.0
    %3303 = vmatprep.subr.mxu0 0.0
    %3304 = vmatpush1.msra.mxu0 0.0
    %3305 = vmatprep.subr.mxu0 0.0
    %3306 = vmatpush1.msra.mxu0 0.0
    %3307 = vmatprep.subr.mxu0 0.0
    %3308 = vmatpush1.msra.mxu0 0.0
    %3309 = vmatprep.subr.mxu0 0.0
    %3310 = vmatpush1.msra.mxu0 0.0
    %3311 = vmatprep.subr.mxu0 0.0
    %3312 = vmatpush1.msra.mxu0 0.0
    %3313 = vmatprep.subr.mxu0 0.0
    %3314 = vmatpush1.msra.mxu0 0.0
    %3315 = vmatprep.subr.mxu0 0.0
    %3316 = vmatpush1.msra.mxu0 0.0
    %3317 = vmatprep.subr.mxu0 0.0
    %3318 = vmatpush1.msra.mxu0 0.0
    %3319 = vmatprep.subr.mxu0 0.0
    %3320 = vmatpush1.msra.mxu0 0.0
    %3321 = vmatprep.subr.mxu0 0.0
    %3322 = vmatpush1.msra.mxu0 0.0
    %3323 = vmatprep.subr.mxu0 0.0
    %3324 = vmatpush1.msra.mxu0 0.0
    %3325 = vmatprep.subr.mxu0 0.0
    %3326 = vmatpush1.msra.mxu0 0.0
    %3327 = vmatprep.subr.mxu0 0.0
    %3328 = vmatpush1.msra.mxu0 0.0
    %3329 = vmatprep.subr.mxu0 0.0
    %3330 = vmatpush1.msra.mxu0 0.0
    %3331 = vmatprep.subr.mxu0 0.0
    %3332 = vmatpush1.msra.mxu0 0.0
    %3333 = vmatprep.subr.mxu0 0.0
    %3334 = vmatpush1.msra.mxu0 0.0
    %3335 = vmatprep.subr.mxu0 0.0
    %3336 = vmatpush1.msra.mxu0 0.0
    %3337 = vmatprep.subr.mxu0 0.0
    %3338 = vmatpush1.msra.mxu0 0.0
    %3339 = vmatprep.subr.mxu0 0.0
    %3340 = vmatpush1.msra.mxu0 0.0
    %3341 = vmatprep.subr.mxu0 0.0
    %3342 = vmatpush1.msra.mxu0 0.0
    %3343 = vmatprep.subr.mxu0 0.0
    %3344 = vmatpush1.msra.mxu0 0.0
    %3345 = vmatprep.subr.mxu0 0.0
    %3346 = vmatpush1.msra.mxu0 0.0
    %3347 = vmatprep.subr.mxu0 0.0
    %3348 = vmatpush1.msra.mxu0 0.0
    %3349 = vmatprep.mubr.f32.mxu0 0.0
    %3350 = vmatmul.mubr.f32.gmra.mrb[0].mxu0 %v3280
    %v3351 = vpop.f32.mrb[0].mxu0
    %v3352 = vadd.f32 %v3277, %v3351
    %v3353 = vpop.f32.mrb[0].mxu0
    %3354 = vdwg.mxu0
    %v3355 = vmax.f32 %v3352, 0.0
    %v3356 = vld [vmem:[#allocation5 + $0x620] sm:$0xff]
    %v3357 = vld [vmem:[#allocation5 + $0x628] sm:$0xff]
    %v3358 = vld [vmem:[#allocation5 + $0x630] sm:$0xff]
    %v3359 = vld [vmem:[#allocation5 + $0x638] sm:$0xff]
    %v3360 = vld [vmem:[#allocation5 + $0x640] sm:$0x1]
    %v3361 = vlaneseq
    %v3362 = vshrl.u32 %v3361, 7
    %v3363 = vsub.s32 0, %v3362
    %v3364 = vrot.slane %v3360, %v3363
    %v3366 = vsel %vm2057, %v3355, 0
    %3368 = vmatprep.subr.mxu0 0.0
    %3369 = vmatpush1.msra.mxu0 %v3356
    %3370 = vmatprep.subr.mxu0 0.0
    %3371 = vmatpush1.msra.mxu0 %v3357
    %3372 = vmatprep.subr.mxu0 0.0
    %3373 = vmatpush1.msra.mxu0 %v3358
    %3374 = vmatprep.subr.mxu0 0.0
    %3375 = vmatpush1.msra.mxu0 %v3359
    %3376 = vmatprep.subr.mxu0 0.0
    %3377 = vmatpush1.msra.mxu0 0.0
    %3378 = vmatprep.subr.mxu0 0.0
    %3379 = vmatpush1.msra.mxu0 0.0
    %3380 = vmatprep.subr.mxu0 0.0
    %3381 = vmatpush1.msra.mxu0 0.0
    %3382 = vmatprep.subr.mxu0 0.0
    %3383 = vmatpush1.msra.mxu0 0.0
    %3384 = vmatprep.subr.mxu0 0.0
    %3385 = vmatpush1.msra.mxu0 0.0
    %3386 = vmatprep.subr.mxu0 0.0
    %3387 = vmatpush1.msra.mxu0 0.0
    %3388 = vmatprep.subr.mxu0 0.0
    %3389 = vmatpush1.msra.mxu0 0.0
    %3390 = vmatprep.subr.mxu0 0.0
    %3391 = vmatpush1.msra.mxu0 0.0
    %3392 = vmatprep.subr.mxu0 0.0
    %3393 = vmatpush1.msra.mxu0 0.0
    %3394 = vmatprep.subr.mxu0 0.0
    %3395 = vmatpush1.msra.mxu0 0.0
    %3396 = vmatprep.subr.mxu0 0.0
    %3397 = vmatpush1.msra.mxu0 0.0
    %3398 = vmatprep.subr.mxu0 0.0
    %3399 = vmatpush1.msra.mxu0 0.0
    %3400 = vmatprep.subr.mxu0 0.0
    %3401 = vmatpush1.msra.mxu0 0.0
    %3402 = vmatprep.subr.mxu0 0.0
    %3403 = vmatpush1.msra.mxu0 0.0
    %3404 = vmatprep.subr.mxu0 0.0
    %3405 = vmatpush1.msra.mxu0 0.0
    %3406 = vmatprep.subr.mxu0 0.0
    %3407 = vmatpush1.msra.mxu0 0.0
    %3408 = vmatprep.subr.mxu0 0.0
    %3409 = vmatpush1.msra.mxu0 0.0
    %3410 = vmatprep.subr.mxu0 0.0
    %3411 = vmatpush1.msra.mxu0 0.0
    %3412 = vmatprep.subr.mxu0 0.0
    %3413 = vmatpush1.msra.mxu0 0.0
    %3414 = vmatprep.subr.mxu0 0.0
    %3415 = vmatpush1.msra.mxu0 0.0
    %3416 = vmatprep.subr.mxu0 0.0
    %3417 = vmatpush1.msra.mxu0 0.0
    %3418 = vmatprep.subr.mxu0 0.0
    %3419 = vmatpush1.msra.mxu0 0.0
    %3420 = vmatprep.subr.mxu0 0.0
    %3421 = vmatpush1.msra.mxu0 0.0
    %3422 = vmatprep.subr.mxu0 0.0
    %3423 = vmatpush1.msra.mxu0 0.0
    %3424 = vmatprep.subr.mxu0 0.0
    %3425 = vmatpush1.msra.mxu0 0.0
    %3426 = vmatprep.subr.mxu0 0.0
    %3427 = vmatpush1.msra.mxu0 0.0
    %3428 = vmatprep.subr.mxu0 0.0
    %3429 = vmatpush1.msra.mxu0 0.0
    %3430 = vmatprep.subr.mxu0 0.0
    %3431 = vmatpush1.msra.mxu0 0.0
    %3432 = vmatprep.mubr.f32.mxu0 0.0
    %3433 = vmatmul.mubr.f32.gmra.mrb[0].mxu0 %v3366
    %v3434 = vpop.f32.mrb[0].mxu0
    %v3435 = vadd.f32 %v3364, %v3434
    %v3436 = vpop.f32.mrb[0].mxu0
    %3437 = vdwg.mxu0
    %v3438 = vmax.f32 %v3435, 0.0
    %v3439 = vld [vmem:[#allocation5 + $0x648] sm:$0xff]
    %v3440 = vld [vmem:[#allocation5 + $0x650] sm:$0xff]
    %v3441 = vld [vmem:[#allocation5 + $0x658] sm:$0x1]
    %v3442 = vlaneseq
    %v3443 = vshrl.u32 %v3442, 7
    %v3444 = vsub.s32 0, %v3443
    %v3445 = vrot.slane %v3441, %v3444
    %v3447 = vsel %vm2853, %v3438, 0
    %3449 = vmatprep.subr.mxu0 0.0
    %3450 = vmatpush1.msra.mxu0 %v3439
    %3451 = vmatprep.subr.mxu0 0.0
    %3452 = vmatpush1.msra.mxu0 %v3440
    %3453 = vmatprep.subr.mxu0 0.0
    %3454 = vmatpush1.msra.mxu0 0.0
    %3455 = vmatprep.subr.mxu0 0.0
    %3456 = vmatpush1.msra.mxu0 0.0
    %3457 = vmatprep.subr.mxu0 0.0
    %3458 = vmatpush1.msra.mxu0 0.0
    %3459 = vmatprep.subr.mxu0 0.0
    %3460 = vmatpush1.msra.mxu0 0.0
    %3461 = vmatprep.subr.mxu0 0.0
    %3462 = vmatpush1.msra.mxu0 0.0
    %3463 = vmatprep.subr.mxu0 0.0
    %3464 = vmatpush1.msra.mxu0 0.0
    %3465 = vmatprep.subr.mxu0 0.0
    %3466 = vmatpush1.msra.mxu0 0.0
    %3467 = vmatprep.subr.mxu0 0.0
    %3468 = vmatpush1.msra.mxu0 0.0
    %3469 = vmatprep.subr.mxu0 0.0
    %3470 = vmatpush1.msra.mxu0 0.0
    %3471 = vmatprep.subr.mxu0 0.0
    %3472 = vmatpush1.msra.mxu0 0.0
    %3473 = vmatprep.subr.mxu0 0.0
    %3474 = vmatpush1.msra.mxu0 0.0
    %3475 = vmatprep.subr.mxu0 0.0
    %3476 = vmatpush1.msra.mxu0 0.0
    %3477 = vmatprep.subr.mxu0 0.0
    %3478 = vmatpush1.msra.mxu0 0.0
    %3479 = vmatprep.subr.mxu0 0.0
    %3480 = vmatpush1.msra.mxu0 0.0
    %3481 = vmatprep.subr.mxu0 0.0
    %3482 = vmatpush1.msra.mxu0 0.0
    %3483 = vmatprep.subr.mxu0 0.0
    %3484 = vmatpush1.msra.mxu0 0.0
    %3485 = vmatprep.subr.mxu0 0.0
    %3486 = vmatpush1.msra.mxu0 0.0
    %3487 = vmatprep.subr.mxu0 0.0
    %3488 = vmatpush1.msra.mxu0 0.0
    %3489 = vmatprep.subr.mxu0 0.0
    %3490 = vmatpush1.msra.mxu0 0.0
    %3491 = vmatprep.subr.mxu0 0.0
    %3492 = vmatpush1.msra.mxu0 0.0
    %3493 = vmatprep.subr.mxu0 0.0
    %3494 = vmatpush1.msra.mxu0 0.0
    %3495 = vmatprep.subr.mxu0 0.0
    %3496 = vmatpush1.msra.mxu0 0.0
    %3497 = vmatprep.subr.mxu0 0.0
    %3498 = vmatpush1.msra.mxu0 0.0
    %3499 = vmatprep.subr.mxu0 0.0
    %3500 = vmatpush1.msra.mxu0 0.0
    %3501 = vmatprep.subr.mxu0 0.0
    %3502 = vmatpush1.msra.mxu0 0.0
    %3503 = vmatprep.subr.mxu0 0.0
    %3504 = vmatpush1.msra.mxu0 0.0
    %3505 = vmatprep.subr.mxu0 0.0
    %3506 = vmatpush1.msra.mxu0 0.0
    %3507 = vmatprep.subr.mxu0 0.0
    %3508 = vmatpush1.msra.mxu0 0.0
    %3509 = vmatprep.subr.mxu0 0.0
    %3510 = vmatpush1.msra.mxu0 0.0
    %3511 = vmatprep.subr.mxu0 0.0
    %3512 = vmatpush1.msra.mxu0 0.0
    %3513 = vmatprep.mubr.f32.mxu0 0.0
    %3514 = vmatmul.mubr.f32.gmra.mrb[0].mxu0 %v3447
    %v3515 = vpop.f32.mrb[0].mxu0
    %v3516 = vadd.f32 %v3445, %v3515
    %v3517 = vpop.f32.mrb[0].mxu0
    %3518 = vdwg.mxu0
    %vm3519 = vcmask 74752
    %3520 = vst.msk [vmem:[#allocation7] sm:$0x3] %vm3519, %v3516
    // Predicated region
    $region18: #{forward.1} parent=1 // pred_check
      _
    $region19: #{forward.1} parent=1 // pred_check_branch
      %3522 = sbr.rel (0) target = $region21
    $region20: #{forward.1} parent=1 // pred_region
      %s3524 = ssub.s32 32, 32
      %3525 = vsyncadd [#allocation4], %s3524
      %s3527 = sshll.u32 [#allocation7], 4
      %s3528 = int_to_ptr.vmem [resolvable:$true] %s3527
      %3530 = dma.vmem_to_hbm [thread:$0]  %s3528, 32, %s2, [#allocation4]
    $region21: #{forward.1} parent=1 // pred_fallthru
      _
    // Predicated region
    $region22: #{forward.1} parent=1 // pred_check
      _
    $region23: #{forward.1} parent=1 // pred_check_branch
      %3532 = sbr.rel (0) target = $region25
    $region24: #{forward.1} parent=1 // pred_region
      %3533 = dma.done [#allocation4], 32
    $region25: #{forward.1} parent=1 // pred_fallthru
      _
    %3534 = vsyncpa [#allocation3], 1
    %3535 = vsyncpa [#allocation6], 1
    %3536 = vsyncpa [#allocation4], 1

</llo_original>
